<compile_context>
chip_gen: v5e
topology: v5e:2x2
jax: 0.10.0
libtpu: 0.0.40
codegen_flags: <defaults>
</compile_context>

<pallas_src>
import jax
import jax.numpy as jnp
import numpy as np
from jax.experimental import pallas as pl
from jax.experimental.pallas import tpu as pltpu

EPS = 1e-5
_HI = jax.lax.Precision.HIGHEST

_COMPILER_PARAMS = pltpu.CompilerParams(
    dimension_semantics=("parallel",),       # batch grid axis -> both TCs on v7x
    vmem_limit_bytes=32 * 1024 * 1024,       # explicit budget, valid on all gens
)


# ---------------------------------------------------------------------------
# In-kernel helpers
# ---------------------------------------------------------------------------
def _partial_stats(acc):
    """Per-channel (sum, sum_sq) of an (M, C) f32 tile -> (2, C) f32."""
    s = jnp.sum(acc, axis=0, keepdims=True)
    ss = jnp.sum(acc * acc, axis=0, keepdims=True)
    return jnp.concatenate([s, ss], axis=0)


def _bn_scale_shift(stats_all, gamma, beta, m_total):
    """Fold per-image (sum, sum_sq) partials into an affine (scale, shift).

    stats_all: (N, 2, C) f32, gamma/beta: (1, C) f32.  Training-mode BN with
    biased variance (matches nn.BatchNorm2d forward), var = E[x^2] - mean^2.
    """
    tot = jnp.sum(stats_all, axis=0)                        # (2, C)
    inv_m = 1.0 / m_total
    mean = tot[0:1, :] * inv_m
    var = jnp.maximum(tot[1:2, :] * inv_m - mean * mean, 0.0)
    inv_std = jax.lax.rsqrt(var + EPS)
    scale = gamma * inv_std
    shift = beta - mean * scale
    return scale, shift                                     # each (1, C)


def _im2col_slab(xp, ho, wo, taps):
    """Slice the 9 shifted tap windows out of a VMEM-resident padded activation
    and concatenate along the lane (channel) dim -> (ho*wo, 9*Cin) slab."""
    parts = [xp[r:r + ho, c:c + wo, k:k + cc] for (r, c, k, cc) in taps]
    return jnp.concatenate(parts, axis=-1).reshape(ho * wo, -1)


# ---------------------------------------------------------------------------
# Stage 1: conv1 (single K=9*Cin bf16 matmul) + per-image BN partial stats
# ---------------------------------------------------------------------------
def _conv1_s1_kernel(x_ref, w_ref, y_ref, st_ref):
    # x_ref: (1, H+2, W+2, Cin) bf16   w_ref: (9*Cin, Cout) bf16
    # y_ref: (1, Ho, Wo, Cout) f32     st_ref: (1, 2, Cout) f32
    ho, wo, cout = y_ref.shape[1], y_ref.shape[2], y_ref.shape[3]
    cin = x_ref.shape[3]
    taps = [(kh, kw, 0, cin) for kh in range(3) for kw in range(3)]
    slab = _im2col_slab(x_ref[0], ho, wo, taps)              # (M, 9*Cin) bf16
    acc = jnp.dot(slab, w_ref[...], preferred_element_type=jnp.float32)
    y_ref[0] = acc.reshape(ho, wo, cout)
    st_ref[0] = _partial_stats(acc)


def _conv1_s2_shortcut_kernel(x_ref, w_ref, ws_ref, y_ref, st_ref, sc_ref, sts_ref):
    # x_ref: (1, Hp/2, Wp/2, 4*Cin) bf16 -- space-to-depth of the zero-padded
    # input: channel block p = 2*a + b holds x_pad[2i + a, 2j + b, :].
    ho, wo, cout = y_ref.shape[1], y_ref.shape[2], y_ref.shape[3]
    cin = ws_ref.shape[0]
    xp = x_ref[0]
    taps = [(kh // 2, kw // 2, (2 * (kh % 2) + (kw % 2)) * cin, cin)
            for kh in range(3) for kw in range(3)]
    slab = _im2col_slab(xp, ho, wo, taps)                    # stride-2 taps
    acc = jnp.dot(slab, w_ref[...], preferred_element_type=jnp.float32)
    y_ref[0] = acc.reshape(ho, wo, cout)
    st_ref[0] = _partial_stats(acc)
    # 1x1 stride-2 shortcut conv: original pixel (2i, 2j) == padded (2i+1, 2j+1)
    # == phase (1, 1) of the space-to-depth layout at (i, j).
    xs = xp[0:ho, 0:wo, 3 * cin:4 * cin].reshape(ho * wo, cin)
    sc = jnp.dot(xs, ws_ref[...], preferred_element_type=jnp.float32)
    sc_ref[0] = sc
    sts_ref[0] = _partial_stats(sc)


# ---------------------------------------------------------------------------
# Stage 2: BN1 (from partials) + ReLU + conv2 (taps sliced in-kernel)
# ---------------------------------------------------------------------------
def _bn1_relu_conv2_kernel(st1_ref, g1_ref, b1_ref, y1_ref, w2_ref,
                           y2_ref, st2_ref, zpad_ref):
    # st1_ref: (N, 2, C) f32 (all per-image partials)   y1_ref: (1, Ho, Wo, C) f32
    # w2_ref: (9*C, C) bf16   y2_ref: (1, Ho*Wo, C) f32  st2_ref: (1, 2, C) f32
    # zpad_ref: VMEM scratch (Ho+2, Wo+2, C) bf16 = zero-padded BN1+ReLU output.
    n_img = st1_ref.shape[0]
    ho, wo, c = y1_ref.shape[1], y1_ref.shape[2], y1_ref.shape[3]
    scale, shift = _bn_scale_shift(st1_ref[...], g1_ref[...], b1_ref[...],
                                   float(n_img * ho * wo))
    z = jnp.maximum(y1_ref[0] * scale + shift, 0.0).astype(jnp.bfloat16)
    zpad_ref[...] = jnp.zeros(zpad_ref.shape, zpad_ref.dtype)
    zpad_ref[1:ho + 1, 1:wo + 1, :] = z
    taps = [(kh, kw, 0, c) for kh in range(3) for kw in range(3)]
    slab = _im2col_slab(zpad_ref[...], ho, wo, taps)
    acc = jnp.dot(slab, w2_ref[...], preferred_element_type=jnp.float32)
    y2_ref[0] = acc
    st2_ref[0] = _partial_stats(acc)


# ---------------------------------------------------------------------------
# Stage 3: BN2 + residual add; output stored lane-dense as (C, H*W) per image
# ---------------------------------------------------------------------------
def _bn2_add_identity_kernel(st2_ref, g2_ref, b2_ref, y2_ref, xres_ref, o_ref):
    n_img = st2_ref.shape[0]
    m, c = y2_ref.shape[1], y2_ref.shape[2]
    scale, shift = _bn_scale_shift(st2_ref[...], g2_ref[...], b2_ref[...],
                                   float(n_img * m))
    res = xres_ref[0].reshape(m, c)
    out = y2_ref[0] * scale + shift + res
    o_ref[0] = jnp.transpose(out, (1, 0))    # (C, M): lane-dense store, free NCHW


def _bn2_add_shortcut_kernel(st2_ref, g2_ref, b2_ref, y2_ref,
                             sc_ref, sts_ref, gs_ref, bs_ref, o_ref):
    n_img = st2_ref.shape[0]
    m, c = y2_ref.shape[1], y2_ref.shape[2]
    scale2, shift2 = _bn_scale_shift(st2_ref[...], g2_ref[...], b2_ref[...],
                                     float(n_img * m))
    scale_s, shift_s = _bn_scale_shift(sts_ref[...], gs_ref[...], bs_ref[...],
                                       float(n_img * m))
    res = sc_ref[0] * scale_s + shift_s
    out = y2_ref[0] * scale2 + shift2 + res
    o_ref[0] = jnp.transpose(out, (1, 0))


# ---------------------------------------------------------------------------
# ResNetBasicBlock forward
# ---------------------------------------------------------------------------
@jax.jit
def resnet_basic_block(x_nchw, params):
    n, cin, h, w = x_nchw.shape
    cout = params["w1"].shape[-1]
    apply_shortcut = cin != cout
    stride = 2 if apply_shortcut else 1

    # Glue: NCHW->NHWC, zero-pad, bf16 cast (single 1x copy -- no 9x im2col).
    # TODO(synk): fold the input transpose/pad into the stage-1 kernel DMA path.
    x_nhwc = jnp.transpose(x_nchw, (0, 2, 3, 1)).astype(jnp.float32)
    x_pad = jnp.pad(x_nhwc, ((0, 0), (1, 1), (1, 1), (0, 0))).astype(jnp.bfloat16)

    if stride == 2:
        ho, wo = (h + 1) // 2, (w + 1) // 2
        hp, wp = h + 2, w + 2
        hpe, wpe = hp + (hp % 2), wp + (wp % 2)
        xpe = jnp.pad(x_pad, ((0, 0), (0, hpe - hp), (0, wpe - wp), (0, 0)))
        # space-to-depth (1x rearrangement): stride-2 taps and the 1x1/s2
        # shortcut become contiguous in-kernel slices.
        x_a = xpe.reshape(n, hpe // 2, 2, wpe // 2, 2, cin)
        x_a = x_a.transpose(0, 1, 3, 2, 4, 5).reshape(n, hpe // 2, wpe // 2, 4 * cin)
    else:
        ho, wo = h, w
        x_a = x_pad
    m_img = ho * wo

    w1 = params["w1"].reshape(9 * cin, cout).astype(jnp.bfloat16)
    w2 = params["w2"].reshape(9 * cout, cout).astype(jnp.bfloat16)
    g1, b1 = params["g1"], params["b1"]
    g2, b2 = params["g2"], params["b2"]

    def img_spec(shape):   # one image per grid step
        return pl.BlockSpec((1,) + tuple(shape[1:]),
                            lambda i: (i,) + (0,) * (len(shape) - 1))

    def full_spec(shape):  # small array, whole block resident across the grid
        return pl.BlockSpec(tuple(shape), lambda i: (0,) * len(shape))

    # ---- stage 1: conv1 (+ shortcut conv) + per-image BN partial stats ------
    if apply_shortcut:
        ws = params["ws"].astype(jnp.bfloat16)
        y1_raw, st1, sc_raw, st_s = pl.pallas_call(
            _conv1_s2_shortcut_kernel,
            grid=(n,),
            in_specs=[img_spec(x_a.shape), full_spec(w1.shape), full_spec(ws.shape)],
            out_specs=[img_spec((n, ho, wo, cout)), img_spec((n, 2, cout)),
                       img_spec((n, m_img, cout)), img_spec((n, 2, cout))],
            out_shape=[jax.ShapeDtypeStruct((n, ho, wo, cout), jnp.float32),
                       jax.ShapeDtypeStruct((n, 2, cout), jnp.float32),
                       jax.ShapeDtypeStruct((n, m_img, cout), jnp.float32),
                       jax.ShapeDtypeStruct((n, 2, cout), jnp.float32)],
            compiler_params=_COMPILER_PARAMS,
        )(x_a, w1, ws)
    else:
        y1_raw, st1 = pl.pallas_call(
            _conv1_s1_kernel,
            grid=(n,),
            in_specs=[img_spec(x_a.shape), full_spec(w1.shape)],
            out_specs=[img_spec((n, ho, wo, cout)), img_spec((n, 2, cout))],
            out_shape=[jax.ShapeDtypeStruct((n, ho, wo, cout), jnp.float32),
                       jax.ShapeDtypeStruct((n, 2, cout), jnp.float32)],
            compiler_params=_COMPILER_PARAMS,
        )(x_a, w1)

    # ---- stage 2: BN1 + ReLU + conv2 (y1 read back exactly once) ------------
    y2_raw, st2 = pl.pallas_call(
        _bn1_relu_conv2_kernel,
        grid=(n,),
        in_specs=[full_spec(st1.shape), full_spec(g1.shape), full_spec(b1.shape),
                  img_spec(y1_raw.shape), full_spec(w2.shape)],
        out_specs=[img_spec((n, m_img, cout)), img_spec((n, 2, cout))],
        out_shape=[jax.ShapeDtypeStruct((n, m_img, cout), jnp.float32),
                   jax.ShapeDtypeStruct((n, 2, cout), jnp.float32)],
        scratch_shapes=[pltpu.VMEM((ho + 2, wo + 2, cout), jnp.bfloat16)],
        compiler_params=_COMPILER_PARAMS,
    )(st1, g1, b1, y1_raw, w2)

    # ---- stage 3: BN2 + residual add, lane-dense (C, H*W) output ------------
    if apply_shortcut:
        out_t = pl.pallas_call(
            _bn2_add_shortcut_kernel,
            grid=(n,),
            in_specs=[full_spec(st2.shape), full_spec(g2.shape), full_spec(b2.shape),
                      img_spec(y2_raw.shape),
                      img_spec(sc_raw.shape), full_spec(st_s.shape),
                      full_spec(params["gs"].shape), full_spec(params["bs"].shape)],
            out_specs=img_spec((n, cout, m_img)),
            out_shape=jax.ShapeDtypeStruct((n, cout, m_img), jnp.float32),
            compiler_params=_COMPILER_PARAMS,
        )(st2, g2, b2, y2_raw, sc_raw, st_s, params["gs"], params["bs"])
    else:
        out_t = pl.pallas_call(
            _bn2_add_identity_kernel,
            grid=(n,),
            in_specs=[full_spec(st2.shape), full_spec(g2.shape), full_spec(b2.shape),
                      img_spec(y2_raw.shape), img_spec(x_nhwc.shape)],
            out_specs=img_spec((n, cout, m_img)),
            out_shape=jax.ShapeDtypeStruct((n, cout, m_img), jnp.float32),
            compiler_params=_COMPILER_PARAMS,
        )(st2, g2, b2, y2_raw, x_nhwc)

    # (N, C, H*W) -> (N, C, H, W): free row-major reshape, no transpose needed.
    return out_t.reshape(n, cout, ho, wo)


# ---------------------------------------------------------------------------
# Deterministic parameter init (synthetic; no checkpoint)
# ---------------------------------------------------------------------------
def init_params(key, in_ch, out_ch):
    ks = jax.random.split(key, 9)
    p = {
        # conv weights stored as (9, Cin, Cout), tap order kh*3+kw
        "w1": 0.2 * jax.random.normal(ks[0], (9, in_ch, out_ch), jnp.float32),
        "g1": 1.0 + 0.1 * jax.random.normal(ks[1], (1, out_ch), jnp.float32),
        "b1": 0.1 * jax.random.normal(ks[2], (1, out_ch), jnp.float32),
        "w2": 0.2 * jax.random.normal(ks[3], (9, out_ch, out_ch), jnp.float32),
        "g2": 1.0 + 0.1 * jax.random.normal(ks[4], (1, out_ch), jnp.float32),
        "b2": 0.1 * jax.random.normal(ks[5], (1, out_ch), jnp.float32),
    }
    if in_ch != out_ch:
        p["ws"] = 0.2 * jax.random.normal(ks[6], (in_ch, out_ch), jnp.float32)
        p["gs"] = 1.0 + 0.1 * jax.random.normal(ks[7], (1, out_ch), jnp.float32)
        p["bs"] = 0.1 * jax.random.normal(ks[8], (1, out_ch), jnp.float32)
    return p


# ---------------------------------------------------------------------------
# Pure-JAX reference (mirrors the PyTorch module, training-mode BN).  Conv
# inputs/weights are rounded to bf16 (f32 accumulation) to mirror the kernel's
# MXU precision choice; BN and residual math stay in f32.
# ---------------------------------------------------------------------------
def ref_block(x_nchw, params, in_ch, out_ch):
    stride = 2 if in_ch != out_ch else 1

    def q(v):
        return v.astype(jnp.bfloat16).astype(jnp.float32)

    def conv3x3(x, w9, s):
        ci, co = w9.shape[1], w9.shape[2]
        wk = q(w9).reshape(3, 3, ci, co).transpose(3, 2, 0, 1)  # OIHW
        return jax.lax.conv_general_dilated(
            q(x), wk, window_strides=(s, s), padding=((1, 1), (1, 1)),
            dimension_numbers=("NCHW", "OIHW", "NCHW"), precision=_HI)

    def bn(x, g, b):
        g = g.reshape(1, -1, 1, 1)
        b = b.reshape(1, -1, 1, 1)
        mean = jnp.mean(x, axis=(0, 2, 3), keepdims=True)
        var = jnp.mean((x - mean) ** 2, axis=(0, 2, 3), keepdims=True)
        return (x - mean) * jax.lax.rsqrt(var + EPS) * g + b

    h1 = jnp.maximum(bn(conv3x3(x_nchw, params["w1"], stride),
                        params["g1"], params["b1"]), 0.0)
    h2 = bn(conv3x3(h1, params["w2"], 1), params["g2"], params["b2"])
    if in_ch != out_ch:
        wk = q(params["ws"]).T.reshape(out_ch, in_ch, 1, 1)
        r = jax.lax.conv_general_dilated(
            q(x_nchw), wk, window_strides=(2, 2), padding="VALID",
            dimension_numbers=("NCHW", "OIHW", "NCHW"), precision=_HI)
        r = bn(r, params["gs"], params["bs"])
    else:
        r = x_nchw
    return h2 + r


# ---------------------------------------------------------------------------
if __name__ == "__main__":
    key = jax.random.PRNGKey(0)
    kx, kp1, kp2 = jax.random.split(key, 3)
    x = jax.random.normal(kx, (2, 4, 16, 16), jnp.float32)  # NCHW, like PyTorch

    # Case 1: in_channels == out_channels -> identity residual, stride 1
    p1 = init_params(kp1, 4, 4)
    y1 = jax.block_until_ready(resnet_basic_block(x, p1))
    r1 = ref_block(x, p1, 4, 4)
    np.testing.assert_allclose(np.asarray(y1), np.asarray(r1),
                               rtol=5e-3, atol=5e-3)

    # Case 2: in_channels != out_channels -> 1x1/s2 conv + BN shortcut, stride 2
    p2 = init_params(kp2, 4, 8)
    y2 = jax.block_until_ready(resnet_basic_block(x, p2))
    r2 = ref_block(x, p2, 4, 8)
    np.testing.assert_allclose(np.asarray(y2), np.asarray(r2),
                               rtol=5e-3, atol=5e-3)

    print("KERNEL_OK")
</pallas_src>

<mosaic_0001>
module attributes {stable_mosaic.version = 11 : i64} {
  func.func @_conv1_s1_kernel(%arg0: i32, %arg1: memref<1x18x18x4xbf16, #tpu.memory_space<vmem>>, %arg2: memref<36x4xbf16, #tpu.memory_space<vmem>>, %arg3: memref<1x16x16x4xf32, #tpu.memory_space<vmem>>, %arg4: memref<1x2x4xf32, #tpu.memory_space<vmem>>) attributes {dimension_semantics = [#tpu.dimension_semantics<parallel>], iteration_bounds = array<i64: 2>, scalar_prefetch = 0 : i64, scratch_operands = 0 : i64, tpu.core_type = #tpu.core_type<tc>, window_params = [{transform_indices = @transform_0, window_bounds = array<i64: 1, 18, 18, 4>}, {pipeline_mode = #tpu.pipeline_mode<synchronous>, transform_indices = @transform_1, window_bounds = array<i64: 36, 4>}, {transform_indices = @transform_2, window_bounds = array<i64: 1, 16, 16, 4>}, {transform_indices = @transform_3, window_bounds = array<i64: 1, 2, 4>}]} {
    %c0 = arith.constant 0 : index
    %c0_0 = arith.constant 0 : index
    %c0_1 = arith.constant 0 : index
    %c0_2 = arith.constant 0 : index
    %0 = vector.load %arg1[%c0, %c0_0, %c0_1, %c0_2] : memref<1x18x18x4xbf16, #tpu.memory_space<vmem>>, vector<1x18x18x4xbf16>
    %1 = vector.shape_cast %0 : vector<1x18x18x4xbf16> to vector<18x18x4xbf16>
    %2 = vector.extract_strided_slice %1 {offsets = [0, 0, 0], sizes = [16, 16, 4], strides = [1, 1, 1]} : vector<18x18x4xbf16> to vector<16x16x4xbf16>
    %3 = vector.extract_strided_slice %1 {offsets = [0, 1, 0], sizes = [16, 16, 4], strides = [1, 1, 1]} : vector<18x18x4xbf16> to vector<16x16x4xbf16>
    %4 = vector.extract_strided_slice %1 {offsets = [0, 2, 0], sizes = [16, 16, 4], strides = [1, 1, 1]} : vector<18x18x4xbf16> to vector<16x16x4xbf16>
    %5 = vector.extract_strided_slice %1 {offsets = [1, 0, 0], sizes = [16, 16, 4], strides = [1, 1, 1]} : vector<18x18x4xbf16> to vector<16x16x4xbf16>
    %6 = vector.extract_strided_slice %1 {offsets = [1, 1, 0], sizes = [16, 16, 4], strides = [1, 1, 1]} : vector<18x18x4xbf16> to vector<16x16x4xbf16>
    %7 = vector.extract_strided_slice %1 {offsets = [1, 2, 0], sizes = [16, 16, 4], strides = [1, 1, 1]} : vector<18x18x4xbf16> to vector<16x16x4xbf16>
    %8 = vector.extract_strided_slice %1 {offsets = [2, 0, 0], sizes = [16, 16, 4], strides = [1, 1, 1]} : vector<18x18x4xbf16> to vector<16x16x4xbf16>
    %9 = vector.extract_strided_slice %1 {offsets = [2, 1, 0], sizes = [16, 16, 4], strides = [1, 1, 1]} : vector<18x18x4xbf16> to vector<16x16x4xbf16>
    %10 = vector.extract_strided_slice %1 {offsets = [2, 2, 0], sizes = [16, 16, 4], strides = [1, 1, 1]} : vector<18x18x4xbf16> to vector<16x16x4xbf16>
    %11 = tpu.concatenate %2, %3, %4, %5, %6, %7, %8, %9, %10 in 2 : vector<16x16x4xbf16>, vector<16x16x4xbf16>, vector<16x16x4xbf16>, vector<16x16x4xbf16>, vector<16x16x4xbf16>, vector<16x16x4xbf16>, vector<16x16x4xbf16>, vector<16x16x4xbf16>, vector<16x16x4xbf16> -> vector<16x16x36xbf16>
    %12 = vector.shape_cast %11 : vector<16x16x36xbf16> to vector<256x36xbf16>
    %c0_3 = arith.constant 0 : index
    %c0_4 = arith.constant 0 : index
    %13 = vector.load %arg2[%c0_3, %c0_4] : memref<36x4xbf16, #tpu.memory_space<vmem>>, vector<36x4xbf16>
    %cst = arith.constant dense<0.000000e+00> : vector<256x4xf32>
    %14 = tpu.matmul %12, %13, %cst {dimension_numbers = #tpu.dot_dimension_numbers<[1], [0], [0], [1], [0, 0, 1, 1], [], []>} : vector<256x36xbf16>, vector<36x4xbf16>, vector<256x4xf32> -> vector<256x4xf32>
    %15 = vector.shape_cast %14 : vector<256x4xf32> to vector<16x16x4xf32>
    %c0_5 = arith.constant 0 : index
    %c0_6 = arith.constant 0 : index
    %c0_7 = arith.constant 0 : index
    %c0_8 = arith.constant 0 : index
    %16 = vector.load %arg3[%c0_5, %c0_6, %c0_7, %c0_8] : memref<1x16x16x4xf32, #tpu.memory_space<vmem>>, vector<1x16x16x4xf32>
    %17 = vector.shape_cast %16 : vector<1x16x16x4xf32> to vector<16x16x4xf32>
    %18 = vector.shape_cast %15 : vector<16x16x4xf32> to vector<1x16x16x4xf32>
    tpu.vector_store %arg3[%c0_5, %c0_6, %c0_7, %c0_8], %18 {strides = array<i32>} : memref<1x16x16x4xf32, #tpu.memory_space<vmem>>, vector<1x16x16x4xf32>,
    %cst_9 = arith.constant dense<0.000000e+00> : vector<4xf32>
    %19 = vector.multi_reduction <add>, %14, %cst_9 [0] : vector<256x4xf32> to vector<4xf32>
    %20 = vector.shape_cast %19 : vector<4xf32> to vector<1x4xf32>
    %21 = arith.mulf %14, %14 : vector<256x4xf32>
    %cst_10 = arith.constant dense<0.000000e+00> : vector<4xf32>
    %22 = vector.multi_reduction <add>, %21, %cst_10 [0] : vector<256x4xf32> to vector<4xf32>
    %23 = vector.shape_cast %22 : vector<4xf32> to vector<1x4xf32>
    %24 = tpu.concatenate %20, %23 in 0 : vector<1x4xf32>, vector<1x4xf32> -> vector<2x4xf32>
    %c0_11 = arith.constant 0 : index
    %c0_12 = arith.constant 0 : index
    %c0_13 = arith.constant 0 : index
    %25 = vector.load %arg4[%c0_11, %c0_12, %c0_13] : memref<1x2x4xf32, #tpu.memory_space<vmem>>, vector<1x2x4xf32>
    %26 = vector.shape_cast %25 : vector<1x2x4xf32> to vector<2x4xf32>
    %27 = vector.shape_cast %24 : vector<2x4xf32> to vector<1x2x4xf32>
    tpu.vector_store %arg4[%c0_11, %c0_12, %c0_13], %27 {strides = array<i32>} : memref<1x2x4xf32, #tpu.memory_space<vmem>>, vector<1x2x4xf32>,
    return
  }
  func.func @transform_0(%arg0: i32) -> (i32, i32, i32, i32) {
    %c0_i32 = arith.constant 0 : i32
    %c0_i32_0 = arith.constant 0 : i32
    %c0_i32_1 = arith.constant 0 : i32
    %c0_i32_2 = arith.constant 0 : i32
    return %arg0, %c0_i32, %c0_i32_0, %c0_i32_1 : i32, i32, i32, i32
  }
  func.func @transform_1(%arg0: i32) -> (i32, i32) {
    %c0_i32 = arith.constant 0 : i32
    %c0_i32_0 = arith.constant 0 : i32
    %c0_i32_1 = arith.constant 0 : i32
    return %c0_i32, %c0_i32_0 : i32, i32
  }
  func.func @transform_2(%arg0: i32) -> (i32, i32, i32, i32) {
    %c0_i32 = arith.constant 0 : i32
    %c0_i32_0 = arith.constant 0 : i32
    %c0_i32_1 = arith.constant 0 : i32
    %c0_i32_2 = arith.constant 0 : i32
    return %arg0, %c0_i32, %c0_i32_0, %c0_i32_1 : i32, i32, i32, i32
  }
  func.func @transform_3(%arg0: i32) -> (i32, i32, i32) {
    %c0_i32 = arith.constant 0 : i32
    %c0_i32_0 = arith.constant 0 : i32
    %c0_i32_1 = arith.constant 0 : i32
    return %arg0, %c0_i32, %c0_i32_0 : i32, i32, i32
  }
}

module attributes {stable_mosaic.version = 11 : i64} {
  func.func @_bn2_add_identity_kernel(%arg0: i32, %arg1: memref<2x2x4xf32, #tpu.memory_space<vmem>>, %arg2: memref<1x4xf32, #tpu.memory_space<vmem>>, %arg3: memref<1x4xf32, #tpu.memory_space<vmem>>, %arg4: memref<1x256x4xf32, #tpu.memory_space<vmem>>, %arg5: memref<1x16x16x4xf32, #tpu.memory_space<vmem>>, %arg6: memref<1x4x256xf32, #tpu.memory_space<vmem>>) attributes {dimension_semantics = [#tpu.dimension_semantics<parallel>], iteration_bounds = array<i64: 2>, scalar_prefetch = 0 : i64, scratch_operands = 0 : i64, tpu.core_type = #tpu.core_type<tc>, window_params = [{pipeline_mode = #tpu.pipeline_mode<synchronous>, transform_indices = @transform_0, window_bounds = array<i64: 2, 2, 4>}, {pipeline_mode = #tpu.pipeline_mode<synchronous>, transform_indices = @transform_1, window_bounds = array<i64: 1, 4>}, {pipeline_mode = #tpu.pipeline_mode<synchronous>, transform_indices = @transform_2, window_bounds = array<i64: 1, 4>}, {transform_indices = @transform_3, window_bounds = array<i64: 1, 256, 4>}, {transform_indices = @transform_4, window_bounds = array<i64: 1, 16, 16, 4>}, {transform_indices = @transform_5, window_bounds = array<i64: 1, 4, 256>}]} {
    %c0 = arith.constant 0 : index
    %c0_0 = arith.constant 0 : index
    %c0_1 = arith.constant 0 : index
    %0 = vector.load %arg1[%c0, %c0_0, %c0_1] : memref<2x2x4xf32, #tpu.memory_space<vmem>>, vector<2x2x4xf32>
    %c0_2 = arith.constant 0 : index
    %c0_3 = arith.constant 0 : index
    %1 = vector.load %arg2[%c0_2, %c0_3] : memref<1x4xf32, #tpu.memory_space<vmem>>, vector<1x4xf32>
    %c0_4 = arith.constant 0 : index
    %c0_5 = arith.constant 0 : index
    %2 = vector.load %arg3[%c0_4, %c0_5] : memref<1x4xf32, #tpu.memory_space<vmem>>, vector<1x4xf32>
    %cst = arith.constant dense<0.000000e+00> : vector<2x4xf32>
    %3 = vector.multi_reduction <add>, %0, %cst [0] : vector<2x2x4xf32> to vector<2x4xf32>
    %4 = vector.extract_strided_slice %3 {offsets = [0, 0], sizes = [1, 4], strides = [1, 1]} : vector<2x4xf32> to vector<1x4xf32>
    %cst_6 = arith.constant 0.001953125 : f32
    %5 = vector.broadcast %cst_6 : f32 to vector<1x4xf32>
    %6 = arith.mulf %4, %5 : vector<1x4xf32>
    %7 = vector.extract_strided_slice %3 {offsets = [1, 0], sizes = [1, 4], strides = [1, 1]} : vector<2x4xf32> to vector<1x4xf32>
    %cst_7 = arith.constant 0.001953125 : f32
    %8 = vector.broadcast %cst_7 : f32 to vector<1x4xf32>
    %9 = arith.mulf %7, %8 : vector<1x4xf32>
    %10 = arith.mulf %6, %6 : vector<1x4xf32>
    %11 = arith.subf %9, %10 : vector<1x4xf32>
    %cst_8 = arith.constant 0.000000e+00 : f32
    %12 = vector.broadcast %cst_8 : f32 to vector<1x4xf32>
    %13 = arith.maximumf %11, %12 : vector<1x4xf32>
    %cst_9 = arith.constant 9.99999974E-6 : f32
    %14 = vector.broadcast %cst_9 : f32 to vector<1x4xf32>
    %15 = arith.addf %13, %14 : vector<1x4xf32>
    %16 = math.rsqrt %15 : vector<1x4xf32>
    %17 = arith.mulf %1, %16 : vector<1x4xf32>
    %18 = arith.mulf %6, %17 : vector<1x4xf32>
    %19 = arith.subf %2, %18 : vector<1x4xf32>
    %c0_10 = arith.constant 0 : index
    %c0_11 = arith.constant 0 : index
    %c0_12 = arith.constant 0 : index
    %c0_13 = arith.constant 0 : index
    %20 = vector.load %arg5[%c0_10, %c0_11, %c0_12, %c0_13] : memref<1x16x16x4xf32, #tpu.memory_space<vmem>>, vector<1x16x16x4xf32>
    %21 = vector.shape_cast %20 : vector<1x16x16x4xf32> to vector<16x16x4xf32>
    %22 = vector.shape_cast %21 : vector<16x16x4xf32> to vector<256x4xf32>
    %c0_14 = arith.constant 0 : index
    %c0_15 = arith.constant 0 : index
    %c0_16 = arith.constant 0 : index
    %23 = vector.load %arg4[%c0_14, %c0_15, %c0_16] : memref<1x256x4xf32, #tpu.memory_space<vmem>>, vector<1x256x4xf32>
    %24 = vector.shape_cast %23 : vector<1x256x4xf32> to vector<256x4xf32>
    %25 = vector.broadcast %17 : vector<1x4xf32> to vector<256x4xf32>
    %26 = arith.mulf %24, %25 : vector<256x4xf32>
    %27 = vector.broadcast %19 : vector<1x4xf32> to vector<256x4xf32>
    %28 = arith.addf %26, %27 : vector<256x4xf32>
    %29 = arith.addf %28, %22 : vector<256x4xf32>
    %30 = tpu.transpose %29, [1, 0] : vector<256x4xf32> -> vector<4x256xf32>
    %c0_17 = arith.constant 0 : index
    %c0_18 = arith.constant 0 : index
    %c0_19 = arith.constant 0 : index
    %31 = vector.load %arg6[%c0_17, %c0_18, %c0_19] : memref<1x4x256xf32, #tpu.memory_space<vmem>>, vector<1x4x256xf32>
    %32 = vector.shape_cast %31 : vector<1x4x256xf32> to vector<4x256xf32>
    %33 = vector.shape_cast %30 : vector<4x256xf32> to vector<1x4x256xf32>
    tpu.vector_store %arg6[%c0_17, %c0_18, %c0_19], %33 {strides = array<i32>} : memref<1x4x256xf32, #tpu.memory_space<vmem>>, vector<1x4x256xf32>,
    return
  }
  func.func @transform_0(%arg0: i32) -> (i32, i32, i32) {
    %c0_i32 = arith.constant 0 : i32
    %c0_i32_0 = arith.constant 0 : i32
    %c0_i32_1 = arith.constant 0 : i32
    %c0_i32_2 = arith.constant 0 : i32
    return %c0_i32, %c0_i32_0, %c0_i32_1 : i32, i32, i32
  }
  func.func @transform_1(%arg0: i32) -> (i32, i32) {
    %c0_i32 = arith.constant 0 : i32
    %c0_i32_0 = arith.constant 0 : i32
    %c0_i32_1 = arith.constant 0 : i32
    return %c0_i32, %c0_i32_0 : i32, i32
  }
  func.func @transform_2(%arg0: i32) -> (i32, i32) {
    %c0_i32 = arith.constant 0 : i32
    %c0_i32_0 = arith.constant 0 : i32
    %c0_i32_1 = arith.constant 0 : i32
    return %c0_i32, %c0_i32_0 : i32, i32
  }
  func.func @transform_3(%arg0: i32) -> (i32, i32, i32) {
    %c0_i32 = arith.constant 0 : i32
    %c0_i32_0 = arith.constant 0 : i32
    %c0_i32_1 = arith.constant 0 : i32
    return %arg0, %c0_i32, %c0_i32_0 : i32, i32, i32
  }
  func.func @transform_4(%arg0: i32) -> (i32, i32, i32, i32) {
    %c0_i32 = arith.constant 0 : i32
    %c0_i32_0 = arith.constant 0 : i32
    %c0_i32_1 = arith.constant 0 : i32
    %c0_i32_2 = arith.constant 0 : i32
    return %arg0, %c0_i32, %c0_i32_0, %c0_i32_1 : i32, i32, i32, i32
  }
  func.func @transform_5(%arg0: i32) -> (i32, i32, i32) {
    %c0_i32 = arith.constant 0 : i32
    %c0_i32_0 = arith.constant 0 : i32
    %c0_i32_1 = arith.constant 0 : i32
    return %arg0, %c0_i32, %c0_i32_0 : i32, i32, i32
  }
}

module attributes {stable_mosaic.version = 11 : i64} {
  func.func @_bn1_relu_conv2_kernel(%arg0: i32, %arg1: memref<2x2x4xf32, #tpu.memory_space<vmem>>, %arg2: memref<1x4xf32, #tpu.memory_space<vmem>>, %arg3: memref<1x4xf32, #tpu.memory_space<vmem>>, %arg4: memref<1x16x16x4xf32, #tpu.memory_space<vmem>>, %arg5: memref<36x4xbf16, #tpu.memory_space<vmem>>, %arg6: memref<1x256x4xf32, #tpu.memory_space<vmem>>, %arg7: memref<1x2x4xf32, #tpu.memory_space<vmem>>, %arg8: memref<18x18x4xbf16, #tpu.memory_space<vmem>>) attributes {dimension_semantics = [#tpu.dimension_semantics<parallel>], iteration_bounds = array<i64: 2>, scalar_prefetch = 0 : i64, scratch_operands = 1 : i64, tpu.core_type = #tpu.core_type<tc>, window_params = [{pipeline_mode = #tpu.pipeline_mode<synchronous>, transform_indices = @transform_0, window_bounds = array<i64: 2, 2, 4>}, {pipeline_mode = #tpu.pipeline_mode<synchronous>, transform_indices = @transform_1, window_bounds = array<i64: 1, 4>}, {pipeline_mode = #tpu.pipeline_mode<synchronous>, transform_indices = @transform_2, window_bounds = array<i64: 1, 4>}, {transform_indices = @transform_3, window_bounds = array<i64: 1, 16, 16, 4>}, {pipeline_mode = #tpu.pipeline_mode<synchronous>, transform_indices = @transform_4, window_bounds = array<i64: 36, 4>}, {transform_indices = @transform_5, window_bounds = array<i64: 1, 256, 4>}, {transform_indices = @transform_6, window_bounds = array<i64: 1, 2, 4>}]} {
    %c0 = arith.constant 0 : index
    %c0_0 = arith.constant 0 : index
    %c0_1 = arith.constant 0 : index
    %0 = vector.load %arg1[%c0, %c0_0, %c0_1] : memref<2x2x4xf32, #tpu.memory_space<vmem>>, vector<2x2x4xf32>
    %c0_2 = arith.constant 0 : index
    %c0_3 = arith.constant 0 : index
    %1 = vector.load %arg2[%c0_2, %c0_3] : memref<1x4xf32, #tpu.memory_space<vmem>>, vector<1x4xf32>
    %c0_4 = arith.constant 0 : index
    %c0_5 = arith.constant 0 : index
    %2 = vector.load %arg3[%c0_4, %c0_5] : memref<1x4xf32, #tpu.memory_space<vmem>>, vector<1x4xf32>
    %cst = arith.constant dense<0.000000e+00> : vector<2x4xf32>
    %3 = vector.multi_reduction <add>, %0, %cst [0] : vector<2x2x4xf32> to vector<2x4xf32>
    %4 = vector.extract_strided_slice %3 {offsets = [0, 0], sizes = [1, 4], strides = [1, 1]} : vector<2x4xf32> to vector<1x4xf32>
    %cst_6 = arith.constant 0.001953125 : f32
    %5 = vector.broadcast %cst_6 : f32 to vector<1x4xf32>
    %6 = arith.mulf %4, %5 : vector<1x4xf32>
    %7 = vector.extract_strided_slice %3 {offsets = [1, 0], sizes = [1, 4], strides = [1, 1]} : vector<2x4xf32> to vector<1x4xf32>
    %cst_7 = arith.constant 0.001953125 : f32
    %8 = vector.broadcast %cst_7 : f32 to vector<1x4xf32>
    %9 = arith.mulf %7, %8 : vector<1x4xf32>
    %10 = arith.mulf %6, %6 : vector<1x4xf32>
    %11 = arith.subf %9, %10 : vector<1x4xf32>
    %cst_8 = arith.constant 0.000000e+00 : f32
    %12 = vector.broadcast %cst_8 : f32 to vector<1x4xf32>
    %13 = arith.maximumf %11, %12 : vector<1x4xf32>
    %cst_9 = arith.constant 9.99999974E-6 : f32
    %14 = vector.broadcast %cst_9 : f32 to vector<1x4xf32>
    %15 = arith.addf %13, %14 : vector<1x4xf32>
    %16 = math.rsqrt %15 : vector<1x4xf32>
    %17 = arith.mulf %1, %16 : vector<1x4xf32>
    %18 = arith.mulf %6, %17 : vector<1x4xf32>
    %19 = arith.subf %2, %18 : vector<1x4xf32>
    %c0_10 = arith.constant 0 : index
    %c0_11 = arith.constant 0 : index
    %c0_12 = arith.constant 0 : index
    %c0_13 = arith.constant 0 : index
    %20 = vector.load %arg4[%c0_10, %c0_11, %c0_12, %c0_13] : memref<1x16x16x4xf32, #tpu.memory_space<vmem>>, vector<1x16x16x4xf32>
    %21 = vector.shape_cast %20 : vector<1x16x16x4xf32> to vector<16x16x4xf32>
    %22 = vector.shape_cast %17 : vector<1x4xf32> to vector<1x1x4xf32>
    %23 = vector.broadcast %22 : vector<1x1x4xf32> to vector<16x16x4xf32>
    %24 = arith.mulf %21, %23 : vector<16x16x4xf32>
    %25 = vector.shape_cast %19 : vector<1x4xf32> to vector<1x1x4xf32>
    %26 = vector.broadcast %25 : vector<1x1x4xf32> to vector<16x16x4xf32>
    %27 = arith.addf %24, %26 : vector<16x16x4xf32>
    %cst_14 = arith.constant 0.000000e+00 : f32
    %28 = vector.broadcast %cst_14 : f32 to vector<16x16x4xf32>
    %29 = arith.maximumf %27, %28 : vector<16x16x4xf32>
    %30 = arith.truncf %29 : vector<16x16x4xf32> to vector<16x16x4xbf16>
    %cst_15 = arith.constant 0.000000e+00 : bf16
    %31 = vector.broadcast %cst_15 : bf16 to vector<18x18x4xbf16>
    %c0_16 = arith.constant 0 : index
    %c0_17 = arith.constant 0 : index
    %c0_18 = arith.constant 0 : index
    %32 = vector.load %arg8[%c0_16, %c0_17, %c0_18] : memref<18x18x4xbf16, #tpu.memory_space<vmem>>, vector<18x18x4xbf16>
    tpu.vector_store %arg8[%c0_16, %c0_17, %c0_18], %31 {strides = array<i32>} : memref<18x18x4xbf16, #tpu.memory_space<vmem>>, vector<18x18x4xbf16>,
    %c1 = arith.constant 1 : index
    %c1_19 = arith.constant 1 : index
    %c0_20 = arith.constant 0 : index
    %33 = vector.load %arg8[%c1, %c1_19, %c0_20] : memref<18x18x4xbf16, #tpu.memory_space<vmem>>, vector<16x16x4xbf16>
    tpu.vector_store %arg8[%c1, %c1_19, %c0_20], %30 {strides = array<i32>} : memref<18x18x4xbf16, #tpu.memory_space<vmem>>, vector<16x16x4xbf16>,
    %c0_21 = arith.constant 0 : index
    %c0_22 = arith.constant 0 : index
    %c0_23 = arith.constant 0 : index
    %34 = vector.load %arg8[%c0_21, %c0_22, %c0_23] : memref<18x18x4xbf16, #tpu.memory_space<vmem>>, vector<18x18x4xbf16>
    %35 = vector.extract_strided_slice %34 {offsets = [0, 0, 0], sizes = [16, 16, 4], strides = [1, 1, 1]} : vector<18x18x4xbf16> to vector<16x16x4xbf16>
    %36 = vector.extract_strided_slice %34 {offsets = [0, 1, 0], sizes = [16, 16, 4], strides = [1, 1, 1]} : vector<18x18x4xbf16> to vector<16x16x4xbf16>
    %37 = vector.extract_strided_slice %34 {offsets = [0, 2, 0], sizes = [16, 16, 4], strides = [1, 1, 1]} : vector<18x18x4xbf16> to vector<16x16x4xbf16>
    %38 = vector.extract_strided_slice %34 {offsets = [1, 0, 0], sizes = [16, 16, 4], strides = [1, 1, 1]} : vector<18x18x4xbf16> to vector<16x16x4xbf16>
    %39 = vector.extract_strided_slice %34 {offsets = [1, 1, 0], sizes = [16, 16, 4], strides = [1, 1, 1]} : vector<18x18x4xbf16> to vector<16x16x4xbf16>
    %40 = vector.extract_strided_slice %34 {offsets = [1, 2, 0], sizes = [16, 16, 4], strides = [1, 1, 1]} : vector<18x18x4xbf16> to vector<16x16x4xbf16>
    %41 = vector.extract_strided_slice %34 {offsets = [2, 0, 0], sizes = [16, 16, 4], strides = [1, 1, 1]} : vector<18x18x4xbf16> to vector<16x16x4xbf16>
    %42 = vector.extract_strided_slice %34 {offsets = [2, 1, 0], sizes = [16, 16, 4], strides = [1, 1, 1]} : vector<18x18x4xbf16> to vector<16x16x4xbf16>
    %43 = vector.extract_strided_slice %34 {offsets = [2, 2, 0], sizes = [16, 16, 4], strides = [1, 1, 1]} : vector<18x18x4xbf16> to vector<16x16x4xbf16>
    %44 = tpu.concatenate %35, %36, %37, %38, %39, %40, %41, %42, %43 in 2 : vector<16x16x4xbf16>, vector<16x16x4xbf16>, vector<16x16x4xbf16>, vector<16x16x4xbf16>, vector<16x16x4xbf16>, vector<16x16x4xbf16>, vector<16x16x4xbf16>, vector<16x16x4xbf16>, vector<16x16x4xbf16> -> vector<16x16x36xbf16>
    %45 = vector.shape_cast %44 : vector<16x16x36xbf16> to vector<256x36xbf16>
    %c0_24 = arith.constant 0 : index
    %c0_25 = arith.constant 0 : index
    %46 = vector.load %arg5[%c0_24, %c0_25] : memref<36x4xbf16, #tpu.memory_space<vmem>>, vector<36x4xbf16>
    %cst_26 = arith.constant dense<0.000000e+00> : vector<256x4xf32>
    %47 = tpu.matmul %45, %46, %cst_26 {dimension_numbers = #tpu.dot_dimension_numbers<[1], [0], [0], [1], [0, 0, 1, 1], [], []>} : vector<256x36xbf16>, vector<36x4xbf16>, vector<256x4xf32> -> vector<256x4xf32>
    %c0_27 = arith.constant 0 : index
    %c0_28 = arith.constant 0 : index
    %c0_29 = arith.constant 0 : index
    %48 = vector.load %arg6[%c0_27, %c0_28, %c0_29] : memref<1x256x4xf32, #tpu.memory_space<vmem>>, vector<1x256x4xf32>
    %49 = vector.shape_cast %48 : vector<1x256x4xf32> to vector<256x4xf32>
    %50 = vector.shape_cast %47 : vector<256x4xf32> to vector<1x256x4xf32>
    tpu.vector_store %arg6[%c0_27, %c0_28, %c0_29], %50 {strides = array<i32>} : memref<1x256x4xf32, #tpu.memory_space<vmem>>, vector<1x256x4xf32>,
    %cst_30 = arith.constant dense<0.000000e+00> : vector<4xf32>
    %51 = vector.multi_reduction <add>, %47, %cst_30 [0] : vector<256x4xf32> to vector<4xf32>
    %52 = vector.shape_cast %51 : vector<4xf32> to vector<1x4xf32>
    %53 = arith.mulf %47, %47 : vector<256x4xf32>
    %cst_31 = arith.constant dense<0.000000e+00> : vector<4xf32>
    %54 = vector.multi_reduction <add>, %53, %cst_31 [0] : vector<256x4xf32> to vector<4xf32>
    %55 = vector.shape_cast %54 : vector<4xf32> to vector<1x4xf32>
    %56 = tpu.concatenate %52, %55 in 0 : vector<1x4xf32>, vector<1x4xf32> -> vector<2x4xf32>
    %c0_32 = arith.constant 0 : index
    %c0_33 = arith.constant 0 : index
    %c0_34 = arith.constant 0 : index
    %57 = vector.load %arg7[%c0_32, %c0_33, %c0_34] : memref<1x2x4xf32, #tpu.memory_space<vmem>>, vector<1x2x4xf32>
    %58 = vector.shape_cast %57 : vector<1x2x4xf32> to vector<2x4xf32>
    %59 = vector.shape_cast %56 : vector<2x4xf32> to vector<1x2x4xf32>
    tpu.vector_store %arg7[%c0_32, %c0_33, %c0_34], %59 {strides = array<i32>} : memref<1x2x4xf32, #tpu.memory_space<vmem>>, vector<1x2x4xf32>,
    return
  }
  func.func @transform_0(%arg0: i32) -> (i32, i32, i32) {
    %c0_i32 = arith.constant 0 : i32
    %c0_i32_0 = arith.constant 0 : i32
    %c0_i32_1 = arith.constant 0 : i32
    %c0_i32_2 = arith.constant 0 : i32
    return %c0_i32, %c0_i32_0, %c0_i32_1 : i32, i32, i32
  }
  func.func @transform_1(%arg0: i32) -> (i32, i32) {
    %c0_i32 = arith.constant 0 : i32
    %c0_i32_0 = arith.constant 0 : i32
    %c0_i32_1 = arith.constant 0 : i32
    return %c0_i32, %c0_i32_0 : i32, i32
  }
  func.func @transform_2(%arg0: i32) -> (i32, i32) {
    %c0_i32 = arith.constant 0 : i32
    %c0_i32_0 = arith.constant 0 : i32
    %c0_i32_1 = arith.constant 0 : i32
    return %c0_i32, %c0_i32_0 : i32, i32
  }
  func.func @transform_3(%arg0: i32) -> (i32, i32, i32, i32) {
    %c0_i32 = arith.constant 0 : i32
    %c0_i32_0 = arith.constant 0 : i32
    %c0_i32_1 = arith.constant 0 : i32
    %c0_i32_2 = arith.constant 0 : i32
    return %arg0, %c0_i32, %c0_i32_0, %c0_i32_1 : i32, i32, i32, i32
  }
  func.func @transform_4(%arg0: i32) -> (i32, i32) {
    %c0_i32 = arith.constant 0 : i32
    %c0_i32_0 = arith.constant 0 : i32
    %c0_i32_1 = arith.constant 0 : i32
    return %c0_i32, %c0_i32_0 : i32, i32
  }
  func.func @transform_5(%arg0: i32) -> (i32, i32, i32) {
    %c0_i32 = arith.constant 0 : i32
    %c0_i32_0 = arith.constant 0 : i32
    %c0_i32_1 = arith.constant 0 : i32
    return %arg0, %c0_i32, %c0_i32_0 : i32, i32, i32
  }
  func.func @transform_6(%arg0: i32) -> (i32, i32, i32) {
    %c0_i32 = arith.constant 0 : i32
    %c0_i32_0 = arith.constant 0 : i32
    %c0_i32_1 = arith.constant 0 : i32
    return %arg0, %c0_i32, %c0_i32_0 : i32, i32, i32
  }
}

</mosaic_0001>

<llo_original>
// kernel: resnet_basic_block.5
$region0: #{resnet_basic_block.5}
  #allocation0 [shape = 'u32[]', space=smem, size = 0x4, offset = 0x4, fixed_abs, tag = 'smem constant byte address 0x4 - core index']
  #allocation1 [shape = 'u32[72,128]{1,0:T(1,128)}', space=vmem, size = 0x9000, scoped, tag = 'internal scratch']
  %s0 = inlined_call_operand.vmem [shape: f32[2,2,4], index: 0, kind: input, shape index: {}]
  %s1 = inlined_call_operand.vmem [shape: f32[1,4], index: 1, kind: input, shape index: {}]
  %s2 = inlined_call_operand.vmem [shape: f32[1,4], index: 2, kind: input, shape index: {}]
  %s3 = inlined_call_operand.vmem [shape: f32[2,256,4], index: 3, kind: input, shape index: {}]
  %s4 = inlined_call_operand.vmem [shape: f32[2,16,16,4], index: 4, kind: input, shape index: {}]
  %s5 = inlined_call_operand.vmem [shape: f32[2,4,256], index: 5, kind: output, shape index: {}]
  %s6 = sld [smem:[#allocation0]]
  $region53: #{resnet_basic_block.5} parent=0
    _
  %s8 = ssub.s32 1, %s6
  %s9 = scalar_select 0, %s8, %s6
  loop: start=0, step=1, limit=4
  $region2: #{resnet_basic_block.5} parent=0 // loop_pre_header
    _
  $region3: #{resnet_basic_block.5} parent=0 // loop_header
    %s11 = sphi 0, %s15
    %p12 = scmp.ge.s32.totalorder %s11, 4
    %s19 = sphi 0, %s19
    %s21 = sphi 0, %s19
    %s22 = sphi 0, %s21
    %s36 = sphi 0, %s22
    %s40 = sphi 0, %s40
    %s42 = sphi 0, %s40
    %s43 = sphi 0, %s42
    %s57 = sphi 0, %s43
    %s61 = sphi 0, %s61
    %s63 = sphi 0, %s61
    %s64 = sphi 0, %s63
    %s78 = sphi 0, %s64
    %s84 = sphi 0, %s86
    %s87 = sphi 0, %s84
    %s88 = sphi 0, %s87
    %s104 = sphi 0, %s88
    %s110 = sphi 0, %s112
    %s113 = sphi 0, %s110
    %s114 = sphi 0, %s113
    %s130 = sphi 0, %s114
    %s136 = sphi 0, %s138
    %s139 = sphi 0, %s136
    %s140 = sphi 0, %s139
    %s156 = sphi 0, %s140
  $region4: #{resnet_basic_block.5} parent=0 // loop_header_branch
    %14 = sbr.rel (%p12) target = $region8
  $region5: #{resnet_basic_block.5} parent=0 // loop_body
    %s16 = ssub.s32 %s11, 1
    %s17 = ssub.s32 %s11, 2
    %s18 = sadd.s32 %s11, 1
    %s20 = sadd.s32 %s19, 1
    %p23 = scmp.eq.s32.totalorder %s11, 1
    %p24 = scmp.ne.s32.totalorder %s19, %s21
    %p25 = scmp.eq.s32.totalorder %s11, 0
    %p26 = por %p24, %p25
    %p27 = scmp.ne.s32.totalorder %s19, %s21
    %p28 = scmp.eq.s32.totalorder %s16, 1
    %p29 = por %p27, %p28
    %p30 = scmp.ne.s32.totalorder %s21, %s22
    %p31 = scmp.eq.s32.totalorder %s16, 0
    %p32 = por %p30, %p31
    %p33 = scmp.ne.s32.totalorder %s21, %s22
    %p34 = scmp.eq.s32.totalorder %s17, 1
    %p35 = por %p33, %p34
    %p37 = scmp.ne.s32.totalorder %s22, %s36
    %p38 = scmp.eq.s32.totalorder %s17, 0
    %p39 = por %p37, %p38
    %s41 = sadd.s32 %s40, 1
    %p44 = scmp.eq.s32.totalorder %s11, 1
    %p45 = scmp.ne.s32.totalorder %s40, %s42
    %p46 = scmp.eq.s32.totalorder %s11, 0
    %p47 = por %p45, %p46
    %p48 = scmp.ne.s32.totalorder %s40, %s42
    %p49 = scmp.eq.s32.totalorder %s16, 1
    %p50 = por %p48, %p49
    %p51 = scmp.ne.s32.totalorder %s42, %s43
    %p52 = scmp.eq.s32.totalorder %s16, 0
    %p53 = por %p51, %p52
    %p54 = scmp.ne.s32.totalorder %s42, %s43
    %p55 = scmp.eq.s32.totalorder %s17, 1
    %p56 = por %p54, %p55
    %p58 = scmp.ne.s32.totalorder %s43, %s57
    %p59 = scmp.eq.s32.totalorder %s17, 0
    %p60 = por %p58, %p59
    %s62 = sadd.s32 %s61, 1
    %p65 = scmp.eq.s32.totalorder %s11, 1
    %p66 = scmp.ne.s32.totalorder %s61, %s63
    %p67 = scmp.eq.s32.totalorder %s11, 0
    %p68 = por %p66, %p67
    %p69 = scmp.ne.s32.totalorder %s61, %s63
    %p70 = scmp.eq.s32.totalorder %s16, 1
    %p71 = por %p69, %p70
    %p72 = scmp.ne.s32.totalorder %s63, %s64
    %p73 = scmp.eq.s32.totalorder %s16, 0
    %p74 = por %p72, %p73
    %p75 = scmp.ne.s32.totalorder %s63, %s64
    %p76 = scmp.eq.s32.totalorder %s17, 1
    %p77 = por %p75, %p76
    %p79 = scmp.ne.s32.totalorder %s64, %s78
    %p80 = scmp.eq.s32.totalorder %s17, 0
    %p81 = por %p79, %p80
    %s82 = ssub.s32 %s11, %s18
    %p83 = scmp.eq.s32.totalorder %s82, 0
    %s85 = sadd.s32 %s84, 1
    %s86 = scalar_select %p83, %s84, %s85
    %p89 = pneg %p83
    %p90 = scmp.eq.s32.totalorder %s11, 1
    %p91 = por %p89, %p90
    %p92 = scmp.ne.s32.totalorder %s84, %s87
    %p93 = scmp.eq.s32.totalorder %s11, 0
    %p94 = por %p92, %p93
    %p95 = scmp.ne.s32.totalorder %s84, %s87
    %p96 = scmp.eq.s32.totalorder %s16, 1
    %p97 = por %p95, %p96
    %p98 = scmp.ne.s32.totalorder %s87, %s88
    %p99 = scmp.eq.s32.totalorder %s16, 0
    %p100 = por %p98, %p99
    %p101 = scmp.ne.s32.totalorder %s87, %s88
    %p102 = scmp.eq.s32.totalorder %s17, 1
    %p103 = por %p101, %p102
    %p105 = scmp.ne.s32.totalorder %s88, %s104
    %p106 = scmp.eq.s32.totalorder %s17, 0
    %p107 = por %p105, %p106
    %s108 = ssub.s32 %s11, %s18
    %p109 = scmp.eq.s32.totalorder %s108, 0
    %s111 = sadd.s32 %s110, 1
    %s112 = scalar_select %p109, %s110, %s111
    %p115 = pneg %p109
    %p116 = scmp.eq.s32.totalorder %s11, 1
    %p117 = por %p115, %p116
    %p118 = scmp.ne.s32.totalorder %s110, %s113
    %p119 = scmp.eq.s32.totalorder %s11, 0
    %p120 = por %p118, %p119
    %p121 = scmp.ne.s32.totalorder %s110, %s113
    %p122 = scmp.eq.s32.totalorder %s16, 1
    %p123 = por %p121, %p122
    %p124 = scmp.ne.s32.totalorder %s113, %s114
    %p125 = scmp.eq.s32.totalorder %s16, 0
    %p126 = por %p124, %p125
    %p127 = scmp.ne.s32.totalorder %s113, %s114
    %p128 = scmp.eq.s32.totalorder %s17, 1
    %p129 = por %p127, %p128
    %p131 = scmp.ne.s32.totalorder %s114, %s130
    %p132 = scmp.eq.s32.totalorder %s17, 0
    %p133 = por %p131, %p132
    %s134 = ssub.s32 %s11, %s18
    %p135 = scmp.eq.s32.totalorder %s134, 0
    %s137 = sadd.s32 %s136, 1
    %s138 = scalar_select %p135, %s136, %s137
    %p141 = pneg %p135
    %p142 = scmp.eq.s32.totalorder %s11, 1
    %p143 = por %p141, %p142
    %p144 = scmp.ne.s32.totalorder %s136, %s139
    %p145 = scmp.eq.s32.totalorder %s11, 0
    %p146 = por %p144, %p145
    %p147 = scmp.ne.s32.totalorder %s136, %s139
    %p148 = scmp.eq.s32.totalorder %s16, 1
    %p149 = por %p147, %p148
    %p150 = scmp.ne.s32.totalorder %s139, %s140
    %p151 = scmp.eq.s32.totalorder %s16, 0
    %p152 = por %p150, %p151
    %p153 = scmp.ne.s32.totalorder %s139, %s140
    %p154 = scmp.eq.s32.totalorder %s17, 1
    %p155 = por %p153, %p154
    %p157 = scmp.ne.s32.totalorder %s140, %s156
    %p158 = scmp.eq.s32.totalorder %s17, 0
    %p159 = por %p157, %p158
    %p160 = scmp.le.s32.totalorder 1, %s11
    %p161 = scmp.lt.s32.totalorder %s11, 3
    %p162 = pnand %p160, %p161
    %p163 = pneg %p162
    // Predicated region
    $region9: #{resnet_basic_block.5} parent=5 // pred_check
      _
    $region10: #{resnet_basic_block.5} parent=5 // pred_check_branch
      %165 = sbr.rel (%p162) target = $region12
    $region11: #{resnet_basic_block.5} parent=5 // pred_region
      %s166 = ssub.s32 %s11, 1
      // Predicated region
      $region13: #{resnet_basic_block.5} parent=11 // pred_check
        %p167 = pneg %p32
      $region14: #{resnet_basic_block.5} parent=11 // pred_check_branch
        %169 = sbr.rel (%p167) target = $region16
      $region15: #{resnet_basic_block.5} parent=11 // pred_region
        _
      $region16: #{resnet_basic_block.5} parent=11 // pred_fallthru
        _
      // Predicated region
      $region17: #{resnet_basic_block.5} parent=11 // pred_check
        %p170 = pneg %p53
      $region18: #{resnet_basic_block.5} parent=11 // pred_check_branch
        %172 = sbr.rel (%p170) target = $region20
      $region19: #{resnet_basic_block.5} parent=11 // pred_region
        _
      $region20: #{resnet_basic_block.5} parent=11 // pred_fallthru
        _
      // Predicated region
      $region21: #{resnet_basic_block.5} parent=11 // pred_check
        %p173 = pneg %p74
      $region22: #{resnet_basic_block.5} parent=11 // pred_check_branch
        %175 = sbr.rel (%p173) target = $region24
      $region23: #{resnet_basic_block.5} parent=11 // pred_region
        _
      $region24: #{resnet_basic_block.5} parent=11 // pred_fallthru
        _
    $region12: #{resnet_basic_block.5} parent=5 // pred_fallthru
      _
    %p176 = scmp.lt.s32.totalorder %s11, 2
    // Predicated region
    $region25: #{resnet_basic_block.5} parent=5 // pred_check
      %p177 = pneg %p176
    $region26: #{resnet_basic_block.5} parent=5 // pred_check_branch
      %179 = sbr.rel (%p177) target = $region28
    $region27: #{resnet_basic_block.5} parent=5 // pred_region
      // Predicated region
      $region29: #{resnet_basic_block.5} parent=27 // pred_check
        %p180 = pneg %p94
      $region30: #{resnet_basic_block.5} parent=27 // pred_check_branch
        %182 = sbr.rel (%p180) target = $region32
      $region31: #{resnet_basic_block.5} parent=27 // pred_region
        %p183 = scmp.lt.s32.totalorder %s11, 1
        %s184 = scalar_select %p183, %s11, 1
        %s185 = smul.addr %s184, 32
        %s186 = smul.addr %s185, 8
        %s187 = scalar_lea.vmem %s3, %s186
      $region32: #{resnet_basic_block.5} parent=27 // pred_fallthru
        _
      // Predicated region
      $region33: #{resnet_basic_block.5} parent=27 // pred_check
        %p188 = pneg %p120
      $region34: #{resnet_basic_block.5} parent=27 // pred_check_branch
        %190 = sbr.rel (%p188) target = $region36
      $region35: #{resnet_basic_block.5} parent=27 // pred_region
        %p191 = scmp.lt.s32.totalorder %s11, 1
        %s192 = scalar_select %p191, %s11, 1
        %s193 = smul.addr %s192, 32
        %s194 = smul.addr %s193, 8
        %s195 = scalar_lea.vmem %s4, %s194
      $region36: #{resnet_basic_block.5} parent=27 // pred_fallthru
        _
    $region28: #{resnet_basic_block.5} parent=5 // pred_fallthru
      _
    %p196 = scmp.le.s32.totalorder 1, %s11
    %p197 = scmp.lt.s32.totalorder %s11, 3
    %p198 = pnand %p196, %p197
    %p199 = pneg %p198
    // Predicated region
    $region37: #{resnet_basic_block.5} parent=5 // pred_check
      _
    $region38: #{resnet_basic_block.5} parent=5 // pred_check_branch
      %201 = sbr.rel (%p198) target = $region40
    $region39: #{resnet_basic_block.5} parent=5 // pred_region
      %s202 = ssub.s32 %s11, 1
      %p203 = pneg %p32
      %p204 = pneg %p29
      %p205 = pneg %p53
      %p206 = pneg %p50
      %p207 = pneg %p74
      %p208 = pneg %p71
      %p209 = scmp.lt.s32.totalorder %s16, 1
      %s210 = scalar_select %p209, %s16, 1
      %s211 = smul.addr %s210, 32
      %s212 = smul.addr %s211, 8
      %s213 = scalar_lea.vmem %s3, %s212
      %p214 = pneg %p100
      %p215 = pneg %p97
      %p216 = scmp.lt.s32.totalorder %s16, 1
      %s217 = scalar_select %p216, %s16, 1
      %s218 = smul.addr %s217, 32
      %s219 = smul.addr %s218, 8
      %s220 = scalar_lea.vmem %s4, %s219
      %p221 = pneg %p126
      %p222 = pneg %p123
      %p223 = pneg %p152
      %p224 = pneg %p149
      %p225 = scmp.lt.s32.totalorder %s16, 1
      %s226 = scalar_select %p225, %s16, 1
      %s227 = smul.addr %s226, 2
      %s228 = smul.addr %s227, 4
      %s229 = scalar_lea.vmem %s5, %s228
      %p230 = scmp.lt.s32.totalorder %s16, 1
      %s231 = scalar_select %p230, %s16, 1
      %s232 = smul.addr %s231, 32
      %s233 = smul.addr %s232, 8
      %s234 = scalar_lea.vmem %s3, %s233
      %p235 = scmp.lt.s32.totalorder %s16, 1
      %s236 = scalar_select %p235, %s16, 1
      %s237 = smul.addr %s236, 32
      %s238 = smul.addr %s237, 8
      %s239 = scalar_lea.vmem %s4, %s238
      %p240 = scmp.lt.s32.totalorder %s16, 1
      %s241 = scalar_select %p240, %s16, 1
      %s242 = smul.addr %s241, 2
      %s243 = smul.addr %s242, 4
      %s244 = scalar_lea.vmem %s5, %s243
      %v245 = vld [vmem:[%s0] sm:$0x3]
      %v246 = vld [vmem:[%s0 + $0x2] sm:$0x3]
      %v247 = vld [vmem:[%s1] sm:$0x1]
      %v248 = vld [vmem:[%s2] sm:$0x1]
      %vm249 = vcmask 25600
      %v250 = vsel %vm249, %v245, 0.0
      %v251 = vsel %vm249, %v246, 0.0
      %v252 = vadd.f32 %v250, %v251
      %v253 = vmul.f32 %v252, 0.001953125
      %v254 = vmul.f32 %v253, %v253
      %v256 = vrot.slane %v254, 7
      %v258 = vsub.f32 %v253, %v256
      %v259 = vmax.f32 %v258, 0.0
      %v260 = vadd.f32 %v259, 1e-05
      %v261 = vrsqrt.pop %v260
      %v262 = vmul.f32 %v261, %v260
      %v263 = vmul.f32 %v262, %v261
      %v264 = vmul.f32 0.5, %v263
      %v265 = vsub.f32 1.5, %v264
      %v266 = vmul.f32 %v261, %v265
      %vm267 = vweird.f32 %v260
      %vm268 = vweird.f32 %v261
      %vm269 = vmor %vm267, %vm268
      %v270 = vsel %vm269, %v261, %v266
      %272 = vst [vmem:[#allocation1] sm:$0xff] %v270
      %s273 = scalar_lea.vmem [#allocation1], 1
      %v274 = vld [vmem:[%s273] ss:$9 sm:$0xff]
      %v276 = vmul.f32 %v247, %v274
      %v277 = vmul.f32 %v253, %v276
      %v278 = vsub.f32 %v248, %v277
      %v279 = vld [vmem:[%s239] sm:$0xff]
      %v280 = vld [vmem:[%s239 + $0x8] sm:$0xff]
      %v281 = vld [vmem:[%s239 + $0x10] sm:$0xff]
      %v282 = vld [vmem:[%s239 + $0x18] sm:$0xff]
      %v283 = vld [vmem:[%s239 + $0x20] sm:$0xff]
      %v284 = vld [vmem:[%s239 + $0x28] sm:$0xff]
      %v285 = vld [vmem:[%s239 + $0x30] sm:$0xff]
      %v286 = vld [vmem:[%s239 + $0x38] sm:$0xff]
      %v287 = vld [vmem:[%s239 + $0x40] sm:$0xff]
      %v288 = vld [vmem:[%s239 + $0x48] sm:$0xff]
      %v289 = vld [vmem:[%s239 + $0x50] sm:$0xff]
      %v290 = vld [vmem:[%s239 + $0x58] sm:$0xff]
      %v291 = vld [vmem:[%s239 + $0x60] sm:$0xff]
      %v292 = vld [vmem:[%s239 + $0x68] sm:$0xff]
      %v293 = vld [vmem:[%s239 + $0x70] sm:$0xff]
      %v294 = vld [vmem:[%s239 + $0x78] sm:$0xff]
      %v295 = vld [vmem:[%s239 + $0x80] sm:$0xff]
      %v296 = vld [vmem:[%s239 + $0x88] sm:$0xff]
      %v297 = vld [vmem:[%s239 + $0x90] sm:$0xff]
      %v298 = vld [vmem:[%s239 + $0x98] sm:$0xff]
      %v299 = vld [vmem:[%s239 + $0xa0] sm:$0xff]
      %v300 = vld [vmem:[%s239 + $0xa8] sm:$0xff]
      %v301 = vld [vmem:[%s239 + $0xb0] sm:$0xff]
      %v302 = vld [vmem:[%s239 + $0xb8] sm:$0xff]
      %v303 = vld [vmem:[%s239 + $0xc0] sm:$0xff]
      %v304 = vld [vmem:[%s239 + $0xc8] sm:$0xff]
      %v305 = vld [vmem:[%s239 + $0xd0] sm:$0xff]
      %v306 = vld [vmem:[%s239 + $0xd8] sm:$0xff]
      %v307 = vld [vmem:[%s239 + $0xe0] sm:$0xff]
      %v308 = vld [vmem:[%s239 + $0xe8] sm:$0xff]
      %v309 = vld [vmem:[%s239 + $0xf0] sm:$0xff]
      %v310 = vld [vmem:[%s239 + $0xf8] sm:$0xff]
      %v311 = vld [vmem:[%s234] sm:$0xff]
      %v312 = vld [vmem:[%s234 + $0x8] sm:$0xff]
      %v313 = vld [vmem:[%s234 + $0x10] sm:$0xff]
      %v314 = vld [vmem:[%s234 + $0x18] sm:$0xff]
      %v315 = vld [vmem:[%s234 + $0x20] sm:$0xff]
      %v316 = vld [vmem:[%s234 + $0x28] sm:$0xff]
      %v317 = vld [vmem:[%s234 + $0x30] sm:$0xff]
      %v318 = vld [vmem:[%s234 + $0x38] sm:$0xff]
      %v319 = vld [vmem:[%s234 + $0x40] sm:$0xff]
      %v320 = vld [vmem:[%s234 + $0x48] sm:$0xff]
      %v321 = vld [vmem:[%s234 + $0x50] sm:$0xff]
      %v322 = vld [vmem:[%s234 + $0x58] sm:$0xff]
      %v323 = vld [vmem:[%s234 + $0x60] sm:$0xff]
      %v324 = vld [vmem:[%s234 + $0x68] sm:$0xff]
      %v325 = vld [vmem:[%s234 + $0x70] sm:$0xff]
      %v326 = vld [vmem:[%s234 + $0x78] sm:$0xff]
      %v327 = vld [vmem:[%s234 + $0x80] sm:$0xff]
      %v328 = vld [vmem:[%s234 + $0x88] sm:$0xff]
      %v329 = vld [vmem:[%s234 + $0x90] sm:$0xff]
      %v330 = vld [vmem:[%s234 + $0x98] sm:$0xff]
      %v331 = vld [vmem:[%s234 + $0xa0] sm:$0xff]
      %v332 = vld [vmem:[%s234 + $0xa8] sm:$0xff]
      %v333 = vld [vmem:[%s234 + $0xb0] sm:$0xff]
      %v334 = vld [vmem:[%s234 + $0xb8] sm:$0xff]
      %v335 = vld [vmem:[%s234 + $0xc0] sm:$0xff]
      %v336 = vld [vmem:[%s234 + $0xc8] sm:$0xff]
      %v337 = vld [vmem:[%s234 + $0xd0] sm:$0xff]
      %v338 = vld [vmem:[%s234 + $0xd8] sm:$0xff]
      %v339 = vld [vmem:[%s234 + $0xe0] sm:$0xff]
      %v340 = vld [vmem:[%s234 + $0xe8] sm:$0xff]
      %v341 = vld [vmem:[%s234 + $0xf0] sm:$0xff]
      %v342 = vld [vmem:[%s234 + $0xf8] sm:$0xff]
      %v344 = vperm.slane %v276, 0
      %v346 = vmul.f32 %v311, %v344
      %v347 = vmul.f32 %v312, %v344
      %v348 = vmul.f32 %v313, %v344
      %v349 = vmul.f32 %v314, %v344
      %v350 = vmul.f32 %v315, %v344
      %v351 = vmul.f32 %v316, %v344
      %v352 = vmul.f32 %v317, %v344
      %v353 = vmul.f32 %v318, %v344
      %v354 = vmul.f32 %v319, %v344
      %v355 = vmul.f32 %v320, %v344
      %v356 = vmul.f32 %v321, %v344
      %v357 = vmul.f32 %v322, %v344
      %v358 = vmul.f32 %v323, %v344
      %v359 = vmul.f32 %v324, %v344
      %v360 = vmul.f32 %v325, %v344
      %v361 = vmul.f32 %v326, %v344
      %v362 = vmul.f32 %v327, %v344
      %v363 = vmul.f32 %v328, %v344
      %v364 = vmul.f32 %v329, %v344
      %v365 = vmul.f32 %v330, %v344
      %v366 = vmul.f32 %v331, %v344
      %v367 = vmul.f32 %v332, %v344
      %v368 = vmul.f32 %v333, %v344
      %v369 = vmul.f32 %v334, %v344
      %v370 = vmul.f32 %v335, %v344
      %v371 = vmul.f32 %v336, %v344
      %v372 = vmul.f32 %v337, %v344
      %v373 = vmul.f32 %v338, %v344
      %v374 = vmul.f32 %v339, %v344
      %v375 = vmul.f32 %v340, %v344
      %v376 = vmul.f32 %v341, %v344
      %v377 = vmul.f32 %v342, %v344
      %v379 = vperm.slane %v278, 0
      %v381 = vadd.f32 %v346, %v379
      %v382 = vadd.f32 %v347, %v379
      %v383 = vadd.f32 %v348, %v379
      %v384 = vadd.f32 %v349, %v379
      %v385 = vadd.f32 %v350, %v379
      %v386 = vadd.f32 %v351, %v379
      %v387 = vadd.f32 %v352, %v379
      %v388 = vadd.f32 %v353, %v379
      %v389 = vadd.f32 %v354, %v379
      %v390 = vadd.f32 %v355, %v379
      %v391 = vadd.f32 %v356, %v379
      %v392 = vadd.f32 %v357, %v379
      %v393 = vadd.f32 %v358, %v379
      %v394 = vadd.f32 %v359, %v379
      %v395 = vadd.f32 %v360, %v379
      %v396 = vadd.f32 %v361, %v379
      %v397 = vadd.f32 %v362, %v379
      %v398 = vadd.f32 %v363, %v379
      %v399 = vadd.f32 %v364, %v379
      %v400 = vadd.f32 %v365, %v379
      %v401 = vadd.f32 %v366, %v379
      %v402 = vadd.f32 %v367, %v379
      %v403 = vadd.f32 %v368, %v379
      %v404 = vadd.f32 %v369, %v379
      %v405 = vadd.f32 %v370, %v379
      %v406 = vadd.f32 %v371, %v379
      %v407 = vadd.f32 %v372, %v379
      %v408 = vadd.f32 %v373, %v379
      %v409 = vadd.f32 %v374, %v379
      %v410 = vadd.f32 %v375, %v379
      %v411 = vadd.f32 %v376, %v379
      %v412 = vadd.f32 %v377, %v379
      %v413 = vadd.f32 %v381, %v279
      %v414 = vadd.f32 %v382, %v280
      %v415 = vadd.f32 %v383, %v281
      %v416 = vadd.f32 %v384, %v282
      %v417 = vadd.f32 %v385, %v283
      %v418 = vadd.f32 %v386, %v284
      %v419 = vadd.f32 %v387, %v285
      %v420 = vadd.f32 %v388, %v286
      %v421 = vadd.f32 %v389, %v287
      %v422 = vadd.f32 %v390, %v288
      %v423 = vadd.f32 %v391, %v289
      %v424 = vadd.f32 %v392, %v290
      %v425 = vadd.f32 %v393, %v291
      %v426 = vadd.f32 %v394, %v292
      %v427 = vadd.f32 %v395, %v293
      %v428 = vadd.f32 %v396, %v294
      %v429 = vadd.f32 %v397, %v295
      %v430 = vadd.f32 %v398, %v296
      %v431 = vadd.f32 %v399, %v297
      %v432 = vadd.f32 %v400, %v298
      %v433 = vadd.f32 %v401, %v299
      %v434 = vadd.f32 %v402, %v300
      %v435 = vadd.f32 %v403, %v301
      %v436 = vadd.f32 %v404, %v302
      %v437 = vadd.f32 %v405, %v303
      %v438 = vadd.f32 %v406, %v304
      %v439 = vadd.f32 %v407, %v305
      %v440 = vadd.f32 %v408, %v306
      %v441 = vadd.f32 %v409, %v307
      %v442 = vadd.f32 %v410, %v308
      %v443 = vadd.f32 %v411, %v309
      %v444 = vadd.f32 %v412, %v310
      %445 = vxpose.xlu0.b32.start [1/16] %v413, 128
      %446 = vxpose.xlu0.b32.cont [2/16] %v414, 128
      %447 = vxpose.xlu0.b32.cont [3/16] %v415, 128
      %448 = vxpose.xlu0.b32.cont [4/16] %v416, 128
      %449 = vxpose.xlu0.b32.cont [5/16] %v417, 128
      %450 = vxpose.xlu0.b32.cont [6/16] %v418, 128
      %451 = vxpose.xlu0.b32.cont [7/16] %v419, 128
      %452 = vxpose.xlu0.b32.cont [8/16] %v420, 128
      %453 = vxpose.xlu0.b32.cont [9/16] %v421, 128
      %454 = vxpose.xlu0.b32.cont [10/16] %v422, 128
      %455 = vxpose.xlu0.b32.cont [11/16] %v423, 128
      %456 = vxpose.xlu0.b32.cont [12/16] %v424, 128
      %457 = vxpose.xlu0.b32.cont [13/16] %v425, 128
      %458 = vxpose.xlu0.b32.cont [14/16] %v426, 128
      %459 = vxpose.xlu0.b32.cont [15/16] %v427, 128
      %460 = vxpose.xlu0.b32.end [16/16] %v428, 128
      %v461 = vpop.trf.xlu0
      %v462 = vpop.trf.xlu0
      %v463 = vpop.trf.xlu0
      %v464 = vpop.trf.xlu0
      %v465 = vpop.trf.xlu0
      %v466 = vpop.trf.xlu0
      %v467 = vpop.trf.xlu0
      %v468 = vpop.trf.xlu0
      %v469 = vpop.trf.xlu0
      %v470 = vpop.trf.xlu0
      %v471 = vpop.trf.xlu0
      %v472 = vpop.trf.xlu0
      %v473 = vpop.trf.xlu0
      %v474 = vpop.trf.xlu0
      %v475 = vpop.trf.xlu0
      %v476 = vpop.trf.xlu0
      %477 = vxpose.xlu0.b32.start [1/16] %v429, 128
      %478 = vxpose.xlu0.b32.cont [2/16] %v430, 128
      %479 = vxpose.xlu0.b32.cont [3/16] %v431, 128
      %480 = vxpose.xlu0.b32.cont [4/16] %v432, 128
      %481 = vxpose.xlu0.b32.cont [5/16] %v433, 128
      %482 = vxpose.xlu0.b32.cont [6/16] %v434, 128
      %483 = vxpose.xlu0.b32.cont [7/16] %v435, 128
      %484 = vxpose.xlu0.b32.cont [8/16] %v436, 128
      %485 = vxpose.xlu0.b32.cont [9/16] %v437, 128
      %486 = vxpose.xlu0.b32.cont [10/16] %v438, 128
      %487 = vxpose.xlu0.b32.cont [11/16] %v439, 128
      %488 = vxpose.xlu0.b32.cont [12/16] %v440, 128
      %489 = vxpose.xlu0.b32.cont [13/16] %v441, 128
      %490 = vxpose.xlu0.b32.cont [14/16] %v442, 128
      %491 = vxpose.xlu0.b32.cont [15/16] %v443, 128
      %492 = vxpose.xlu0.b32.end [16/16] %v444, 128
      %v493 = vpop.trf.xlu0
      %v494 = vpop.trf.xlu0
      %v495 = vpop.trf.xlu0
      %v496 = vpop.trf.xlu0
      %v497 = vpop.trf.xlu0
      %v498 = vpop.trf.xlu0
      %v499 = vpop.trf.xlu0
      %v500 = vpop.trf.xlu0
      %v501 = vpop.trf.xlu0
      %v502 = vpop.trf.xlu0
      %v503 = vpop.trf.xlu0
      %v504 = vpop.trf.xlu0
      %v505 = vpop.trf.xlu0
      %v506 = vpop.trf.xlu0
      %v507 = vpop.trf.xlu0
      %v508 = vpop.trf.xlu0
      %v511 = vrot.slane %v493, 4
      %vm512 = vcmask 1043456
      %v513 = vsel %vm512, %v461, %v511
      %515 = vst [vmem:[%s244] sm:$0xff] %v513
      %p516 = scmp.lt.s32.totalorder %s16, 1
      %s517 = scalar_select %p516, %s16, 1
      %s518 = smul.addr %s517, 2
      %s519 = smul.addr %s518, 4
      %s520 = scalar_lea.vmem %s5, %s519
      // Predicated region
      $region41: #{resnet_basic_block.5} parent=39 // pred_check
        %p521 = pneg %p149
      $region42: #{resnet_basic_block.5} parent=39 // pred_check_branch
        %523 = sbr.rel (%p521) target = $region44
      $region43: #{resnet_basic_block.5} parent=39 // pred_region
        _
      $region44: #{resnet_basic_block.5} parent=39 // pred_fallthru
        _
    $region40: #{resnet_basic_block.5} parent=5 // pred_fallthru
      _
    %p524 = scmp.le.s32.totalorder 2, %s11
    // Predicated region
    $region45: #{resnet_basic_block.5} parent=5 // pred_check
      %p525 = pneg %p524
    $region46: #{resnet_basic_block.5} parent=5 // pred_check_branch
      %527 = sbr.rel (%p525) target = $region48
    $region47: #{resnet_basic_block.5} parent=5 // pred_region
      %s528 = ssub.s32 %s11, 2
      // Predicated region
      $region49: #{resnet_basic_block.5} parent=47 // pred_check
        %p529 = pneg %p155
      $region50: #{resnet_basic_block.5} parent=47 // pred_check_branch
        %531 = sbr.rel (%p529) target = $region52
      $region51: #{resnet_basic_block.5} parent=47 // pred_region
        %p532 = scmp.lt.s32.totalorder %s17, 1
        %s533 = scalar_select %p532, %s17, 1
        %s534 = smul.addr %s533, 2
        %s535 = smul.addr %s534, 4
        %s536 = scalar_lea.vmem %s5, %s535
      $region52: #{resnet_basic_block.5} parent=47 // pred_fallthru
        _
    $region48: #{resnet_basic_block.5} parent=5 // pred_fallthru
      _
  $region6: #{resnet_basic_block.5} parent=0 // loop_footer
    %s15 = sadd.s32 1, %s11
  $region7: #{resnet_basic_block.5} parent=0 // loop_footer_branch
    %10 = sbr.rel target = $region3
  $region8: #{resnet_basic_block.5} parent=0 // loop_exit
    _

// kernel: resnet_basic_block.3
$region0: #{resnet_basic_block.3}
  #allocation0 [shape = 'u32[]', space=smem, size = 0x4, offset = 0x4, fixed_abs, tag = 'smem constant byte address 0x4 - core index']
  #allocation1 [shape = 'u32[72,128]{1,0:T(1,128)}', space=vmem, size = 0x9000, scoped, tag = 'internal scratch']
  %s0 = inlined_call_operand.vmem [shape: bf16[2,18,18,4], index: 0, kind: input, shape index: {}]
  %s1 = inlined_call_operand.vmem [shape: bf16[36,4], index: 1, kind: input, shape index: {}]
  %s2 = inlined_call_operand.vmem [shape: f32[2,16,16,4], index: 2, kind: output, shape index: {0}]
  %s3 = inlined_call_operand.vmem [shape: f32[2,2,4], index: 3, kind: output, shape index: {1}]
  %4 = xla_tuple %s2, %s3
  %s5 = sld [smem:[#allocation0]]
  $region49: #{resnet_basic_block.3} parent=0
    _
  %s7 = ssub.s32 1, %s5
  %s8 = scalar_select 0, %s7, %s5
  loop: start=0, step=1, limit=4
  $region2: #{resnet_basic_block.3} parent=0 // loop_pre_header
    _
  $region3: #{resnet_basic_block.3} parent=0 // loop_header
    %s10 = sphi 0, %s14
    %p11 = scmp.ge.s32.totalorder %s10, 4
    %s20 = sphi 0, %s22
    %s23 = sphi 0, %s20
    %s24 = sphi 0, %s23
    %s40 = sphi 0, %s24
    %s44 = sphi 0, %s44
    %s46 = sphi 0, %s44
    %s47 = sphi 0, %s46
    %s61 = sphi 0, %s47
    %s67 = sphi 0, %s69
    %s70 = sphi 0, %s67
    %s71 = sphi 0, %s70
    %s87 = sphi 0, %s71
    %s93 = sphi 0, %s95
    %s96 = sphi 0, %s93
    %s97 = sphi 0, %s96
    %s113 = sphi 0, %s97
  $region4: #{resnet_basic_block.3} parent=0 // loop_header_branch
    %13 = sbr.rel (%p11) target = $region8
  $region5: #{resnet_basic_block.3} parent=0 // loop_body
    %s15 = ssub.s32 %s10, 1
    %s16 = ssub.s32 %s10, 2
    %s17 = sadd.s32 %s10, 1
    %s18 = ssub.s32 %s10, %s17
    %p19 = scmp.eq.s32.totalorder %s18, 0
    %s21 = sadd.s32 %s20, 1
    %s22 = scalar_select %p19, %s20, %s21
    %p25 = pneg %p19
    %p26 = scmp.eq.s32.totalorder %s10, 1
    %p27 = por %p25, %p26
    %p28 = scmp.ne.s32.totalorder %s20, %s23
    %p29 = scmp.eq.s32.totalorder %s10, 0
    %p30 = por %p28, %p29
    %p31 = scmp.ne.s32.totalorder %s20, %s23
    %p32 = scmp.eq.s32.totalorder %s15, 1
    %p33 = por %p31, %p32
    %p34 = scmp.ne.s32.totalorder %s23, %s24
    %p35 = scmp.eq.s32.totalorder %s15, 0
    %p36 = por %p34, %p35
    %p37 = scmp.ne.s32.totalorder %s23, %s24
    %p38 = scmp.eq.s32.totalorder %s16, 1
    %p39 = por %p37, %p38
    %p41 = scmp.ne.s32.totalorder %s24, %s40
    %p42 = scmp.eq.s32.totalorder %s16, 0
    %p43 = por %p41, %p42
    %s45 = sadd.s32 %s44, 1
    %p48 = scmp.eq.s32.totalorder %s10, 1
    %p49 = scmp.ne.s32.totalorder %s44, %s46
    %p50 = scmp.eq.s32.totalorder %s10, 0
    %p51 = por %p49, %p50
    %p52 = scmp.ne.s32.totalorder %s44, %s46
    %p53 = scmp.eq.s32.totalorder %s15, 1
    %p54 = por %p52, %p53
    %p55 = scmp.ne.s32.totalorder %s46, %s47
    %p56 = scmp.eq.s32.totalorder %s15, 0
    %p57 = por %p55, %p56
    %p58 = scmp.ne.s32.totalorder %s46, %s47
    %p59 = scmp.eq.s32.totalorder %s16, 1
    %p60 = por %p58, %p59
    %p62 = scmp.ne.s32.totalorder %s47, %s61
    %p63 = scmp.eq.s32.totalorder %s16, 0
    %p64 = por %p62, %p63
    %s65 = ssub.s32 %s10, %s17
    %p66 = scmp.eq.s32.totalorder %s65, 0
    %s68 = sadd.s32 %s67, 1
    %s69 = scalar_select %p66, %s67, %s68
    %p72 = pneg %p66
    %p73 = scmp.eq.s32.totalorder %s10, 1
    %p74 = por %p72, %p73
    %p75 = scmp.ne.s32.totalorder %s67, %s70
    %p76 = scmp.eq.s32.totalorder %s10, 0
    %p77 = por %p75, %p76
    %p78 = scmp.ne.s32.totalorder %s67, %s70
    %p79 = scmp.eq.s32.totalorder %s15, 1
    %p80 = por %p78, %p79
    %p81 = scmp.ne.s32.totalorder %s70, %s71
    %p82 = scmp.eq.s32.totalorder %s15, 0
    %p83 = por %p81, %p82
    %p84 = scmp.ne.s32.totalorder %s70, %s71
    %p85 = scmp.eq.s32.totalorder %s16, 1
    %p86 = por %p84, %p85
    %p88 = scmp.ne.s32.totalorder %s71, %s87
    %p89 = scmp.eq.s32.totalorder %s16, 0
    %p90 = por %p88, %p89
    %s91 = ssub.s32 %s10, %s17
    %p92 = scmp.eq.s32.totalorder %s91, 0
    %s94 = sadd.s32 %s93, 1
    %s95 = scalar_select %p92, %s93, %s94
    %p98 = pneg %p92
    %p99 = scmp.eq.s32.totalorder %s10, 1
    %p100 = por %p98, %p99
    %p101 = scmp.ne.s32.totalorder %s93, %s96
    %p102 = scmp.eq.s32.totalorder %s10, 0
    %p103 = por %p101, %p102
    %p104 = scmp.ne.s32.totalorder %s93, %s96
    %p105 = scmp.eq.s32.totalorder %s15, 1
    %p106 = por %p104, %p105
    %p107 = scmp.ne.s32.totalorder %s96, %s97
    %p108 = scmp.eq.s32.totalorder %s15, 0
    %p109 = por %p107, %p108
    %p110 = scmp.ne.s32.totalorder %s96, %s97
    %p111 = scmp.eq.s32.totalorder %s16, 1
    %p112 = por %p110, %p111
    %p114 = scmp.ne.s32.totalorder %s97, %s113
    %p115 = scmp.eq.s32.totalorder %s16, 0
    %p116 = por %p114, %p115
    %p117 = scmp.le.s32.totalorder 1, %s10
    %p118 = scmp.lt.s32.totalorder %s10, 3
    %p119 = pnand %p117, %p118
    %p120 = pneg %p119
    // Predicated region
    $region9: #{resnet_basic_block.3} parent=5 // pred_check
      _
    $region10: #{resnet_basic_block.3} parent=5 // pred_check_branch
      %122 = sbr.rel (%p119) target = $region12
    $region11: #{resnet_basic_block.3} parent=5 // pred_region
      %s123 = ssub.s32 %s10, 1
      // Predicated region
      $region13: #{resnet_basic_block.3} parent=11 // pred_check
        %p124 = pneg %p57
      $region14: #{resnet_basic_block.3} parent=11 // pred_check_branch
        %126 = sbr.rel (%p124) target = $region16
      $region15: #{resnet_basic_block.3} parent=11 // pred_region
        _
      $region16: #{resnet_basic_block.3} parent=11 // pred_fallthru
        _
    $region12: #{resnet_basic_block.3} parent=5 // pred_fallthru
      _
    %p127 = scmp.lt.s32.totalorder %s10, 2
    // Predicated region
    $region17: #{resnet_basic_block.3} parent=5 // pred_check
      %p128 = pneg %p127
    $region18: #{resnet_basic_block.3} parent=5 // pred_check_branch
      %130 = sbr.rel (%p128) target = $region20
    $region19: #{resnet_basic_block.3} parent=5 // pred_region
      // Predicated region
      $region21: #{resnet_basic_block.3} parent=19 // pred_check
        %p131 = pneg %p30
      $region22: #{resnet_basic_block.3} parent=19 // pred_check_branch
        %133 = sbr.rel (%p131) target = $region24
      $region23: #{resnet_basic_block.3} parent=19 // pred_region
        %p134 = scmp.lt.s32.totalorder %s10, 1
        %s135 = scalar_select %p134, %s10, 1
        %s136 = smul.addr %s135, 54
        %s137 = smul.addr %s136, 4
        %s138 = scalar_lea.vmem %s0, %s137
      $region24: #{resnet_basic_block.3} parent=19 // pred_fallthru
        _
    $region20: #{resnet_basic_block.3} parent=5 // pred_fallthru
      _
    %p139 = scmp.le.s32.totalorder 1, %s10
    %p140 = scmp.lt.s32.totalorder %s10, 3
    %p141 = pnand %p139, %p140
    %p142 = pneg %p141
    // Predicated region
    $region25: #{resnet_basic_block.3} parent=5 // pred_check
      _
    $region26: #{resnet_basic_block.3} parent=5 // pred_check_branch
      %144 = sbr.rel (%p141) target = $region28
    $region27: #{resnet_basic_block.3} parent=5 // pred_region
      %s145 = ssub.s32 %s10, 1
      %p146 = scmp.lt.s32.totalorder %s15, 1
      %s147 = scalar_select %p146, %s15, 1
      %s148 = smul.addr %s147, 54
      %s149 = smul.addr %s148, 4
      %s150 = scalar_lea.vmem %s0, %s149
      %p151 = pneg %p36
      %p152 = pneg %p33
      %p153 = pneg %p57
      %p154 = pneg %p54
      %p155 = pneg %p83
      %p156 = pneg %p80
      %p157 = scmp.lt.s32.totalorder %s15, 1
      %s158 = scalar_select %p157, %s15, 1
      %s159 = smul.addr %s158, 32
      %s160 = smul.addr %s159, 8
      %s161 = scalar_lea.vmem %s2, %s160
      %p162 = pneg %p109
      %p163 = pneg %p106
      %p164 = scmp.lt.s32.totalorder %s15, 1
      %s165 = scalar_select %p164, %s15, 1
      %s166 = smul.addr %s165, 2
      %s167 = scalar_lea.vmem %s3, %s166
      %p168 = scmp.lt.s32.totalorder %s15, 1
      %s169 = scalar_select %p168, %s15, 1
      %s170 = smul.addr %s169, 54
      %s171 = smul.addr %s170, 4
      %s172 = scalar_lea.vmem %s0, %s171
      %p173 = scmp.lt.s32.totalorder %s15, 1
      %s174 = scalar_select %p173, %s15, 1
      %s175 = smul.addr %s174, 32
      %s176 = smul.addr %s175, 8
      %s177 = scalar_lea.vmem %s2, %s176
      %p178 = scmp.lt.s32.totalorder %s15, 1
      %s179 = scalar_select %p178, %s15, 1
      %s180 = smul.addr %s179, 2
      %s181 = scalar_lea.vmem %s3, %s180
      %v183 = vld [vmem:[%s172] sm:$0xf]
      %v184 = vld [vmem:[%s172 + $0x4] sm:$0xf]
      %v185 = vld [vmem:[%s172 + $0x8] sm:$0x1]
      %v186 = vld [vmem:[%s172 + $0xc] sm:$0xf]
      %v187 = vld [vmem:[%s172 + $0x10] sm:$0xf]
      %v188 = vld [vmem:[%s172 + $0x14] sm:$0x1]
      %v189 = vld [vmem:[%s172 + $0x18] sm:$0xf]
      %v190 = vld [vmem:[%s172 + $0x1c] sm:$0xf]
      %v191 = vld [vmem:[%s172 + $0x20] sm:$0x1]
      %v192 = vld [vmem:[%s172 + $0x24] sm:$0xf]
      %v193 = vld [vmem:[%s172 + $0x28] sm:$0xf]
      %v194 = vld [vmem:[%s172 + $0x2c] sm:$0x1]
      %v195 = vld [vmem:[%s172 + $0x30] sm:$0xf]
      %v196 = vld [vmem:[%s172 + $0x34] sm:$0xf]
      %v197 = vld [vmem:[%s172 + $0x38] sm:$0x1]
      %v198 = vld [vmem:[%s172 + $0x3c] sm:$0xf]
      %v199 = vld [vmem:[%s172 + $0x40] sm:$0xf]
      %v200 = vld [vmem:[%s172 + $0x44] sm:$0x1]
      %v201 = vld [vmem:[%s172 + $0x48] sm:$0xf]
      %v202 = vld [vmem:[%s172 + $0x4c] sm:$0xf]
      %v203 = vld [vmem:[%s172 + $0x50] sm:$0x1]
      %v204 = vld [vmem:[%s172 + $0x54] sm:$0xf]
      %v205 = vld [vmem:[%s172 + $0x58] sm:$0xf]
      %v206 = vld [vmem:[%s172 + $0x5c] sm:$0x1]
      %v207 = vld [vmem:[%s172 + $0x60] sm:$0xf]
      %v208 = vld [vmem:[%s172 + $0x64] sm:$0xf]
      %v209 = vld [vmem:[%s172 + $0x68] sm:$0x1]
      %v210 = vld [vmem:[%s172 + $0x6c] sm:$0xf]
      %v211 = vld [vmem:[%s172 + $0x70] sm:$0xf]
      %v212 = vld [vmem:[%s172 + $0x74] sm:$0x1]
      %v213 = vld [vmem:[%s172 + $0x78] sm:$0xf]
      %v214 = vld [vmem:[%s172 + $0x7c] sm:$0xf]
      %v215 = vld [vmem:[%s172 + $0x80] sm:$0x1]
      %v216 = vld [vmem:[%s172 + $0x84] sm:$0xf]
      %v217 = vld [vmem:[%s172 + $0x88] sm:$0xf]
      %v218 = vld [vmem:[%s172 + $0x8c] sm:$0x1]
      %v219 = vld [vmem:[%s172 + $0x90] sm:$0xf]
      %v220 = vld [vmem:[%s172 + $0x94] sm:$0xf]
      %v221 = vld [vmem:[%s172 + $0x98] sm:$0x1]
      %v222 = vld [vmem:[%s172 + $0x9c] sm:$0xf]
      %v223 = vld [vmem:[%s172 + $0xa0] sm:$0xf]
      %v224 = vld [vmem:[%s172 + $0xa4] sm:$0x1]
      %v225 = vld [vmem:[%s172 + $0xa8] sm:$0xf]
      %v226 = vld [vmem:[%s172 + $0xac] sm:$0xf]
      %v227 = vld [vmem:[%s172 + $0xb0] sm:$0x1]
      %v228 = vld [vmem:[%s172 + $0xb4] sm:$0xf]
      %v229 = vld [vmem:[%s172 + $0xb8] sm:$0xf]
      %v230 = vld [vmem:[%s172 + $0xbc] sm:$0x1]
      %v231 = vld [vmem:[%s172 + $0xc0] sm:$0xf]
      %v232 = vld [vmem:[%s172 + $0xc4] sm:$0xf]
      %v233 = vld [vmem:[%s172 + $0xc8] sm:$0x1]
      %v234 = vld [vmem:[%s172 + $0xcc] sm:$0xf]
      %v235 = vld [vmem:[%s172 + $0xd0] sm:$0xf]
      %v236 = vld [vmem:[%s172 + $0xd4] sm:$0x1]
      %v269 = vunpack.c.l.b16 %v183
      %v270 = vunpack.c.l.b16 %v184
      %v271 = vunpack.c.l.b16 %v186
      %v272 = vunpack.c.l.b16 %v187
      %v273 = vunpack.c.l.b16 %v189
      %v274 = vunpack.c.l.b16 %v190
      %v275 = vunpack.c.l.b16 %v192
      %v276 = vunpack.c.l.b16 %v193
      %v277 = vunpack.c.l.b16 %v195
      %v278 = vunpack.c.l.b16 %v196
      %v279 = vunpack.c.l.b16 %v198
      %v280 = vunpack.c.l.b16 %v199
      %v281 = vunpack.c.l.b16 %v201
      %v282 = vunpack.c.l.b16 %v202
      %v283 = vunpack.c.l.b16 %v204
      %v284 = vunpack.c.l.b16 %v205
      %v285 = vunpack.c.l.b16 %v207
      %v286 = vunpack.c.l.b16 %v208
      %v287 = vunpack.c.l.b16 %v210
      %v288 = vunpack.c.l.b16 %v211
      %v289 = vunpack.c.l.b16 %v213
      %v290 = vunpack.c.l.b16 %v214
      %v291 = vunpack.c.l.b16 %v216
      %v292 = vunpack.c.l.b16 %v217
      %v293 = vunpack.c.l.b16 %v219
      %v294 = vunpack.c.l.b16 %v220
      %v295 = vunpack.c.l.b16 %v222
      %v296 = vunpack.c.l.b16 %v223
      %v297 = vunpack.c.l.b16 %v225
      %v298 = vunpack.c.l.b16 %v226
      %v299 = vunpack.c.l.b16 %v228
      %v300 = vunpack.c.l.b16 %v229
      %v301 = vpack.c.b16 %v270, %v269
      %v302 = vpack.c.b16 %v272, %v271
      %v303 = vpack.c.b16 %v274, %v273
      %v304 = vpack.c.b16 %v276, %v275
      %v305 = vpack.c.b16 %v278, %v277
      %v306 = vpack.c.b16 %v280, %v279
      %v307 = vpack.c.b16 %v282, %v281
      %v308 = vpack.c.b16 %v284, %v283
      %v309 = vpack.c.b16 %v286, %v285
      %v310 = vpack.c.b16 %v288, %v287
      %v311 = vpack.c.b16 %v290, %v289
      %v312 = vpack.c.b16 %v292, %v291
      %v313 = vpack.c.b16 %v294, %v293
      %v314 = vpack.c.b16 %v296, %v295
      %v315 = vpack.c.b16 %v298, %v297
      %v316 = vpack.c.b16 %v300, %v299
      %v333 = vunpack.c.l.b16 %v185
      %v334 = vunpack.c.l.b16 %v188
      %v335 = vunpack.c.l.b16 %v191
      %v336 = vunpack.c.l.b16 %v194
      %v337 = vunpack.c.l.b16 %v197
      %v338 = vunpack.c.l.b16 %v200
      %v339 = vunpack.c.l.b16 %v203
      %v340 = vunpack.c.l.b16 %v206
      %v341 = vunpack.c.l.b16 %v209
      %v342 = vunpack.c.l.b16 %v212
      %v343 = vunpack.c.l.b16 %v215
      %v344 = vunpack.c.l.b16 %v218
      %v345 = vunpack.c.l.b16 %v221
      %v346 = vunpack.c.l.b16 %v224
      %v347 = vunpack.c.l.b16 %v227
      %v348 = vunpack.c.l.b16 %v230
      %v349 = vpack.c.b16 %v333, %v333
      %v350 = vpack.c.b16 %v334, %v334
      %v351 = vpack.c.b16 %v335, %v335
      %v352 = vpack.c.b16 %v336, %v336
      %v353 = vpack.c.b16 %v337, %v337
      %v354 = vpack.c.b16 %v338, %v338
      %v355 = vpack.c.b16 %v339, %v339
      %v356 = vpack.c.b16 %v340, %v340
      %v357 = vpack.c.b16 %v341, %v341
      %v358 = vpack.c.b16 %v342, %v342
      %v359 = vpack.c.b16 %v343, %v343
      %v360 = vpack.c.b16 %v344, %v344
      %v361 = vpack.c.b16 %v345, %v345
      %v362 = vpack.c.b16 %v346, %v346
      %v363 = vpack.c.b16 %v347, %v347
      %v364 = vpack.c.b16 %v348, %v348
      %vm365 = vsmask.f32 7424
      %v367 = vshrl.u32 %v301, 16
      %v369 = vshll.u32 %v301, 16
      %v371 = vrot.slane %v369, 1
      %v372 = vor.u32 %v367, %v371
      %v374 = vshll.u32 %v349, 16
      %v376 = vrot.slane %v374, 1
      %v377 = vsel %vm365, %v372, %v376
      %v379 = vshrl.u32 %v302, 16
      %v381 = vshll.u32 %v302, 16
      %v383 = vrot.slane %v381, 1
      %v384 = vor.u32 %v379, %v383
      %v386 = vshll.u32 %v350, 16
      %v388 = vrot.slane %v386, 1
      %v389 = vsel %vm365, %v384, %v388
      %v391 = vshrl.u32 %v303, 16
      %v393 = vshll.u32 %v303, 16
      %v395 = vrot.slane %v393, 1
      %v396 = vor.u32 %v391, %v395
      %v398 = vshll.u32 %v351, 16
      %v400 = vrot.slane %v398, 1
      %v401 = vsel %vm365, %v396, %v400
      %v403 = vshrl.u32 %v304, 16
      %v405 = vshll.u32 %v304, 16
      %v407 = vrot.slane %v405, 1
      %v408 = vor.u32 %v403, %v407
      %v410 = vshll.u32 %v352, 16
      %v412 = vrot.slane %v410, 1
      %v413 = vsel %vm365, %v408, %v412
      %v415 = vshrl.u32 %v305, 16
      %v417 = vshll.u32 %v305, 16
      %v419 = vrot.slane %v417, 1
      %v420 = vor.u32 %v415, %v419
      %v422 = vshll.u32 %v353, 16
      %v424 = vrot.slane %v422, 1
      %v425 = vsel %vm365, %v420, %v424
      %v427 = vshrl.u32 %v306, 16
      %v429 = vshll.u32 %v306, 16
      %v431 = vrot.slane %v429, 1
      %v432 = vor.u32 %v427, %v431
      %v434 = vshll.u32 %v354, 16
      %v436 = vrot.slane %v434, 1
      %v437 = vsel %vm365, %v432, %v436
      %v439 = vshrl.u32 %v307, 16
      %v441 = vshll.u32 %v307, 16
      %v443 = vrot.slane %v441, 1
      %v444 = vor.u32 %v439, %v443
      %v446 = vshll.u32 %v355, 16
      %v448 = vrot.slane %v446, 1
      %v449 = vsel %vm365, %v444, %v448
      %v451 = vshrl.u32 %v308, 16
      %v453 = vshll.u32 %v308, 16
      %v455 = vrot.slane %v453, 1
      %v456 = vor.u32 %v451, %v455
      %v458 = vshll.u32 %v356, 16
      %v460 = vrot.slane %v458, 1
      %v461 = vsel %vm365, %v456, %v460
      %v463 = vshrl.u32 %v309, 16
      %v465 = vshll.u32 %v309, 16
      %v467 = vrot.slane %v465, 1
      %v468 = vor.u32 %v463, %v467
      %v470 = vshll.u32 %v357, 16
      %v472 = vrot.slane %v470, 1
      %v473 = vsel %vm365, %v468, %v472
      %v475 = vshrl.u32 %v310, 16
      %v477 = vshll.u32 %v310, 16
      %v479 = vrot.slane %v477, 1
      %v480 = vor.u32 %v475, %v479
      %v482 = vshll.u32 %v358, 16
      %v484 = vrot.slane %v482, 1
      %v485 = vsel %vm365, %v480, %v484
      %v487 = vshrl.u32 %v311, 16
      %v489 = vshll.u32 %v311, 16
      %v491 = vrot.slane %v489, 1
      %v492 = vor.u32 %v487, %v491
      %v494 = vshll.u32 %v359, 16
      %v496 = vrot.slane %v494, 1
      %v497 = vsel %vm365, %v492, %v496
      %v499 = vshrl.u32 %v312, 16
      %v501 = vshll.u32 %v312, 16
      %v503 = vrot.slane %v501, 1
      %v504 = vor.u32 %v499, %v503
      %v506 = vshll.u32 %v360, 16
      %v508 = vrot.slane %v506, 1
      %v509 = vsel %vm365, %v504, %v508
      %v511 = vshrl.u32 %v313, 16
      %v513 = vshll.u32 %v313, 16
      %v515 = vrot.slane %v513, 1
      %v516 = vor.u32 %v511, %v515
      %v518 = vshll.u32 %v361, 16
      %v520 = vrot.slane %v518, 1
      %v521 = vsel %vm365, %v516, %v520
      %v523 = vshrl.u32 %v314, 16
      %v525 = vshll.u32 %v314, 16
      %v527 = vrot.slane %v525, 1
      %v528 = vor.u32 %v523, %v527
      %v530 = vshll.u32 %v362, 16
      %v532 = vrot.slane %v530, 1
      %v533 = vsel %vm365, %v528, %v532
      %v535 = vshrl.u32 %v315, 16
      %v537 = vshll.u32 %v315, 16
      %v539 = vrot.slane %v537, 1
      %v540 = vor.u32 %v535, %v539
      %v542 = vshll.u32 %v363, 16
      %v544 = vrot.slane %v542, 1
      %v545 = vsel %vm365, %v540, %v544
      %v547 = vshrl.u32 %v316, 16
      %v549 = vshll.u32 %v316, 16
      %v551 = vrot.slane %v549, 1
      %v552 = vor.u32 %v547, %v551
      %v554 = vshll.u32 %v364, 16
      %v556 = vrot.slane %v554, 1
      %v557 = vsel %vm365, %v552, %v556
      %558 = vrot.lane.b32.xlu0 %v377, 4
      %v559 = vpop.permute.xlu0 %558
      %560 = vrot.lane.b32.xlu0 %v389, 4
      %v561 = vpop.permute.xlu0 %560
      %562 = vrot.lane.b32.xlu0 %v401, 4
      %v563 = vpop.permute.xlu0 %562
      %564 = vrot.lane.b32.xlu0 %v413, 4
      %v565 = vpop.permute.xlu0 %564
      %566 = vrot.lane.b32.xlu0 %v425, 4
      %v567 = vpop.permute.xlu0 %566
      %568 = vrot.lane.b32.xlu0 %v437, 4
      %v569 = vpop.permute.xlu0 %568
      %570 = vrot.lane.b32.xlu0 %v449, 4
      %v571 = vpop.permute.xlu0 %570
      %572 = vrot.lane.b32.xlu0 %v461, 4
      %v573 = vpop.permute.xlu0 %572
      %574 = vrot.lane.b32.xlu0 %v473, 4
      %v575 = vpop.permute.xlu0 %574
      %576 = vrot.lane.b32.xlu0 %v485, 4
      %v577 = vpop.permute.xlu0 %576
      %578 = vrot.lane.b32.xlu0 %v497, 4
      %v579 = vpop.permute.xlu0 %578
      %580 = vrot.lane.b32.xlu0 %v509, 4
      %v581 = vpop.permute.xlu0 %580
      %582 = vrot.lane.b32.xlu0 %v521, 4
      %v583 = vpop.permute.xlu0 %582
      %584 = vrot.lane.b32.xlu0 %v533, 4
      %v585 = vpop.permute.xlu0 %584
      %586 = vrot.lane.b32.xlu0 %v545, 4
      %v587 = vpop.permute.xlu0 %586
      %588 = vrot.lane.b32.xlu0 %v557, 4
      %v589 = vpop.permute.xlu0 %588
      %vm590 = vcmask 1046528
      %v591 = vrot.slane %v301, 1
      %v592 = vrot.slane %v349, 1
      %v593 = vsel %vm590, %v591, %v592
      %v594 = vrot.slane %v302, 1
      %v595 = vrot.slane %v350, 1
      %v596 = vsel %vm590, %v594, %v595
      %v597 = vrot.slane %v303, 1
      %v598 = vrot.slane %v351, 1
      %v599 = vsel %vm590, %v597, %v598
      %v600 = vrot.slane %v304, 1
      %v601 = vrot.slane %v352, 1
      %v602 = vsel %vm590, %v600, %v601
      %v603 = vrot.slane %v305, 1
      %v604 = vrot.slane %v353, 1
      %v605 = vsel %vm590, %v603, %v604
      %v606 = vrot.slane %v306, 1
      %v607 = vrot.slane %v354, 1
      %v608 = vsel %vm590, %v606, %v607
      %v609 = vrot.slane %v307, 1
      %v610 = vrot.slane %v355, 1
      %v611 = vsel %vm590, %v609, %v610
      %v612 = vrot.slane %v308, 1
      %v613 = vrot.slane %v356, 1
      %v614 = vsel %vm590, %v612, %v613
      %v615 = vrot.slane %v309, 1
      %v616 = vrot.slane %v357, 1
      %v617 = vsel %vm590, %v615, %v616
      %v618 = vrot.slane %v310, 1
      %v619 = vrot.slane %v358, 1
      %v620 = vsel %vm590, %v618, %v619
      %v621 = vrot.slane %v311, 1
      %v622 = vrot.slane %v359, 1
      %v623 = vsel %vm590, %v621, %v622
      %v624 = vrot.slane %v312, 1
      %v625 = vrot.slane %v360, 1
      %v626 = vsel %vm590, %v624, %v625
      %v627 = vrot.slane %v313, 1
      %v628 = vrot.slane %v361, 1
      %v629 = vsel %vm590, %v627, %v628
      %v630 = vrot.slane %v314, 1
      %v631 = vrot.slane %v362, 1
      %v632 = vsel %vm590, %v630, %v631
      %v633 = vrot.slane %v315, 1
      %v634 = vrot.slane %v363, 1
      %v635 = vsel %vm590, %v633, %v634
      %v636 = vrot.slane %v316, 1
      %v637 = vrot.slane %v364, 1
      %v638 = vsel %vm590, %v636, %v637
      %639 = vrot.lane.b32.xlu0 %v593, 8
      %v640 = vpop.permute.xlu0 %639
      %641 = vrot.lane.b32.xlu0 %v596, 8
      %v642 = vpop.permute.xlu0 %641
      %643 = vrot.lane.b32.xlu0 %v599, 8
      %v644 = vpop.permute.xlu0 %643
      %645 = vrot.lane.b32.xlu0 %v602, 8
      %v646 = vpop.permute.xlu0 %645
      %647 = vrot.lane.b32.xlu0 %v605, 8
      %v648 = vpop.permute.xlu0 %647
      %649 = vrot.lane.b32.xlu0 %v608, 8
      %v650 = vpop.permute.xlu0 %649
      %651 = vrot.lane.b32.xlu0 %v611, 8
      %v652 = vpop.permute.xlu0 %651
      %653 = vrot.lane.b32.xlu0 %v614, 8
      %v654 = vpop.permute.xlu0 %653
      %655 = vrot.lane.b32.xlu0 %v617, 8
      %v656 = vpop.permute.xlu0 %655
      %657 = vrot.lane.b32.xlu0 %v620, 8
      %v658 = vpop.permute.xlu0 %657
      %659 = vrot.lane.b32.xlu0 %v623, 8
      %v660 = vpop.permute.xlu0 %659
      %661 = vrot.lane.b32.xlu0 %v626, 8
      %v662 = vpop.permute.xlu0 %661
      %663 = vrot.lane.b32.xlu0 %v629, 8
      %v664 = vpop.permute.xlu0 %663
      %665 = vrot.lane.b32.xlu0 %v632, 8
      %v666 = vpop.permute.xlu0 %665
      %667 = vrot.lane.b32.xlu0 %v635, 8
      %v668 = vpop.permute.xlu0 %667
      %669 = vrot.lane.b32.xlu0 %v638, 8
      %v670 = vpop.permute.xlu0 %669
      %v673 = vunpack.c.l.b16 %v231
      %v674 = vunpack.c.l.b16 %v232
      %v675 = vpack.c.b16 %v674, %v673
      %676 = vrot.lane.b32.xlu0 %v302, 12
      %v677 = vpop.permute.xlu0 %676
      %678 = vrot.lane.b32.xlu0 %v303, 12
      %v679 = vpop.permute.xlu0 %678
      %680 = vrot.lane.b32.xlu0 %v304, 12
      %v681 = vpop.permute.xlu0 %680
      %682 = vrot.lane.b32.xlu0 %v305, 12
      %v683 = vpop.permute.xlu0 %682
      %684 = vrot.lane.b32.xlu0 %v306, 12
      %v685 = vpop.permute.xlu0 %684
      %686 = vrot.lane.b32.xlu0 %v307, 12
      %v687 = vpop.permute.xlu0 %686
      %688 = vrot.lane.b32.xlu0 %v308, 12
      %v689 = vpop.permute.xlu0 %688
      %690 = vrot.lane.b32.xlu0 %v309, 12
      %v691 = vpop.permute.xlu0 %690
      %692 = vrot.lane.b32.xlu0 %v310, 12
      %v693 = vpop.permute.xlu0 %692
      %694 = vrot.lane.b32.xlu0 %v311, 12
      %v695 = vpop.permute.xlu0 %694
      %696 = vrot.lane.b32.xlu0 %v312, 12
      %v697 = vpop.permute.xlu0 %696
      %698 = vrot.lane.b32.xlu0 %v313, 12
      %v699 = vpop.permute.xlu0 %698
      %700 = vrot.lane.b32.xlu0 %v314, 12
      %v701 = vpop.permute.xlu0 %700
      %702 = vrot.lane.b32.xlu0 %v315, 12
      %v703 = vpop.permute.xlu0 %702
      %704 = vrot.lane.b32.xlu0 %v316, 12
      %v705 = vpop.permute.xlu0 %704
      %706 = vrot.lane.b32.xlu0 %v675, 12
      %v707 = vpop.permute.xlu0 %706
      %v709 = vunpack.c.l.b16 %v233
      %v710 = vpack.c.b16 %v709, %v709
      %v712 = vshrl.u32 %v675, 16
      %v714 = vshll.u32 %v675, 16
      %v716 = vrot.slane %v714, 1
      %v717 = vor.u32 %v712, %v716
      %v719 = vshll.u32 %v710, 16
      %v721 = vrot.slane %v719, 1
      %v722 = vsel %vm365, %v717, %v721
      %723 = vrot.lane.b32.xlu0 %v389, 16
      %v724 = vpop.permute.xlu0 %723
      %725 = vrot.lane.b32.xlu0 %v401, 16
      %v726 = vpop.permute.xlu0 %725
      %727 = vrot.lane.b32.xlu0 %v413, 16
      %v728 = vpop.permute.xlu0 %727
      %729 = vrot.lane.b32.xlu0 %v425, 16
      %v730 = vpop.permute.xlu0 %729
      %731 = vrot.lane.b32.xlu0 %v437, 16
      %v732 = vpop.permute.xlu0 %731
      %733 = vrot.lane.b32.xlu0 %v449, 16
      %v734 = vpop.permute.xlu0 %733
      %735 = vrot.lane.b32.xlu0 %v461, 16
      %v736 = vpop.permute.xlu0 %735
      %737 = vrot.lane.b32.xlu0 %v473, 16
      %v738 = vpop.permute.xlu0 %737
      %739 = vrot.lane.b32.xlu0 %v485, 16
      %v740 = vpop.permute.xlu0 %739
      %741 = vrot.lane.b32.xlu0 %v497, 16
      %v742 = vpop.permute.xlu0 %741
      %743 = vrot.lane.b32.xlu0 %v509, 16
      %v744 = vpop.permute.xlu0 %743
      %745 = vrot.lane.b32.xlu0 %v521, 16
      %v746 = vpop.permute.xlu0 %745
      %747 = vrot.lane.b32.xlu0 %v533, 16
      %v748 = vpop.permute.xlu0 %747
      %749 = vrot.lane.b32.xlu0 %v545, 16
      %v750 = vpop.permute.xlu0 %749
      %751 = vrot.lane.b32.xlu0 %v557, 16
      %v752 = vpop.permute.xlu0 %751
      %753 = vrot.lane.b32.xlu0 %v722, 16
      %v754 = vpop.permute.xlu0 %753
      %v755 = vrot.slane %v675, 1
      %v756 = vrot.slane %v710, 1
      %v757 = vsel %vm590, %v755, %v756
      %758 = vrot.lane.b32.xlu0 %v596, 20
      %v759 = vpop.permute.xlu0 %758
      %760 = vrot.lane.b32.xlu0 %v599, 20
      %v761 = vpop.permute.xlu0 %760
      %762 = vrot.lane.b32.xlu0 %v602, 20
      %v763 = vpop.permute.xlu0 %762
      %764 = vrot.lane.b32.xlu0 %v605, 20
      %v765 = vpop.permute.xlu0 %764
      %766 = vrot.lane.b32.xlu0 %v608, 20
      %v767 = vpop.permute.xlu0 %766
      %768 = vrot.lane.b32.xlu0 %v611, 20
      %v769 = vpop.permute.xlu0 %768
      %770 = vrot.lane.b32.xlu0 %v614, 20
      %v771 = vpop.permute.xlu0 %770
      %772 = vrot.lane.b32.xlu0 %v617, 20
      %v773 = vpop.permute.xlu0 %772
      %774 = vrot.lane.b32.xlu0 %v620, 20
      %v775 = vpop.permute.xlu0 %774
      %776 = vrot.lane.b32.xlu0 %v623, 20
      %v777 = vpop.permute.xlu0 %776
      %778 = vrot.lane.b32.xlu0 %v626, 20
      %v779 = vpop.permute.xlu0 %778
      %780 = vrot.lane.b32.xlu0 %v629, 20
      %v781 = vpop.permute.xlu0 %780
      %782 = vrot.lane.b32.xlu0 %v632, 20
      %v783 = vpop.permute.xlu0 %782
      %784 = vrot.lane.b32.xlu0 %v635, 20
      %v785 = vpop.permute.xlu0 %784
      %786 = vrot.lane.b32.xlu0 %v638, 20
      %v787 = vpop.permute.xlu0 %786
      %788 = vrot.lane.b32.xlu0 %v757, 20
      %v789 = vpop.permute.xlu0 %788
      %v792 = vunpack.c.l.b16 %v234
      %v793 = vunpack.c.l.b16 %v235
      %v794 = vpack.c.b16 %v793, %v792
      %795 = vrot.lane.b32.xlu0 %v303, 24
      %v796 = vpop.permute.xlu0 %795
      %797 = vrot.lane.b32.xlu0 %v304, 24
      %v798 = vpop.permute.xlu0 %797
      %799 = vrot.lane.b32.xlu0 %v305, 24
      %v800 = vpop.permute.xlu0 %799
      %801 = vrot.lane.b32.xlu0 %v306, 24
      %v802 = vpop.permute.xlu0 %801
      %803 = vrot.lane.b32.xlu0 %v307, 24
      %v804 = vpop.permute.xlu0 %803
      %805 = vrot.lane.b32.xlu0 %v308, 24
      %v806 = vpop.permute.xlu0 %805
      %807 = vrot.lane.b32.xlu0 %v309, 24
      %v808 = vpop.permute.xlu0 %807
      %809 = vrot.lane.b32.xlu0 %v310, 24
      %v810 = vpop.permute.xlu0 %809
      %811 = vrot.lane.b32.xlu0 %v311, 24
      %v812 = vpop.permute.xlu0 %811
      %813 = vrot.lane.b32.xlu0 %v312, 24
      %v814 = vpop.permute.xlu0 %813
      %815 = vrot.lane.b32.xlu0 %v313, 24
      %v816 = vpop.permute.xlu0 %815
      %817 = vrot.lane.b32.xlu0 %v314, 24
      %v818 = vpop.permute.xlu0 %817
      %819 = vrot.lane.b32.xlu0 %v315, 24
      %v820 = vpop.permute.xlu0 %819
      %821 = vrot.lane.b32.xlu0 %v316, 24
      %v822 = vpop.permute.xlu0 %821
      %823 = vrot.lane.b32.xlu0 %v675, 24
      %v824 = vpop.permute.xlu0 %823
      %825 = vrot.lane.b32.xlu0 %v794, 24
      %v826 = vpop.permute.xlu0 %825
      %v828 = vunpack.c.l.b16 %v236
      %v829 = vpack.c.b16 %v828, %v828
      %v831 = vshrl.u32 %v794, 16
      %v833 = vshll.u32 %v794, 16
      %v835 = vrot.slane %v833, 1
      %v836 = vor.u32 %v831, %v835
      %v838 = vshll.u32 %v829, 16
      %v840 = vrot.slane %v838, 1
      %v841 = vsel %vm365, %v836, %v840
      %842 = vrot.lane.b32.xlu0 %v401, 28
      %v843 = vpop.permute.xlu0 %842
      %844 = vrot.lane.b32.xlu0 %v413, 28
      %v845 = vpop.permute.xlu0 %844
      %846 = vrot.lane.b32.xlu0 %v425, 28
      %v847 = vpop.permute.xlu0 %846
      %848 = vrot.lane.b32.xlu0 %v437, 28
      %v849 = vpop.permute.xlu0 %848
      %850 = vrot.lane.b32.xlu0 %v449, 28
      %v851 = vpop.permute.xlu0 %850
      %852 = vrot.lane.b32.xlu0 %v461, 28
      %v853 = vpop.permute.xlu0 %852
      %854 = vrot.lane.b32.xlu0 %v473, 28
      %v855 = vpop.permute.xlu0 %854
      %856 = vrot.lane.b32.xlu0 %v485, 28
      %v857 = vpop.permute.xlu0 %856
      %858 = vrot.lane.b32.xlu0 %v497, 28
      %v859 = vpop.permute.xlu0 %858
      %860 = vrot.lane.b32.xlu0 %v509, 28
      %v861 = vpop.permute.xlu0 %860
      %862 = vrot.lane.b32.xlu0 %v521, 28
      %v863 = vpop.permute.xlu0 %862
      %864 = vrot.lane.b32.xlu0 %v533, 28
      %v865 = vpop.permute.xlu0 %864
      %866 = vrot.lane.b32.xlu0 %v545, 28
      %v867 = vpop.permute.xlu0 %866
      %868 = vrot.lane.b32.xlu0 %v557, 28
      %v869 = vpop.permute.xlu0 %868
      %870 = vrot.lane.b32.xlu0 %v722, 28
      %v871 = vpop.permute.xlu0 %870
      %872 = vrot.lane.b32.xlu0 %v841, 28
      %v873 = vpop.permute.xlu0 %872
      %v874 = vrot.slane %v794, 1
      %v875 = vrot.slane %v829, 1
      %v876 = vsel %vm590, %v874, %v875
      %877 = vrot.lane.b32.xlu0 %v599, 32
      %v878 = vpop.permute.xlu0 %877
      %879 = vrot.lane.b32.xlu0 %v602, 32
      %v880 = vpop.permute.xlu0 %879
      %881 = vrot.lane.b32.xlu0 %v605, 32
      %v882 = vpop.permute.xlu0 %881
      %883 = vrot.lane.b32.xlu0 %v608, 32
      %v884 = vpop.permute.xlu0 %883
      %885 = vrot.lane.b32.xlu0 %v611, 32
      %v886 = vpop.permute.xlu0 %885
      %887 = vrot.lane.b32.xlu0 %v614, 32
      %v888 = vpop.permute.xlu0 %887
      %889 = vrot.lane.b32.xlu0 %v617, 32
      %v890 = vpop.permute.xlu0 %889
      %891 = vrot.lane.b32.xlu0 %v620, 32
      %v892 = vpop.permute.xlu0 %891
      %893 = vrot.lane.b32.xlu0 %v623, 32
      %v894 = vpop.permute.xlu0 %893
      %895 = vrot.lane.b32.xlu0 %v626, 32
      %v896 = vpop.permute.xlu0 %895
      %897 = vrot.lane.b32.xlu0 %v629, 32
      %v898 = vpop.permute.xlu0 %897
      %899 = vrot.lane.b32.xlu0 %v632, 32
      %v900 = vpop.permute.xlu0 %899
      %901 = vrot.lane.b32.xlu0 %v635, 32
      %v902 = vpop.permute.xlu0 %901
      %903 = vrot.lane.b32.xlu0 %v638, 32
      %v904 = vpop.permute.xlu0 %903
      %905 = vrot.lane.b32.xlu0 %v757, 32
      %v906 = vpop.permute.xlu0 %905
      %907 = vrot.lane.b32.xlu0 %v876, 32
      %v908 = vpop.permute.xlu0 %907
      %vm909 = vcmask 31744
      %v911 = vsel %vm909, %v301, %v559
      %v913 = vsel %vm909, %v302, %v561
      %v915 = vsel %vm909, %v303, %v563
      %v917 = vsel %vm909, %v304, %v565
      %v919 = vsel %vm909, %v305, %v567
      %v921 = vsel %vm909, %v306, %v569
      %v923 = vsel %vm909, %v307, %v571
      %v925 = vsel %vm909, %v308, %v573
      %v927 = vsel %vm909, %v309, %v575
      %v929 = vsel %vm909, %v310, %v577
      %v931 = vsel %vm909, %v311, %v579
      %v933 = vsel %vm909, %v312, %v581
      %v935 = vsel %vm909, %v313, %v583
      %v937 = vsel %vm909, %v314, %v585
      %v939 = vsel %vm909, %v315, %v587
      %v941 = vsel %vm909, %v316, %v589
      %vm942 = vcmask 64512
      %v944 = vsel %vm942, %v911, %v640
      %v946 = vsel %vm942, %v913, %v642
      %v948 = vsel %vm942, %v915, %v644
      %v950 = vsel %vm942, %v917, %v646
      %v952 = vsel %vm942, %v919, %v648
      %v954 = vsel %vm942, %v921, %v650
      %v956 = vsel %vm942, %v923, %v652
      %v958 = vsel %vm942, %v925, %v654
      %v960 = vsel %vm942, %v927, %v656
      %v962 = vsel %vm942, %v929, %v658
      %v964 = vsel %vm942, %v931, %v660
      %v966 = vsel %vm942, %v933, %v662
      %v968 = vsel %vm942, %v935, %v664
      %v970 = vsel %vm942, %v937, %v666
      %v972 = vsel %vm942, %v939, %v668
      %v974 = vsel %vm942, %v941, %v670
      %vm975 = vcmask 97280
      %v977 = vsel %vm975, %v944, %v677
      %v979 = vsel %vm975, %v946, %v679
      %v981 = vsel %vm975, %v948, %v681
      %v983 = vsel %vm975, %v950, %v683
      %v985 = vsel %vm975, %v952, %v685
      %v987 = vsel %vm975, %v954, %v687
      %v989 = vsel %vm975, %v956, %v689
      %v991 = vsel %vm975, %v958, %v691
      %v993 = vsel %vm975, %v960, %v693
      %v995 = vsel %vm975, %v962, %v695
      %v997 = vsel %vm975, %v964, %v697
      %v999 = vsel %vm975, %v966, %v699
      %v1001 = vsel %vm975, %v968, %v701
      %v1003 = vsel %vm975, %v970, %v703
      %v1005 = vsel %vm975, %v972, %v705
      %v1007 = vsel %vm975, %v974, %v707
      %vm1008 = vcmask 130048
      %v1010 = vsel %vm1008, %v977, %v724
      %v1012 = vsel %vm1008, %v979, %v726
      %v1014 = vsel %vm1008, %v981, %v728
      %v1016 = vsel %vm1008, %v983, %v730
      %v1018 = vsel %vm1008, %v985, %v732
      %v1020 = vsel %vm1008, %v987, %v734
      %v1022 = vsel %vm1008, %v989, %v736
      %v1024 = vsel %vm1008, %v991, %v738
      %v1026 = vsel %vm1008, %v993, %v740
      %v1028 = vsel %vm1008, %v995, %v742
      %v1030 = vsel %vm1008, %v997, %v744
      %v1032 = vsel %vm1008, %v999, %v746
      %v1034 = vsel %vm1008, %v1001, %v748
      %v1036 = vsel %vm1008, %v1003, %v750
      %v1038 = vsel %vm1008, %v1005, %v752
      %v1040 = vsel %vm1008, %v1007, %v754
      %vm1041 = vcmask 162816
      %v1043 = vsel %vm1041, %v1010, %v759
      %v1045 = vsel %vm1041, %v1012, %v761
      %v1047 = vsel %vm1041, %v1014, %v763
      %v1049 = vsel %vm1041, %v1016, %v765
      %v1051 = vsel %vm1041, %v1018, %v767
      %v1053 = vsel %vm1041, %v1020, %v769
      %v1055 = vsel %vm1041, %v1022, %v771
      %v1057 = vsel %vm1041, %v1024, %v773
      %v1059 = vsel %vm1041, %v1026, %v775
      %v1061 = vsel %vm1041, %v1028, %v777
      %v1063 = vsel %vm1041, %v1030, %v779
      %v1065 = vsel %vm1041, %v1032, %v781
      %v1067 = vsel %vm1041, %v1034, %v783
      %v1069 = vsel %vm1041, %v1036, %v785
      %v1071 = vsel %vm1041, %v1038, %v787
      %v1073 = vsel %vm1041, %v1040, %v789
      %vm1074 = vcmask 195584
      %v1076 = vsel %vm1074, %v1043, %v796
      %v1078 = vsel %vm1074, %v1045, %v798
      %v1080 = vsel %vm1074, %v1047, %v800
      %v1082 = vsel %vm1074, %v1049, %v802
      %v1084 = vsel %vm1074, %v1051, %v804
      %v1086 = vsel %vm1074, %v1053, %v806
      %v1088 = vsel %vm1074, %v1055, %v808
      %v1090 = vsel %vm1074, %v1057, %v810
      %v1092 = vsel %vm1074, %v1059, %v812
      %v1094 = vsel %vm1074, %v1061, %v814
      %v1096 = vsel %vm1074, %v1063, %v816
      %v1098 = vsel %vm1074, %v1065, %v818
      %v1100 = vsel %vm1074, %v1067, %v820
      %v1102 = vsel %vm1074, %v1069, %v822
      %v1104 = vsel %vm1074, %v1071, %v824
      %v1106 = vsel %vm1074, %v1073, %v826
      %vm1107 = vcmask 228352
      %v1109 = vsel %vm1107, %v1076, %v843
      %v1111 = vsel %vm1107, %v1078, %v845
      %v1113 = vsel %vm1107, %v1080, %v847
      %v1115 = vsel %vm1107, %v1082, %v849
      %v1117 = vsel %vm1107, %v1084, %v851
      %v1119 = vsel %vm1107, %v1086, %v853
      %v1121 = vsel %vm1107, %v1088, %v855
      %v1123 = vsel %vm1107, %v1090, %v857
      %v1125 = vsel %vm1107, %v1092, %v859
      %v1127 = vsel %vm1107, %v1094, %v861
      %v1129 = vsel %vm1107, %v1096, %v863
      %v1131 = vsel %vm1107, %v1098, %v865
      %v1133 = vsel %vm1107, %v1100, %v867
      %v1135 = vsel %vm1107, %v1102, %v869
      %v1137 = vsel %vm1107, %v1104, %v871
      %v1139 = vsel %vm1107, %v1106, %v873
      %vm1140 = vcmask 261120
      %v1142 = vsel %vm1140, %v1109, %v878
      %v1144 = vsel %vm1140, %v1111, %v880
      %v1146 = vsel %vm1140, %v1113, %v882
      %v1148 = vsel %vm1140, %v1115, %v884
      %v1150 = vsel %vm1140, %v1117, %v886
      %v1152 = vsel %vm1140, %v1119, %v888
      %v1154 = vsel %vm1140, %v1121, %v890
      %v1156 = vsel %vm1140, %v1123, %v892
      %v1158 = vsel %vm1140, %v1125, %v894
      %v1160 = vsel %vm1140, %v1127, %v896
      %v1162 = vsel %vm1140, %v1129, %v898
      %v1164 = vsel %vm1140, %v1131, %v900
      %v1166 = vsel %vm1140, %v1133, %v902
      %v1168 = vsel %vm1140, %v1135, %v904
      %v1170 = vsel %vm1140, %v1137, %v906
      %v1172 = vsel %vm1140, %v1139, %v908
      %v1173 = vld [vmem:[%s1] sm:$0xf]
      %v1174 = vld [vmem:[%s1 + $0x4] sm:$0xf]
      %v1175 = vld [vmem:[%s1 + $0x8] sm:$0xf]
      %v1176 = vld [vmem:[%s1 + $0xc] sm:$0xf]
      %v1177 = vld [vmem:[%s1 + $0x10] sm:$0x3]
      %v1183 = vunpack.c.l.b16 %v1173
      %v1184 = vunpack.c.l.b16 %v1174
      %v1185 = vunpack.c.l.b16 %v1175
      %v1186 = vunpack.c.l.b16 %v1176
      %v1187 = vunpack.c.l.b16 %v1177
      %v1188 = vpack.c.b16 %v1184, %v1183
      %v1189 = vpack.c.b16 %v1186, %v1185
      %v1190 = vpack.c.b16 %v1187, %v1187
      %vm1193 = vcmask 293888
      %v1194 = vsel %vm1193, %v1142, 0
      %v1196 = vsel %vm1193, %v1144, 0
      %v1198 = vsel %vm1193, %v1146, 0
      %v1200 = vsel %vm1193, %v1148, 0
      %v1202 = vsel %vm1193, %v1150, 0
      %v1204 = vsel %vm1193, %v1152, 0
      %v1206 = vsel %vm1193, %v1154, 0
      %v1208 = vsel %vm1193, %v1156, 0
      %v1210 = vsel %vm1193, %v1158, 0
      %v1212 = vsel %vm1193, %v1160, 0
      %v1214 = vsel %vm1193, %v1162, 0
      %v1216 = vsel %vm1193, %v1164, 0
      %v1218 = vsel %vm1193, %v1166, 0
      %v1220 = vsel %vm1193, %v1168, 0
      %v1222 = vsel %vm1193, %v1170, 0
      %v1224 = vsel %vm1193, %v1172, 0
      %vm1226 = vcmask 1041408
      %v1228 = vsel %vm1226, %v1190, 0
      %1230 = vmatpush.bf16.msra.mxu0 0
      %1231 = vmatpush.bf16.msra.mxu0 0
      %1232 = vmatpush.bf16.msra.mxu0 0
      %1233 = vmatpush.bf16.msra.mxu0 0
      %1234 = vmatpush.bf16.msra.mxu0 0
      %1235 = vmatpush.bf16.msra.mxu0 %v1228
      %1236 = vmatpush.bf16.msra.mxu0 %v1189
      %1237 = vmatpush.bf16.msra.mxu0 %v1188
      %1238 = vmatmul.bf16.gmra.mxu0 %v1194
      %v1239 = vpop.f32.mrf.mxu0
      %v1240 = vadd.f32 0.0, %v1239
      %v1241 = vpop.f32.mrf.mxu0
      %v1242 = vadd.f32 0.0, %v1241
      %1243 = vmatmul.bf16.gmra.mxu0 %v1196
      %v1244 = vpop.f32.mrf.mxu0
      %v1245 = vadd.f32 0.0, %v1244
      %v1246 = vpop.f32.mrf.mxu0
      %v1247 = vadd.f32 0.0, %v1246
      %1248 = vmatmul.bf16.gmra.mxu0 %v1198
      %v1249 = vpop.f32.mrf.mxu0
      %v1250 = vadd.f32 0.0, %v1249
      %v1251 = vpop.f32.mrf.mxu0
      %v1252 = vadd.f32 0.0, %v1251
      %1253 = vmatmul.bf16.gmra.mxu0 %v1200
      %v1254 = vpop.f32.mrf.mxu0
      %v1255 = vadd.f32 0.0, %v1254
      %v1256 = vpop.f32.mrf.mxu0
      %v1257 = vadd.f32 0.0, %v1256
      %1258 = vmatmul.bf16.gmra.mxu0 %v1202
      %v1259 = vpop.f32.mrf.mxu0
      %v1260 = vadd.f32 0.0, %v1259
      %v1261 = vpop.f32.mrf.mxu0
      %v1262 = vadd.f32 0.0, %v1261
      %1263 = vmatmul.bf16.gmra.mxu0 %v1204
      %v1264 = vpop.f32.mrf.mxu0
      %v1265 = vadd.f32 0.0, %v1264
      %v1266 = vpop.f32.mrf.mxu0
      %v1267 = vadd.f32 0.0, %v1266
      %1268 = vmatmul.bf16.gmra.mxu0 %v1206
      %v1269 = vpop.f32.mrf.mxu0
      %v1270 = vadd.f32 0.0, %v1269
      %v1271 = vpop.f32.mrf.mxu0
      %v1272 = vadd.f32 0.0, %v1271
      %1273 = vmatmul.bf16.gmra.mxu0 %v1208
      %v1274 = vpop.f32.mrf.mxu0
      %v1275 = vadd.f32 0.0, %v1274
      %v1276 = vpop.f32.mrf.mxu0
      %v1277 = vadd.f32 0.0, %v1276
      %1278 = vmatmul.bf16.gmra.mxu0 %v1210
      %v1279 = vpop.f32.mrf.mxu0
      %v1280 = vadd.f32 0.0, %v1279
      %v1281 = vpop.f32.mrf.mxu0
      %v1282 = vadd.f32 0.0, %v1281
      %1283 = vmatmul.bf16.gmra.mxu0 %v1212
      %v1284 = vpop.f32.mrf.mxu0
      %v1285 = vadd.f32 0.0, %v1284
      %v1286 = vpop.f32.mrf.mxu0
      %v1287 = vadd.f32 0.0, %v1286
      %1288 = vmatmul.bf16.gmra.mxu0 %v1214
      %v1289 = vpop.f32.mrf.mxu0
      %v1290 = vadd.f32 0.0, %v1289
      %v1291 = vpop.f32.mrf.mxu0
      %v1292 = vadd.f32 0.0, %v1291
      %1293 = vmatmul.bf16.gmra.mxu0 %v1216
      %v1294 = vpop.f32.mrf.mxu0
      %v1295 = vadd.f32 0.0, %v1294
      %v1296 = vpop.f32.mrf.mxu0
      %v1297 = vadd.f32 0.0, %v1296
      %1298 = vmatmul.bf16.gmra.mxu0 %v1218
      %v1299 = vpop.f32.mrf.mxu0
      %v1300 = vadd.f32 0.0, %v1299
      %v1301 = vpop.f32.mrf.mxu0
      %v1302 = vadd.f32 0.0, %v1301
      %1303 = vmatmul.bf16.gmra.mxu0 %v1220
      %v1304 = vpop.f32.mrf.mxu0
      %v1305 = vadd.f32 0.0, %v1304
      %v1306 = vpop.f32.mrf.mxu0
      %v1307 = vadd.f32 0.0, %v1306
      %1308 = vmatmul.bf16.gmra.mxu0 %v1222
      %v1309 = vpop.f32.mrf.mxu0
      %v1310 = vadd.f32 0.0, %v1309
      %v1311 = vpop.f32.mrf.mxu0
      %v1312 = vadd.f32 0.0, %v1311
      %1313 = vmatmul.bf16.gmra.mxu0 %v1224
      %v1314 = vpop.f32.mrf.mxu0
      %v1315 = vadd.f32 0.0, %v1314
      %v1316 = vpop.f32.mrf.mxu0
      %v1317 = vadd.f32 0.0, %v1316
      %1318 = vdwg.mxu0
      %1319 = vst.msk [vmem:[%s177] sm:$0xff] %vm909, %v1240
      %1320 = vst.msk [vmem:[%s177 + $0x8] sm:$0xff] %vm909, %v1242
      %1321 = vst.msk [vmem:[%s177 + $0x10] sm:$0xff] %vm909, %v1245
      %1322 = vst.msk [vmem:[%s177 + $0x18] sm:$0xff] %vm909, %v1247
      %1323 = vst.msk [vmem:[%s177 + $0x20] sm:$0xff] %vm909, %v1250
      %1324 = vst.msk [vmem:[%s177 + $0x28] sm:$0xff] %vm909, %v1252
      %1325 = vst.msk [vmem:[%s177 + $0x30] sm:$0xff] %vm909, %v1255
      %1326 = vst.msk [vmem:[%s177 + $0x38] sm:$0xff] %vm909, %v1257
      %1327 = vst.msk [vmem:[%s177 + $0x40] sm:$0xff] %vm909, %v1260
      %1328 = vst.msk [vmem:[%s177 + $0x48] sm:$0xff] %vm909, %v1262
      %1329 = vst.msk [vmem:[%s177 + $0x50] sm:$0xff] %vm909, %v1265
      %1330 = vst.msk [vmem:[%s177 + $0x58] sm:$0xff] %vm909, %v1267
      %1331 = vst.msk [vmem:[%s177 + $0x60] sm:$0xff] %vm909, %v1270
      %1332 = vst.msk [vmem:[%s177 + $0x68] sm:$0xff] %vm909, %v1272
      %1333 = vst.msk [vmem:[%s177 + $0x70] sm:$0xff] %vm909, %v1275
      %1334 = vst.msk [vmem:[%s177 + $0x78] sm:$0xff] %vm909, %v1277
      %1335 = vst.msk [vmem:[%s177 + $0x80] sm:$0xff] %vm909, %v1280
      %1336 = vst.msk [vmem:[%s177 + $0x88] sm:$0xff] %vm909, %v1282
      %1337 = vst.msk [vmem:[%s177 + $0x90] sm:$0xff] %vm909, %v1285
      %1338 = vst.msk [vmem:[%s177 + $0x98] sm:$0xff] %vm909, %v1287
      %1339 = vst.msk [vmem:[%s177 + $0xa0] sm:$0xff] %vm909, %v1290
      %1340 = vst.msk [vmem:[%s177 + $0xa8] sm:$0xff] %vm909, %v1292
      %1341 = vst.msk [vmem:[%s177 + $0xb0] sm:$0xff] %vm909, %v1295
      %1342 = vst.msk [vmem:[%s177 + $0xb8] sm:$0xff] %vm909, %v1297
      %1343 = vst.msk [vmem:[%s177 + $0xc0] sm:$0xff] %vm909, %v1300
      %1344 = vst.msk [vmem:[%s177 + $0xc8] sm:$0xff] %vm909, %v1302
      %1345 = vst.msk [vmem:[%s177 + $0xd0] sm:$0xff] %vm909, %v1305
      %1346 = vst.msk [vmem:[%s177 + $0xd8] sm:$0xff] %vm909, %v1307
      %1347 = vst.msk [vmem:[%s177 + $0xe0] sm:$0xff] %vm909, %v1310
      %1348 = vst.msk [vmem:[%s177 + $0xe8] sm:$0xff] %vm909, %v1312
      %1349 = vst.msk [vmem:[%s177 + $0xf0] sm:$0xff] %vm909, %v1315
      %1350 = vst.msk [vmem:[%s177 + $0xf8] sm:$0xff] %vm909, %v1317
      %v1351 = vsel %vm909, %v1240, 0.0
      %v1352 = vsel %vm909, %v1242, 0.0
      %v1353 = vadd.f32 %v1351, %v1352
      %v1354 = vsel %vm909, %v1245, 0.0
      %v1355 = vadd.f32 %v1353, %v1354
      %v1356 = vsel %vm909, %v1247, 0.0
      %v1357 = vadd.f32 %v1355, %v1356
      %v1358 = vsel %vm909, %v1250, 0.0
      %v1359 = vadd.f32 %v1357, %v1358
      %v1360 = vsel %vm909, %v1252, 0.0
      %v1361 = vadd.f32 %v1359, %v1360
      %v1362 = vsel %vm909, %v1255, 0.0
      %v1363 = vadd.f32 %v1361, %v1362
      %v1364 = vsel %vm909, %v1257, 0.0
      %v1365 = vadd.f32 %v1363, %v1364
      %v1366 = vsel %vm909, %v1260, 0.0
      %v1367 = vadd.f32 %v1365, %v1366
      %v1368 = vsel %vm909, %v1262, 0.0
      %v1369 = vadd.f32 %v1367, %v1368
      %v1370 = vsel %vm909, %v1265, 0.0
      %v1371 = vadd.f32 %v1369, %v1370
      %v1372 = vsel %vm909, %v1267, 0.0
      %v1373 = vadd.f32 %v1371, %v1372
      %v1374 = vsel %vm909, %v1270, 0.0
      %v1375 = vadd.f32 %v1373, %v1374
      %v1376 = vsel %vm909, %v1272, 0.0
      %v1377 = vadd.f32 %v1375, %v1376
      %v1378 = vsel %vm909, %v1275, 0.0
      %v1379 = vadd.f32 %v1377, %v1378
      %v1380 = vsel %vm909, %v1277, 0.0
      %v1381 = vadd.f32 %v1379, %v1380
      %v1382 = vsel %vm909, %v1280, 0.0
      %v1383 = vadd.f32 %v1381, %v1382
      %v1384 = vsel %vm909, %v1282, 0.0
      %v1385 = vadd.f32 %v1383, %v1384
      %v1386 = vsel %vm909, %v1285, 0.0
      %v1387 = vadd.f32 %v1385, %v1386
      %v1388 = vsel %vm909, %v1287, 0.0
      %v1389 = vadd.f32 %v1387, %v1388
      %v1390 = vsel %vm909, %v1290, 0.0
      %v1391 = vadd.f32 %v1389, %v1390
      %v1392 = vsel %vm909, %v1292, 0.0
      %v1393 = vadd.f32 %v1391, %v1392
      %v1394 = vsel %vm909, %v1295, 0.0
      %v1395 = vadd.f32 %v1393, %v1394
      %v1396 = vsel %vm909, %v1297, 0.0
      %v1397 = vadd.f32 %v1395, %v1396
      %v1398 = vsel %vm909, %v1300, 0.0
      %v1399 = vadd.f32 %v1397, %v1398
      %v1400 = vsel %vm909, %v1302, 0.0
      %v1401 = vadd.f32 %v1399, %v1400
      %v1402 = vsel %vm909, %v1305, 0.0
      %v1403 = vadd.f32 %v1401, %v1402
      %v1404 = vsel %vm909, %v1307, 0.0
      %v1405 = vadd.f32 %v1403, %v1404
      %v1406 = vsel %vm909, %v1310, 0.0
      %v1407 = vadd.f32 %v1405, %v1406
      %v1408 = vsel %vm909, %v1312, 0.0
      %v1409 = vadd.f32 %v1407, %v1408
      %v1410 = vsel %vm909, %v1315, 0.0
      %v1411 = vadd.f32 %v1409, %v1410
      %v1412 = vsel %vm909, %v1317, 0.0
      %v1413 = vadd.f32 %v1411, %v1412
      %v1414 = vrot.slane %v1413, 4
      %v1415 = vadd.f32 %v1413, %v1414
      %v1416 = vrot.slane %v1415, 2
      %v1417 = vadd.f32 %v1415, %v1416
      %v1418 = vrot.slane %v1417, 1
      %v1419 = vadd.f32 %v1417, %v1418
      %v1420 = vmul.f32 %v1240, %v1240
      %v1421 = vmul.f32 %v1242, %v1242
      %v1422 = vmul.f32 %v1245, %v1245
      %v1423 = vmul.f32 %v1247, %v1247
      %v1424 = vmul.f32 %v1250, %v1250
      %v1425 = vmul.f32 %v1252, %v1252
      %v1426 = vmul.f32 %v1255, %v1255
      %v1427 = vmul.f32 %v1257, %v1257
      %v1428 = vmul.f32 %v1260, %v1260
      %v1429 = vmul.f32 %v1262, %v1262
      %v1430 = vmul.f32 %v1265, %v1265
      %v1431 = vmul.f32 %v1267, %v1267
      %v1432 = vmul.f32 %v1270, %v1270
      %v1433 = vmul.f32 %v1272, %v1272
      %v1434 = vmul.f32 %v1275, %v1275
      %v1435 = vmul.f32 %v1277, %v1277
      %v1436 = vmul.f32 %v1280, %v1280
      %v1437 = vmul.f32 %v1282, %v1282
      %v1438 = vmul.f32 %v1285, %v1285
      %v1439 = vmul.f32 %v1287, %v1287
      %v1440 = vmul.f32 %v1290, %v1290
      %v1441 = vmul.f32 %v1292, %v1292
      %v1442 = vmul.f32 %v1295, %v1295
      %v1443 = vmul.f32 %v1297, %v1297
      %v1444 = vmul.f32 %v1300, %v1300
      %v1445 = vmul.f32 %v1302, %v1302
      %v1446 = vmul.f32 %v1305, %v1305
      %v1447 = vmul.f32 %v1307, %v1307
      %v1448 = vmul.f32 %v1310, %v1310
      %v1449 = vmul.f32 %v1312, %v1312
      %v1450 = vmul.f32 %v1315, %v1315
      %v1451 = vmul.f32 %v1317, %v1317
      %v1452 = vsel %vm909, %v1420, 0.0
      %v1453 = vsel %vm909, %v1421, 0.0
      %v1454 = vadd.f32 %v1452, %v1453
      %v1455 = vsel %vm909, %v1422, 0.0
      %v1456 = vadd.f32 %v1454, %v1455
      %v1457 = vsel %vm909, %v1423, 0.0
      %v1458 = vadd.f32 %v1456, %v1457
      %v1459 = vsel %vm909, %v1424, 0.0
      %v1460 = vadd.f32 %v1458, %v1459
      %v1461 = vsel %vm909, %v1425, 0.0
      %v1462 = vadd.f32 %v1460, %v1461
      %v1463 = vsel %vm909, %v1426, 0.0
      %v1464 = vadd.f32 %v1462, %v1463
      %v1465 = vsel %vm909, %v1427, 0.0
      %v1466 = vadd.f32 %v1464, %v1465
      %v1467 = vsel %vm909, %v1428, 0.0
      %v1468 = vadd.f32 %v1466, %v1467
      %v1469 = vsel %vm909, %v1429, 0.0
      %v1470 = vadd.f32 %v1468, %v1469
      %v1471 = vsel %vm909, %v1430, 0.0
      %v1472 = vadd.f32 %v1470, %v1471
      %v1473 = vsel %vm909, %v1431, 0.0
      %v1474 = vadd.f32 %v1472, %v1473
      %v1475 = vsel %vm909, %v1432, 0.0
      %v1476 = vadd.f32 %v1474, %v1475
      %v1477 = vsel %vm909, %v1433, 0.0
      %v1478 = vadd.f32 %v1476, %v1477
      %v1479 = vsel %vm909, %v1434, 0.0
      %v1480 = vadd.f32 %v1478, %v1479
      %v1481 = vsel %vm909, %v1435, 0.0
      %v1482 = vadd.f32 %v1480, %v1481
      %v1483 = vsel %vm909, %v1436, 0.0
      %v1484 = vadd.f32 %v1482, %v1483
      %v1485 = vsel %vm909, %v1437, 0.0
      %v1486 = vadd.f32 %v1484, %v1485
      %v1487 = vsel %vm909, %v1438, 0.0
      %v1488 = vadd.f32 %v1486, %v1487
      %v1489 = vsel %vm909, %v1439, 0.0
      %v1490 = vadd.f32 %v1488, %v1489
      %v1491 = vsel %vm909, %v1440, 0.0
      %v1492 = vadd.f32 %v1490, %v1491
      %v1493 = vsel %vm909, %v1441, 0.0
      %v1494 = vadd.f32 %v1492, %v1493
      %v1495 = vsel %vm909, %v1442, 0.0
      %v1496 = vadd.f32 %v1494, %v1495
      %v1497 = vsel %vm909, %v1443, 0.0
      %v1498 = vadd.f32 %v1496, %v1497
      %v1499 = vsel %vm909, %v1444, 0.0
      %v1500 = vadd.f32 %v1498, %v1499
      %v1501 = vsel %vm909, %v1445, 0.0
      %v1502 = vadd.f32 %v1500, %v1501
      %v1503 = vsel %vm909, %v1446, 0.0
      %v1504 = vadd.f32 %v1502, %v1503
      %v1505 = vsel %vm909, %v1447, 0.0
      %v1506 = vadd.f32 %v1504, %v1505
      %v1507 = vsel %vm909, %v1448, 0.0
      %v1508 = vadd.f32 %v1506, %v1507
      %v1509 = vsel %vm909, %v1449, 0.0
      %v1510 = vadd.f32 %v1508, %v1509
      %v1511 = vsel %vm909, %v1450, 0.0
      %v1512 = vadd.f32 %v1510, %v1511
      %v1513 = vsel %vm909, %v1451, 0.0
      %v1514 = vadd.f32 %v1512, %v1513
      %v1515 = vrot.slane %v1514, 4
      %v1516 = vadd.f32 %v1514, %v1515
      %v1517 = vrot.slane %v1516, 2
      %v1518 = vadd.f32 %v1516, %v1517
      %v1519 = vrot.slane %v1518, 1
      %v1520 = vadd.f32 %v1518, %v1519
      %vm1521 = vcmask 1040384
      %v1522 = vsel %vm1521, %v1419, %v1520
      %vm1523 = vcmask 25600
      %1524 = vst.msk [vmem:[%s181] sm:$0x3] %vm1523, %v1522
      %p1525 = scmp.lt.s32.totalorder %s15, 1
      %s1526 = scalar_select %p1525, %s15, 1
      %s1527 = smul.addr %s1526, 32
      %s1528 = smul.addr %s1527, 8
      %s1529 = scalar_lea.vmem %s2, %s1528
      %p1530 = scmp.lt.s32.totalorder %s15, 1
      %s1531 = scalar_select %p1530, %s15, 1
      %s1532 = smul.addr %s1531, 2
      %s1533 = scalar_lea.vmem %s3, %s1532
      // Predicated region
      $region29: #{resnet_basic_block.3} parent=27 // pred_check
        %p1534 = pneg %p80
      $region30: #{resnet_basic_block.3} parent=27 // pred_check_branch
        %1536 = sbr.rel (%p1534) target = $region32
      $region31: #{resnet_basic_block.3} parent=27 // pred_region
        _
      $region32: #{resnet_basic_block.3} parent=27 // pred_fallthru
        _
      // Predicated region
      $region33: #{resnet_basic_block.3} parent=27 // pred_check
        %p1537 = pneg %p106
      $region34: #{resnet_basic_block.3} parent=27 // pred_check_branch
        %1539 = sbr.rel (%p1537) target = $region36
      $region35: #{resnet_basic_block.3} parent=27 // pred_region
        _
      $region36: #{resnet_basic_block.3} parent=27 // pred_fallthru
        _
    $region28: #{resnet_basic_block.3} parent=5 // pred_fallthru
      _
    %p1540 = scmp.le.s32.totalorder 2, %s10
    // Predicated region
    $region37: #{resnet_basic_block.3} parent=5 // pred_check
      %p1541 = pneg %p1540
    $region38: #{resnet_basic_block.3} parent=5 // pred_check_branch
      %1543 = sbr.rel (%p1541) target = $region40
    $region39: #{resnet_basic_block.3} parent=5 // pred_region
      %s1544 = ssub.s32 %s10, 2
      // Predicated region
      $region41: #{resnet_basic_block.3} parent=39 // pred_check
        %p1545 = pneg %p86
      $region42: #{resnet_basic_block.3} parent=39 // pred_check_branch
        %1547 = sbr.rel (%p1545) target = $region44
      $region43: #{resnet_basic_block.3} parent=39 // pred_region
        %p1548 = scmp.lt.s32.totalorder %s16, 1
        %s1549 = scalar_select %p1548, %s16, 1
        %s1550 = smul.addr %s1549, 32
        %s1551 = smul.addr %s1550, 8
        %s1552 = scalar_lea.vmem %s2, %s1551
      $region44: #{resnet_basic_block.3} parent=39 // pred_fallthru
        _
      // Predicated region
      $region45: #{resnet_basic_block.3} parent=39 // pred_check
        %p1553 = pneg %p112
      $region46: #{resnet_basic_block.3} parent=39 // pred_check_branch
        %1555 = sbr.rel (%p1553) target = $region48
      $region47: #{resnet_basic_block.3} parent=39 // pred_region
        %p1556 = scmp.lt.s32.totalorder %s16, 1
        %s1557 = scalar_select %p1556, %s16, 1
        %s1558 = smul.addr %s1557, 2
        %s1559 = scalar_lea.vmem %s3, %s1558
      $region48: #{resnet_basic_block.3} parent=39 // pred_fallthru
        _
    $region40: #{resnet_basic_block.3} parent=5 // pred_fallthru
      _
  $region6: #{resnet_basic_block.3} parent=0 // loop_footer
    %s14 = sadd.s32 1, %s10
  $region7: #{resnet_basic_block.3} parent=0 // loop_footer_branch
    %9 = sbr.rel target = $region3
  $region8: #{resnet_basic_block.3} parent=0 // loop_exit
    _

// kernel: resnet_basic_block.4
$region0: #{resnet_basic_block.4}
  #allocation0 [shape = 'u32[]', space=smem, size = 0x4, offset = 0x4, fixed_abs, tag = 'smem constant byte address 0x4 - core index']
  #allocation1 [shape = 'u32[72,128]{1,0:T(1,128)}', space=vmem, size = 0x9000, scoped, tag = 'internal scratch']
  #allocation2 [shape = 'bf16[18,18,4]{2,1,0:T(8,128)(2,1)}', space=vmem, size = 0x1b000, scoped, tag = 'scratch operand']
  %s0 = inlined_call_operand.vmem [shape: f32[2,2,4], index: 0, kind: input, shape index: {}]
  %s1 = inlined_call_operand.vmem [shape: f32[1,4], index: 1, kind: input, shape index: {}]
  %s2 = inlined_call_operand.vmem [shape: f32[1,4], index: 2, kind: input, shape index: {}]
  %s3 = inlined_call_operand.vmem [shape: f32[2,16,16,4], index: 3, kind: input, shape index: {}]
  %s4 = inlined_call_operand.vmem [shape: bf16[36,4], index: 4, kind: input, shape index: {}]
  %s5 = inlined_call_operand.vmem [shape: f32[2,256,4], index: 5, kind: output, shape index: {0}]
  %s6 = inlined_call_operand.vmem [shape: f32[2,2,4], index: 6, kind: output, shape index: {1}]
  %7 = xla_tuple %s5, %s6
  %s8 = sld [smem:[#allocation0]]
  $region61: #{resnet_basic_block.4} parent=0
    _
  %s10 = ssub.s32 1, %s8
  %s11 = scalar_select 0, %s10, %s8
  loop: start=0, step=1, limit=4
  $region2: #{resnet_basic_block.4} parent=0 // loop_pre_header
    _
  $region3: #{resnet_basic_block.4} parent=0 // loop_header
    %s13 = sphi 0, %s17
    %p14 = scmp.ge.s32.totalorder %s13, 4
    %s21 = sphi 0, %s21
    %s23 = sphi 0, %s21
    %s24 = sphi 0, %s23
    %s38 = sphi 0, %s24
    %s42 = sphi 0, %s42
    %s44 = sphi 0, %s42
    %s45 = sphi 0, %s44
    %s59 = sphi 0, %s45
    %s63 = sphi 0, %s63
    %s65 = sphi 0, %s63
    %s66 = sphi 0, %s65
    %s80 = sphi 0, %s66
    %s86 = sphi 0, %s88
    %s89 = sphi 0, %s86
    %s90 = sphi 0, %s89
    %s106 = sphi 0, %s90
    %s110 = sphi 0, %s110
    %s112 = sphi 0, %s110
    %s113 = sphi 0, %s112
    %s127 = sphi 0, %s113
    %s133 = sphi 0, %s135
    %s136 = sphi 0, %s133
    %s137 = sphi 0, %s136
    %s153 = sphi 0, %s137
    %s159 = sphi 0, %s161
    %s162 = sphi 0, %s159
    %s163 = sphi 0, %s162
    %s179 = sphi 0, %s163
  $region4: #{resnet_basic_block.4} parent=0 // loop_header_branch
    %16 = sbr.rel (%p14) target = $region8
  $region5: #{resnet_basic_block.4} parent=0 // loop_body
    %s18 = ssub.s32 %s13, 1
    %s19 = ssub.s32 %s13, 2
    %s20 = sadd.s32 %s13, 1
    %s22 = sadd.s32 %s21, 1
    %p25 = scmp.eq.s32.totalorder %s13, 1
    %p26 = scmp.ne.s32.totalorder %s21, %s23
    %p27 = scmp.eq.s32.totalorder %s13, 0
    %p28 = por %p26, %p27
    %p29 = scmp.ne.s32.totalorder %s21, %s23
    %p30 = scmp.eq.s32.totalorder %s18, 1
    %p31 = por %p29, %p30
    %p32 = scmp.ne.s32.totalorder %s23, %s24
    %p33 = scmp.eq.s32.totalorder %s18, 0
    %p34 = por %p32, %p33
    %p35 = scmp.ne.s32.totalorder %s23, %s24
    %p36 = scmp.eq.s32.totalorder %s19, 1
    %p37 = por %p35, %p36
    %p39 = scmp.ne.s32.totalorder %s24, %s38
    %p40 = scmp.eq.s32.totalorder %s19, 0
    %p41 = por %p39, %p40
    %s43 = sadd.s32 %s42, 1
    %p46 = scmp.eq.s32.totalorder %s13, 1
    %p47 = scmp.ne.s32.totalorder %s42, %s44
    %p48 = scmp.eq.s32.totalorder %s13, 0
    %p49 = por %p47, %p48
    %p50 = scmp.ne.s32.totalorder %s42, %s44
    %p51 = scmp.eq.s32.totalorder %s18, 1
    %p52 = por %p50, %p51
    %p53 = scmp.ne.s32.totalorder %s44, %s45
    %p54 = scmp.eq.s32.totalorder %s18, 0
    %p55 = por %p53, %p54
    %p56 = scmp.ne.s32.totalorder %s44, %s45
    %p57 = scmp.eq.s32.totalorder %s19, 1
    %p58 = por %p56, %p57
    %p60 = scmp.ne.s32.totalorder %s45, %s59
    %p61 = scmp.eq.s32.totalorder %s19, 0
    %p62 = por %p60, %p61
    %s64 = sadd.s32 %s63, 1
    %p67 = scmp.eq.s32.totalorder %s13, 1
    %p68 = scmp.ne.s32.totalorder %s63, %s65
    %p69 = scmp.eq.s32.totalorder %s13, 0
    %p70 = por %p68, %p69
    %p71 = scmp.ne.s32.totalorder %s63, %s65
    %p72 = scmp.eq.s32.totalorder %s18, 1
    %p73 = por %p71, %p72
    %p74 = scmp.ne.s32.totalorder %s65, %s66
    %p75 = scmp.eq.s32.totalorder %s18, 0
    %p76 = por %p74, %p75
    %p77 = scmp.ne.s32.totalorder %s65, %s66
    %p78 = scmp.eq.s32.totalorder %s19, 1
    %p79 = por %p77, %p78
    %p81 = scmp.ne.s32.totalorder %s66, %s80
    %p82 = scmp.eq.s32.totalorder %s19, 0
    %p83 = por %p81, %p82
    %s84 = ssub.s32 %s13, %s20
    %p85 = scmp.eq.s32.totalorder %s84, 0
    %s87 = sadd.s32 %s86, 1
    %s88 = scalar_select %p85, %s86, %s87
    %p91 = pneg %p85
    %p92 = scmp.eq.s32.totalorder %s13, 1
    %p93 = por %p91, %p92
    %p94 = scmp.ne.s32.totalorder %s86, %s89
    %p95 = scmp.eq.s32.totalorder %s13, 0
    %p96 = por %p94, %p95
    %p97 = scmp.ne.s32.totalorder %s86, %s89
    %p98 = scmp.eq.s32.totalorder %s18, 1
    %p99 = por %p97, %p98
    %p100 = scmp.ne.s32.totalorder %s89, %s90
    %p101 = scmp.eq.s32.totalorder %s18, 0
    %p102 = por %p100, %p101
    %p103 = scmp.ne.s32.totalorder %s89, %s90
    %p104 = scmp.eq.s32.totalorder %s19, 1
    %p105 = por %p103, %p104
    %p107 = scmp.ne.s32.totalorder %s90, %s106
    %p108 = scmp.eq.s32.totalorder %s19, 0
    %p109 = por %p107, %p108
    %s111 = sadd.s32 %s110, 1
    %p114 = scmp.eq.s32.totalorder %s13, 1
    %p115 = scmp.ne.s32.totalorder %s110, %s112
    %p116 = scmp.eq.s32.totalorder %s13, 0
    %p117 = por %p115, %p116
    %p118 = scmp.ne.s32.totalorder %s110, %s112
    %p119 = scmp.eq.s32.totalorder %s18, 1
    %p120 = por %p118, %p119
    %p121 = scmp.ne.s32.totalorder %s112, %s113
    %p122 = scmp.eq.s32.totalorder %s18, 0
    %p123 = por %p121, %p122
    %p124 = scmp.ne.s32.totalorder %s112, %s113
    %p125 = scmp.eq.s32.totalorder %s19, 1
    %p126 = por %p124, %p125
    %p128 = scmp.ne.s32.totalorder %s113, %s127
    %p129 = scmp.eq.s32.totalorder %s19, 0
    %p130 = por %p128, %p129
    %s131 = ssub.s32 %s13, %s20
    %p132 = scmp.eq.s32.totalorder %s131, 0
    %s134 = sadd.s32 %s133, 1
    %s135 = scalar_select %p132, %s133, %s134
    %p138 = pneg %p132
    %p139 = scmp.eq.s32.totalorder %s13, 1
    %p140 = por %p138, %p139
    %p141 = scmp.ne.s32.totalorder %s133, %s136
    %p142 = scmp.eq.s32.totalorder %s13, 0
    %p143 = por %p141, %p142
    %p144 = scmp.ne.s32.totalorder %s133, %s136
    %p145 = scmp.eq.s32.totalorder %s18, 1
    %p146 = por %p144, %p145
    %p147 = scmp.ne.s32.totalorder %s136, %s137
    %p148 = scmp.eq.s32.totalorder %s18, 0
    %p149 = por %p147, %p148
    %p150 = scmp.ne.s32.totalorder %s136, %s137
    %p151 = scmp.eq.s32.totalorder %s19, 1
    %p152 = por %p150, %p151
    %p154 = scmp.ne.s32.totalorder %s137, %s153
    %p155 = scmp.eq.s32.totalorder %s19, 0
    %p156 = por %p154, %p155
    %s157 = ssub.s32 %s13, %s20
    %p158 = scmp.eq.s32.totalorder %s157, 0
    %s160 = sadd.s32 %s159, 1
    %s161 = scalar_select %p158, %s159, %s160
    %p164 = pneg %p158
    %p165 = scmp.eq.s32.totalorder %s13, 1
    %p166 = por %p164, %p165
    %p167 = scmp.ne.s32.totalorder %s159, %s162
    %p168 = scmp.eq.s32.totalorder %s13, 0
    %p169 = por %p167, %p168
    %p170 = scmp.ne.s32.totalorder %s159, %s162
    %p171 = scmp.eq.s32.totalorder %s18, 1
    %p172 = por %p170, %p171
    %p173 = scmp.ne.s32.totalorder %s162, %s163
    %p174 = scmp.eq.s32.totalorder %s18, 0
    %p175 = por %p173, %p174
    %p176 = scmp.ne.s32.totalorder %s162, %s163
    %p177 = scmp.eq.s32.totalorder %s19, 1
    %p178 = por %p176, %p177
    %p180 = scmp.ne.s32.totalorder %s163, %s179
    %p181 = scmp.eq.s32.totalorder %s19, 0
    %p182 = por %p180, %p181
    %p183 = scmp.le.s32.totalorder 1, %s13
    %p184 = scmp.lt.s32.totalorder %s13, 3
    %p185 = pnand %p183, %p184
    %p186 = pneg %p185
    // Predicated region
    $region9: #{resnet_basic_block.4} parent=5 // pred_check
      _
    $region10: #{resnet_basic_block.4} parent=5 // pred_check_branch
      %188 = sbr.rel (%p185) target = $region12
    $region11: #{resnet_basic_block.4} parent=5 // pred_region
      %s189 = ssub.s32 %s13, 1
      // Predicated region
      $region13: #{resnet_basic_block.4} parent=11 // pred_check
        %p190 = pneg %p34
      $region14: #{resnet_basic_block.4} parent=11 // pred_check_branch
        %192 = sbr.rel (%p190) target = $region16
      $region15: #{resnet_basic_block.4} parent=11 // pred_region
        _
      $region16: #{resnet_basic_block.4} parent=11 // pred_fallthru
        _
      // Predicated region
      $region17: #{resnet_basic_block.4} parent=11 // pred_check
        %p193 = pneg %p55
      $region18: #{resnet_basic_block.4} parent=11 // pred_check_branch
        %195 = sbr.rel (%p193) target = $region20
      $region19: #{resnet_basic_block.4} parent=11 // pred_region
        _
      $region20: #{resnet_basic_block.4} parent=11 // pred_fallthru
        _
      // Predicated region
      $region21: #{resnet_basic_block.4} parent=11 // pred_check
        %p196 = pneg %p76
      $region22: #{resnet_basic_block.4} parent=11 // pred_check_branch
        %198 = sbr.rel (%p196) target = $region24
      $region23: #{resnet_basic_block.4} parent=11 // pred_region
        _
      $region24: #{resnet_basic_block.4} parent=11 // pred_fallthru
        _
      // Predicated region
      $region25: #{resnet_basic_block.4} parent=11 // pred_check
        %p199 = pneg %p123
      $region26: #{resnet_basic_block.4} parent=11 // pred_check_branch
        %201 = sbr.rel (%p199) target = $region28
      $region27: #{resnet_basic_block.4} parent=11 // pred_region
        _
      $region28: #{resnet_basic_block.4} parent=11 // pred_fallthru
        _
    $region12: #{resnet_basic_block.4} parent=5 // pred_fallthru
      _
    %p202 = scmp.lt.s32.totalorder %s13, 2
    // Predicated region
    $region29: #{resnet_basic_block.4} parent=5 // pred_check
      %p203 = pneg %p202
    $region30: #{resnet_basic_block.4} parent=5 // pred_check_branch
      %205 = sbr.rel (%p203) target = $region32
    $region31: #{resnet_basic_block.4} parent=5 // pred_region
      // Predicated region
      $region33: #{resnet_basic_block.4} parent=31 // pred_check
        %p206 = pneg %p96
      $region34: #{resnet_basic_block.4} parent=31 // pred_check_branch
        %208 = sbr.rel (%p206) target = $region36
      $region35: #{resnet_basic_block.4} parent=31 // pred_region
        %p209 = scmp.lt.s32.totalorder %s13, 1
        %s210 = scalar_select %p209, %s13, 1
        %s211 = smul.addr %s210, 32
        %s212 = smul.addr %s211, 8
        %s213 = scalar_lea.vmem %s3, %s212
      $region36: #{resnet_basic_block.4} parent=31 // pred_fallthru
        _
    $region32: #{resnet_basic_block.4} parent=5 // pred_fallthru
      _
    %p214 = scmp.le.s32.totalorder 1, %s13
    %p215 = scmp.lt.s32.totalorder %s13, 3
    %p216 = pnand %p214, %p215
    %p217 = pneg %p216
    // Predicated region
    $region37: #{resnet_basic_block.4} parent=5 // pred_check
      _
    $region38: #{resnet_basic_block.4} parent=5 // pred_check_branch
      %219 = sbr.rel (%p216) target = $region40
    $region39: #{resnet_basic_block.4} parent=5 // pred_region
      %s220 = ssub.s32 %s13, 1
      %p221 = pneg %p34
      %p222 = pneg %p31
      %p223 = pneg %p55
      %p224 = pneg %p52
      %p225 = pneg %p76
      %p226 = pneg %p73
      %p227 = scmp.lt.s32.totalorder %s18, 1
      %s228 = scalar_select %p227, %s18, 1
      %s229 = smul.addr %s228, 32
      %s230 = smul.addr %s229, 8
      %s231 = scalar_lea.vmem %s3, %s230
      %p232 = pneg %p102
      %p233 = pneg %p99
      %p234 = pneg %p123
      %p235 = pneg %p120
      %p236 = pneg %p149
      %p237 = pneg %p146
      %p238 = scmp.lt.s32.totalorder %s18, 1
      %s239 = scalar_select %p238, %s18, 1
      %s240 = smul.addr %s239, 32
      %s241 = smul.addr %s240, 8
      %s242 = scalar_lea.vmem %s5, %s241
      %p243 = pneg %p175
      %p244 = pneg %p172
      %p245 = scmp.lt.s32.totalorder %s18, 1
      %s246 = scalar_select %p245, %s18, 1
      %s247 = smul.addr %s246, 2
      %s248 = scalar_lea.vmem %s6, %s247
      %p249 = scmp.lt.s32.totalorder %s18, 1
      %s250 = scalar_select %p249, %s18, 1
      %s251 = smul.addr %s250, 32
      %s252 = smul.addr %s251, 8
      %s253 = scalar_lea.vmem %s3, %s252
      %p254 = scmp.lt.s32.totalorder %s18, 1
      %s255 = scalar_select %p254, %s18, 1
      %s256 = smul.addr %s255, 32
      %s257 = smul.addr %s256, 8
      %s258 = scalar_lea.vmem %s5, %s257
      %p259 = scmp.lt.s32.totalorder %s18, 1
      %s260 = scalar_select %p259, %s18, 1
      %s261 = smul.addr %s260, 2
      %s262 = scalar_lea.vmem %s6, %s261
      %v264 = vld [vmem:[%s0] sm:$0x3]
      %v265 = vld [vmem:[%s0 + $0x2] sm:$0x3]
      %v266 = vld [vmem:[%s1] sm:$0x1]
      %v267 = vld [vmem:[%s2] sm:$0x1]
      %vm268 = vcmask 25600
      %v269 = vsel %vm268, %v264, 0.0
      %v270 = vsel %vm268, %v265, 0.0
      %v271 = vadd.f32 %v269, %v270
      %v272 = vmul.f32 %v271, 0.001953125
      %v273 = vmul.f32 %v272, %v272
      %v275 = vrot.slane %v273, 7
      %v277 = vsub.f32 %v272, %v275
      %v278 = vmax.f32 %v277, 0.0
      %v279 = vadd.f32 %v278, 1e-05
      %v280 = vrsqrt.pop %v279
      %v281 = vmul.f32 %v280, %v279
      %v282 = vmul.f32 %v281, %v280
      %v283 = vmul.f32 0.5, %v282
      %v284 = vsub.f32 1.5, %v283
      %v285 = vmul.f32 %v280, %v284
      %vm286 = vweird.f32 %v279
      %vm287 = vweird.f32 %v280
      %vm288 = vmor %vm286, %vm287
      %v289 = vsel %vm288, %v280, %v285
      %291 = vst [vmem:[#allocation1] sm:$0xff] %v289
      %s292 = scalar_lea.vmem [#allocation1], 1
      %v293 = vld [vmem:[%s292] ss:$9 sm:$0xff]
      %v295 = vmul.f32 %v266, %v293
      %v296 = vmul.f32 %v272, %v295
      %v297 = vsub.f32 %v267, %v296
      %v298 = vld [vmem:[%s253] sm:$0xff]
      %v299 = vld [vmem:[%s253 + $0x8] sm:$0xff]
      %v300 = vld [vmem:[%s253 + $0x10] sm:$0xff]
      %v301 = vld [vmem:[%s253 + $0x18] sm:$0xff]
      %v302 = vld [vmem:[%s253 + $0x20] sm:$0xff]
      %v303 = vld [vmem:[%s253 + $0x28] sm:$0xff]
      %v304 = vld [vmem:[%s253 + $0x30] sm:$0xff]
      %v305 = vld [vmem:[%s253 + $0x38] sm:$0xff]
      %v306 = vld [vmem:[%s253 + $0x40] sm:$0xff]
      %v307 = vld [vmem:[%s253 + $0x48] sm:$0xff]
      %v308 = vld [vmem:[%s253 + $0x50] sm:$0xff]
      %v309 = vld [vmem:[%s253 + $0x58] sm:$0xff]
      %v310 = vld [vmem:[%s253 + $0x60] sm:$0xff]
      %v311 = vld [vmem:[%s253 + $0x68] sm:$0xff]
      %v312 = vld [vmem:[%s253 + $0x70] sm:$0xff]
      %v313 = vld [vmem:[%s253 + $0x78] sm:$0xff]
      %v314 = vld [vmem:[%s253 + $0x80] sm:$0xff]
      %v315 = vld [vmem:[%s253 + $0x88] sm:$0xff]
      %v316 = vld [vmem:[%s253 + $0x90] sm:$0xff]
      %v317 = vld [vmem:[%s253 + $0x98] sm:$0xff]
      %v318 = vld [vmem:[%s253 + $0xa0] sm:$0xff]
      %v319 = vld [vmem:[%s253 + $0xa8] sm:$0xff]
      %v320 = vld [vmem:[%s253 + $0xb0] sm:$0xff]
      %v321 = vld [vmem:[%s253 + $0xb8] sm:$0xff]
      %v322 = vld [vmem:[%s253 + $0xc0] sm:$0xff]
      %v323 = vld [vmem:[%s253 + $0xc8] sm:$0xff]
      %v324 = vld [vmem:[%s253 + $0xd0] sm:$0xff]
      %v325 = vld [vmem:[%s253 + $0xd8] sm:$0xff]
      %v326 = vld [vmem:[%s253 + $0xe0] sm:$0xff]
      %v327 = vld [vmem:[%s253 + $0xe8] sm:$0xff]
      %v328 = vld [vmem:[%s253 + $0xf0] sm:$0xff]
      %v329 = vld [vmem:[%s253 + $0xf8] sm:$0xff]
      %v331 = vperm.slane %v295, 0
      %v333 = vmul.f32 %v298, %v331
      %v334 = vmul.f32 %v299, %v331
      %v335 = vmul.f32 %v300, %v331
      %v336 = vmul.f32 %v301, %v331
      %v337 = vmul.f32 %v302, %v331
      %v338 = vmul.f32 %v303, %v331
      %v339 = vmul.f32 %v304, %v331
      %v340 = vmul.f32 %v305, %v331
      %v341 = vmul.f32 %v306, %v331
      %v342 = vmul.f32 %v307, %v331
      %v343 = vmul.f32 %v308, %v331
      %v344 = vmul.f32 %v309, %v331
      %v345 = vmul.f32 %v310, %v331
      %v346 = vmul.f32 %v311, %v331
      %v347 = vmul.f32 %v312, %v331
      %v348 = vmul.f32 %v313, %v331
      %v349 = vmul.f32 %v314, %v331
      %v350 = vmul.f32 %v315, %v331
      %v351 = vmul.f32 %v316, %v331
      %v352 = vmul.f32 %v317, %v331
      %v353 = vmul.f32 %v318, %v331
      %v354 = vmul.f32 %v319, %v331
      %v355 = vmul.f32 %v320, %v331
      %v356 = vmul.f32 %v321, %v331
      %v357 = vmul.f32 %v322, %v331
      %v358 = vmul.f32 %v323, %v331
      %v359 = vmul.f32 %v324, %v331
      %v360 = vmul.f32 %v325, %v331
      %v361 = vmul.f32 %v326, %v331
      %v362 = vmul.f32 %v327, %v331
      %v363 = vmul.f32 %v328, %v331
      %v364 = vmul.f32 %v329, %v331
      %v366 = vperm.slane %v297, 0
      %v368 = vadd.f32 %v333, %v366
      %v369 = vadd.f32 %v334, %v366
      %v370 = vadd.f32 %v335, %v366
      %v371 = vadd.f32 %v336, %v366
      %v372 = vadd.f32 %v337, %v366
      %v373 = vadd.f32 %v338, %v366
      %v374 = vadd.f32 %v339, %v366
      %v375 = vadd.f32 %v340, %v366
      %v376 = vadd.f32 %v341, %v366
      %v377 = vadd.f32 %v342, %v366
      %v378 = vadd.f32 %v343, %v366
      %v379 = vadd.f32 %v344, %v366
      %v380 = vadd.f32 %v345, %v366
      %v381 = vadd.f32 %v346, %v366
      %v382 = vadd.f32 %v347, %v366
      %v383 = vadd.f32 %v348, %v366
      %v384 = vadd.f32 %v349, %v366
      %v385 = vadd.f32 %v350, %v366
      %v386 = vadd.f32 %v351, %v366
      %v387 = vadd.f32 %v352, %v366
      %v388 = vadd.f32 %v353, %v366
      %v389 = vadd.f32 %v354, %v366
      %v390 = vadd.f32 %v355, %v366
      %v391 = vadd.f32 %v356, %v366
      %v392 = vadd.f32 %v357, %v366
      %v393 = vadd.f32 %v358, %v366
      %v394 = vadd.f32 %v359, %v366
      %v395 = vadd.f32 %v360, %v366
      %v396 = vadd.f32 %v361, %v366
      %v397 = vadd.f32 %v362, %v366
      %v398 = vadd.f32 %v363, %v366
      %v399 = vadd.f32 %v364, %v366
      %v400 = vmax.f32 %v368, 0.0
      %v401 = vmax.f32 %v369, 0.0
      %v402 = vmax.f32 %v370, 0.0
      %v403 = vmax.f32 %v371, 0.0
      %v404 = vmax.f32 %v372, 0.0
      %v405 = vmax.f32 %v373, 0.0
      %v406 = vmax.f32 %v374, 0.0
      %v407 = vmax.f32 %v375, 0.0
      %v408 = vmax.f32 %v376, 0.0
      %v409 = vmax.f32 %v377, 0.0
      %v410 = vmax.f32 %v378, 0.0
      %v411 = vmax.f32 %v379, 0.0
      %v412 = vmax.f32 %v380, 0.0
      %v413 = vmax.f32 %v381, 0.0
      %v414 = vmax.f32 %v382, 0.0
      %v415 = vmax.f32 %v383, 0.0
      %v416 = vmax.f32 %v384, 0.0
      %v417 = vmax.f32 %v385, 0.0
      %v418 = vmax.f32 %v386, 0.0
      %v419 = vmax.f32 %v387, 0.0
      %v420 = vmax.f32 %v388, 0.0
      %v421 = vmax.f32 %v389, 0.0
      %v422 = vmax.f32 %v390, 0.0
      %v423 = vmax.f32 %v391, 0.0
      %v424 = vmax.f32 %v392, 0.0
      %v425 = vmax.f32 %v393, 0.0
      %v426 = vmax.f32 %v394, 0.0
      %v427 = vmax.f32 %v395, 0.0
      %v428 = vmax.f32 %v396, 0.0
      %v429 = vmax.f32 %v397, 0.0
      %v430 = vmax.f32 %v398, 0.0
      %v431 = vmax.f32 %v399, 0.0
      %v432 = vpack.c.bf16 %v400, %v400
      %v433 = vpack.c.bf16 %v401, %v401
      %v434 = vpack.c.bf16 %v402, %v402
      %v435 = vpack.c.bf16 %v403, %v403
      %v436 = vpack.c.bf16 %v404, %v404
      %v437 = vpack.c.bf16 %v405, %v405
      %v438 = vpack.c.bf16 %v406, %v406
      %v439 = vpack.c.bf16 %v407, %v407
      %v440 = vpack.c.bf16 %v408, %v408
      %v441 = vpack.c.bf16 %v409, %v409
      %v442 = vpack.c.bf16 %v410, %v410
      %v443 = vpack.c.bf16 %v411, %v411
      %v444 = vpack.c.bf16 %v412, %v412
      %v445 = vpack.c.bf16 %v413, %v413
      %v446 = vpack.c.bf16 %v414, %v414
      %v447 = vpack.c.bf16 %v415, %v415
      %v448 = vpack.c.bf16 %v416, %v416
      %v449 = vpack.c.bf16 %v417, %v417
      %v450 = vpack.c.bf16 %v418, %v418
      %v451 = vpack.c.bf16 %v419, %v419
      %v452 = vpack.c.bf16 %v420, %v420
      %v453 = vpack.c.bf16 %v421, %v421
      %v454 = vpack.c.bf16 %v422, %v422
      %v455 = vpack.c.bf16 %v423, %v423
      %v456 = vpack.c.bf16 %v424, %v424
      %v457 = vpack.c.bf16 %v425, %v425
      %v458 = vpack.c.bf16 %v426, %v426
      %v459 = vpack.c.bf16 %v427, %v427
      %v460 = vpack.c.bf16 %v428, %v428
      %v461 = vpack.c.bf16 %v429, %v429
      %v462 = vpack.c.bf16 %v430, %v430
      %v463 = vpack.c.bf16 %v431, %v431
      %vm464 = vcmask 27648
      %465 = vst.msk [vmem:[#allocation2] sm:$0xf] %vm464, 0
      %466 = vst.msk [vmem:[#allocation2 + $0x4] sm:$0xf] %vm464, 0
      %vm467 = vcmask 24576
      %468 = vst.msk [vmem:[#allocation2 + $0x8] sm:$0x1] %vm467, 0
      %469 = vst.msk [vmem:[#allocation2 + $0xc] sm:$0xf] %vm464, 0
      %470 = vst.msk [vmem:[#allocation2 + $0x10] sm:$0xf] %vm464, 0
      %471 = vst.msk [vmem:[#allocation2 + $0x14] sm:$0x1] %vm467, 0
      %472 = vst.msk [vmem:[#allocation2 + $0x18] sm:$0xf] %vm464, 0
      %473 = vst.msk [vmem:[#allocation2 + $0x1c] sm:$0xf] %vm464, 0
      %474 = vst.msk [vmem:[#allocation2 + $0x20] sm:$0x1] %vm467, 0
      %475 = vst.msk [vmem:[#allocation2 + $0x24] sm:$0xf] %vm464, 0
      %476 = vst.msk [vmem:[#allocation2 + $0x28] sm:$0xf] %vm464, 0
      %477 = vst.msk [vmem:[#allocation2 + $0x2c] sm:$0x1] %vm467, 0
      %478 = vst.msk [vmem:[#allocation2 + $0x30] sm:$0xf] %vm464, 0
      %479 = vst.msk [vmem:[#allocation2 + $0x34] sm:$0xf] %vm464, 0
      %480 = vst.msk [vmem:[#allocation2 + $0x38] sm:$0x1] %vm467, 0
      %481 = vst.msk [vmem:[#allocation2 + $0x3c] sm:$0xf] %vm464, 0
      %482 = vst.msk [vmem:[#allocation2 + $0x40] sm:$0xf] %vm464, 0
      %483 = vst.msk [vmem:[#allocation2 + $0x44] sm:$0x1] %vm467, 0
      %484 = vst.msk [vmem:[#allocation2 + $0x48] sm:$0xf] %vm464, 0
      %485 = vst.msk [vmem:[#allocation2 + $0x4c] sm:$0xf] %vm464, 0
      %486 = vst.msk [vmem:[#allocation2 + $0x50] sm:$0x1] %vm467, 0
      %487 = vst.msk [vmem:[#allocation2 + $0x54] sm:$0xf] %vm464, 0
      %488 = vst.msk [vmem:[#allocation2 + $0x58] sm:$0xf] %vm464, 0
      %489 = vst.msk [vmem:[#allocation2 + $0x5c] sm:$0x1] %vm467, 0
      %490 = vst.msk [vmem:[#allocation2 + $0x60] sm:$0xf] %vm464, 0
      %491 = vst.msk [vmem:[#allocation2 + $0x64] sm:$0xf] %vm464, 0
      %492 = vst.msk [vmem:[#allocation2 + $0x68] sm:$0x1] %vm467, 0
      %493 = vst.msk [vmem:[#allocation2 + $0x6c] sm:$0xf] %vm464, 0
      %494 = vst.msk [vmem:[#allocation2 + $0x70] sm:$0xf] %vm464, 0
      %495 = vst.msk [vmem:[#allocation2 + $0x74] sm:$0x1] %vm467, 0
      %496 = vst.msk [vmem:[#allocation2 + $0x78] sm:$0xf] %vm464, 0
      %497 = vst.msk [vmem:[#allocation2 + $0x7c] sm:$0xf] %vm464, 0
      %498 = vst.msk [vmem:[#allocation2 + $0x80] sm:$0x1] %vm467, 0
      %499 = vst.msk [vmem:[#allocation2 + $0x84] sm:$0xf] %vm464, 0
      %500 = vst.msk [vmem:[#allocation2 + $0x88] sm:$0xf] %vm464, 0
      %501 = vst.msk [vmem:[#allocation2 + $0x8c] sm:$0x1] %vm467, 0
      %502 = vst.msk [vmem:[#allocation2 + $0x90] sm:$0xf] %vm464, 0
      %503 = vst.msk [vmem:[#allocation2 + $0x94] sm:$0xf] %vm464, 0
      %504 = vst.msk [vmem:[#allocation2 + $0x98] sm:$0x1] %vm467, 0
      %505 = vst.msk [vmem:[#allocation2 + $0x9c] sm:$0xf] %vm464, 0
      %506 = vst.msk [vmem:[#allocation2 + $0xa0] sm:$0xf] %vm464, 0
      %507 = vst.msk [vmem:[#allocation2 + $0xa4] sm:$0x1] %vm467, 0
      %508 = vst.msk [vmem:[#allocation2 + $0xa8] sm:$0xf] %vm464, 0
      %509 = vst.msk [vmem:[#allocation2 + $0xac] sm:$0xf] %vm464, 0
      %510 = vst.msk [vmem:[#allocation2 + $0xb0] sm:$0x1] %vm467, 0
      %511 = vst.msk [vmem:[#allocation2 + $0xb4] sm:$0xf] %vm464, 0
      %512 = vst.msk [vmem:[#allocation2 + $0xb8] sm:$0xf] %vm464, 0
      %513 = vst.msk [vmem:[#allocation2 + $0xbc] sm:$0x1] %vm467, 0
      %514 = vst.msk [vmem:[#allocation2 + $0xc0] sm:$0xf] %vm464, 0
      %515 = vst.msk [vmem:[#allocation2 + $0xc4] sm:$0xf] %vm464, 0
      %516 = vst.msk [vmem:[#allocation2 + $0xc8] sm:$0x1] %vm467, 0
      %517 = vst.msk [vmem:[#allocation2 + $0xcc] sm:$0xf] %vm464, 0
      %518 = vst.msk [vmem:[#allocation2 + $0xd0] sm:$0xf] %vm464, 0
      %519 = vst.msk [vmem:[#allocation2 + $0xd4] sm:$0x1] %vm467, 0
      %vm520 = vsmask.f32 256
      %vm521 = vsmask.f32 4368
      %vm522 = vmor %vm520, %vm521
      %v524 = vshrl.u32 %v432, 16
      %v526 = vrot.slane %v524, 7
      %v527 = vshll.u32 %v432, 16
      %v529 = vor.u32 %v526, %v527
      %v530 = vrot.slane %v526, 4
      %v532 = vshrl.u32 %v433, 16
      %v534 = vrot.slane %v532, 7
      %v535 = vshll.u32 %v433, 16
      %v537 = vor.u32 %v534, %v535
      %v538 = vsel %vm522, %v530, %v537
      %v539 = vrot.slane %v534, 4
      %v541 = vshrl.u32 %v434, 16
      %v543 = vrot.slane %v541, 7
      %v544 = vshll.u32 %v434, 16
      %v546 = vor.u32 %v543, %v544
      %v547 = vrot.slane %v543, 4
      %v549 = vshrl.u32 %v435, 16
      %v551 = vrot.slane %v549, 7
      %v552 = vshll.u32 %v435, 16
      %v554 = vor.u32 %v551, %v552
      %v555 = vsel %vm522, %v547, %v554
      %v556 = vrot.slane %v551, 4
      %v558 = vshrl.u32 %v436, 16
      %v560 = vrot.slane %v558, 7
      %v561 = vshll.u32 %v436, 16
      %v563 = vor.u32 %v560, %v561
      %v564 = vrot.slane %v560, 4
      %v566 = vshrl.u32 %v437, 16
      %v568 = vrot.slane %v566, 7
      %v569 = vshll.u32 %v437, 16
      %v571 = vor.u32 %v568, %v569
      %v572 = vsel %vm522, %v564, %v571
      %v573 = vrot.slane %v568, 4
      %v575 = vshrl.u32 %v438, 16
      %v577 = vrot.slane %v575, 7
      %v578 = vshll.u32 %v438, 16
      %v580 = vor.u32 %v577, %v578
      %v581 = vrot.slane %v577, 4
      %v583 = vshrl.u32 %v439, 16
      %v585 = vrot.slane %v583, 7
      %v586 = vshll.u32 %v439, 16
      %v588 = vor.u32 %v585, %v586
      %v589 = vsel %vm522, %v581, %v588
      %v590 = vrot.slane %v585, 4
      %v592 = vshrl.u32 %v440, 16
      %v594 = vrot.slane %v592, 7
      %v595 = vshll.u32 %v440, 16
      %v597 = vor.u32 %v594, %v595
      %v598 = vrot.slane %v594, 4
      %v600 = vshrl.u32 %v441, 16
      %v602 = vrot.slane %v600, 7
      %v603 = vshll.u32 %v441, 16
      %v605 = vor.u32 %v602, %v603
      %v606 = vsel %vm522, %v598, %v605
      %v607 = vrot.slane %v602, 4
      %v609 = vshrl.u32 %v442, 16
      %v611 = vrot.slane %v609, 7
      %v612 = vshll.u32 %v442, 16
      %v614 = vor.u32 %v611, %v612
      %v615 = vrot.slane %v611, 4
      %v617 = vshrl.u32 %v443, 16
      %v619 = vrot.slane %v617, 7
      %v620 = vshll.u32 %v443, 16
      %v622 = vor.u32 %v619, %v620
      %v623 = vsel %vm522, %v615, %v622
      %v624 = vrot.slane %v619, 4
      %v626 = vshrl.u32 %v444, 16
      %v628 = vrot.slane %v626, 7
      %v629 = vshll.u32 %v444, 16
      %v631 = vor.u32 %v628, %v629
      %v632 = vrot.slane %v628, 4
      %v634 = vshrl.u32 %v445, 16
      %v636 = vrot.slane %v634, 7
      %v637 = vshll.u32 %v445, 16
      %v639 = vor.u32 %v636, %v637
      %v640 = vsel %vm522, %v632, %v639
      %v641 = vrot.slane %v636, 4
      %v643 = vshrl.u32 %v446, 16
      %v645 = vrot.slane %v643, 7
      %v646 = vshll.u32 %v446, 16
      %v648 = vor.u32 %v645, %v646
      %v649 = vrot.slane %v645, 4
      %v651 = vshrl.u32 %v447, 16
      %v653 = vrot.slane %v651, 7
      %v654 = vshll.u32 %v447, 16
      %v656 = vor.u32 %v653, %v654
      %v657 = vsel %vm522, %v649, %v656
      %v658 = vrot.slane %v653, 4
      %v660 = vshrl.u32 %v448, 16
      %v662 = vrot.slane %v660, 7
      %v663 = vshll.u32 %v448, 16
      %v665 = vor.u32 %v662, %v663
      %v666 = vrot.slane %v662, 4
      %v668 = vshrl.u32 %v449, 16
      %v670 = vrot.slane %v668, 7
      %v671 = vshll.u32 %v449, 16
      %v673 = vor.u32 %v670, %v671
      %v674 = vsel %vm522, %v666, %v673
      %v675 = vrot.slane %v670, 4
      %v677 = vshrl.u32 %v450, 16
      %v679 = vrot.slane %v677, 7
      %v680 = vshll.u32 %v450, 16
      %v682 = vor.u32 %v679, %v680
      %v683 = vrot.slane %v679, 4
      %v685 = vshrl.u32 %v451, 16
      %v687 = vrot.slane %v685, 7
      %v688 = vshll.u32 %v451, 16
      %v690 = vor.u32 %v687, %v688
      %v691 = vsel %vm522, %v683, %v690
      %v692 = vrot.slane %v687, 4
      %v694 = vshrl.u32 %v452, 16
      %v696 = vrot.slane %v694, 7
      %v697 = vshll.u32 %v452, 16
      %v699 = vor.u32 %v696, %v697
      %v700 = vrot.slane %v696, 4
      %v702 = vshrl.u32 %v453, 16
      %v704 = vrot.slane %v702, 7
      %v705 = vshll.u32 %v453, 16
      %v707 = vor.u32 %v704, %v705
      %v708 = vsel %vm522, %v700, %v707
      %v709 = vrot.slane %v704, 4
      %v711 = vshrl.u32 %v454, 16
      %v713 = vrot.slane %v711, 7
      %v714 = vshll.u32 %v454, 16
      %v716 = vor.u32 %v713, %v714
      %v717 = vrot.slane %v713, 4
      %v719 = vshrl.u32 %v455, 16
      %v721 = vrot.slane %v719, 7
      %v722 = vshll.u32 %v455, 16
      %v724 = vor.u32 %v721, %v722
      %v725 = vsel %vm522, %v717, %v724
      %v726 = vrot.slane %v721, 4
      %v728 = vshrl.u32 %v456, 16
      %v730 = vrot.slane %v728, 7
      %v731 = vshll.u32 %v456, 16
      %v733 = vor.u32 %v730, %v731
      %v734 = vrot.slane %v730, 4
      %v736 = vshrl.u32 %v457, 16
      %v738 = vrot.slane %v736, 7
      %v739 = vshll.u32 %v457, 16
      %v741 = vor.u32 %v738, %v739
      %v742 = vsel %vm522, %v734, %v741
      %v743 = vrot.slane %v738, 4
      %v745 = vshrl.u32 %v458, 16
      %v747 = vrot.slane %v745, 7
      %v748 = vshll.u32 %v458, 16
      %v750 = vor.u32 %v747, %v748
      %v751 = vrot.slane %v747, 4
      %v753 = vshrl.u32 %v459, 16
      %v755 = vrot.slane %v753, 7
      %v756 = vshll.u32 %v459, 16
      %v758 = vor.u32 %v755, %v756
      %v759 = vsel %vm522, %v751, %v758
      %v760 = vrot.slane %v755, 4
      %v762 = vshrl.u32 %v460, 16
      %v764 = vrot.slane %v762, 7
      %v765 = vshll.u32 %v460, 16
      %v767 = vor.u32 %v764, %v765
      %v768 = vrot.slane %v764, 4
      %v770 = vshrl.u32 %v461, 16
      %v772 = vrot.slane %v770, 7
      %v773 = vshll.u32 %v461, 16
      %v775 = vor.u32 %v772, %v773
      %v776 = vsel %vm522, %v768, %v775
      %v777 = vrot.slane %v772, 4
      %v779 = vshrl.u32 %v462, 16
      %v781 = vrot.slane %v779, 7
      %v782 = vshll.u32 %v462, 16
      %v784 = vor.u32 %v781, %v782
      %v785 = vrot.slane %v781, 4
      %v787 = vshrl.u32 %v463, 16
      %v789 = vrot.slane %v787, 7
      %v790 = vshll.u32 %v463, 16
      %v792 = vor.u32 %v789, %v790
      %v793 = vsel %vm522, %v785, %v792
      %v794 = vrot.slane %v789, 4
      %s843 = scalar_lea.vmem [#allocation2], 12
      %vm844 = vcmask 27648
      %vm845 = vsmask.f32 7938
      %vm846 = vmand %vm844, %vm845
      %v847 = vld [vmem:[%s843] sm:$0xf]
      %v848 = vsel %vm846, %v529, %v847
      %849 = vst [vmem:[%s843] sm:$0xf] %v848
      %850 = vst.msk [vmem:[%s843 + $0x4] sm:$0xf] %vm464, %v538
      %vm851 = vcmask 24576
      %vm852 = vmand %vm851, %vm520
      %v853 = vld [vmem:[%s843 + $0x8] sm:$0x1]
      %v854 = vsel %vm852, %v539, %v853
      %855 = vst [vmem:[%s843 + $0x8] sm:$0x1] %v854
      %v856 = vld [vmem:[%s843 + $0xc] sm:$0xf]
      %v857 = vsel %vm846, %v546, %v856
      %858 = vst [vmem:[%s843 + $0xc] sm:$0xf] %v857
      %859 = vst.msk [vmem:[%s843 + $0x10] sm:$0xf] %vm464, %v555
      %v860 = vld [vmem:[%s843 + $0x14] sm:$0x1]
      %v861 = vsel %vm852, %v556, %v860
      %862 = vst [vmem:[%s843 + $0x14] sm:$0x1] %v861
      %v863 = vld [vmem:[%s843 + $0x18] sm:$0xf]
      %v864 = vsel %vm846, %v563, %v863
      %865 = vst [vmem:[%s843 + $0x18] sm:$0xf] %v864
      %866 = vst.msk [vmem:[%s843 + $0x1c] sm:$0xf] %vm464, %v572
      %v867 = vld [vmem:[%s843 + $0x20] sm:$0x1]
      %v868 = vsel %vm852, %v573, %v867
      %869 = vst [vmem:[%s843 + $0x20] sm:$0x1] %v868
      %v870 = vld [vmem:[%s843 + $0x24] sm:$0xf]
      %v871 = vsel %vm846, %v580, %v870
      %872 = vst [vmem:[%s843 + $0x24] sm:$0xf] %v871
      %873 = vst.msk [vmem:[%s843 + $0x28] sm:$0xf] %vm464, %v589
      %v874 = vld [vmem:[%s843 + $0x2c] sm:$0x1]
      %v875 = vsel %vm852, %v590, %v874
      %876 = vst [vmem:[%s843 + $0x2c] sm:$0x1] %v875
      %v877 = vld [vmem:[%s843 + $0x30] sm:$0xf]
      %v878 = vsel %vm846, %v597, %v877
      %879 = vst [vmem:[%s843 + $0x30] sm:$0xf] %v878
      %880 = vst.msk [vmem:[%s843 + $0x34] sm:$0xf] %vm464, %v606
      %v881 = vld [vmem:[%s843 + $0x38] sm:$0x1]
      %v882 = vsel %vm852, %v607, %v881
      %883 = vst [vmem:[%s843 + $0x38] sm:$0x1] %v882
      %v884 = vld [vmem:[%s843 + $0x3c] sm:$0xf]
      %v885 = vsel %vm846, %v614, %v884
      %886 = vst [vmem:[%s843 + $0x3c] sm:$0xf] %v885
      %887 = vst.msk [vmem:[%s843 + $0x40] sm:$0xf] %vm464, %v623
      %v888 = vld [vmem:[%s843 + $0x44] sm:$0x1]
      %v889 = vsel %vm852, %v624, %v888
      %890 = vst [vmem:[%s843 + $0x44] sm:$0x1] %v889
      %v891 = vld [vmem:[%s843 + $0x48] sm:$0xf]
      %v892 = vsel %vm846, %v631, %v891
      %893 = vst [vmem:[%s843 + $0x48] sm:$0xf] %v892
      %894 = vst.msk [vmem:[%s843 + $0x4c] sm:$0xf] %vm464, %v640
      %v895 = vld [vmem:[%s843 + $0x50] sm:$0x1]
      %v896 = vsel %vm852, %v641, %v895
      %897 = vst [vmem:[%s843 + $0x50] sm:$0x1] %v896
      %v898 = vld [vmem:[%s843 + $0x54] sm:$0xf]
      %v899 = vsel %vm846, %v648, %v898
      %900 = vst [vmem:[%s843 + $0x54] sm:$0xf] %v899
      %901 = vst.msk [vmem:[%s843 + $0x58] sm:$0xf] %vm464, %v657
      %v902 = vld [vmem:[%s843 + $0x5c] sm:$0x1]
      %v903 = vsel %vm852, %v658, %v902
      %904 = vst [vmem:[%s843 + $0x5c] sm:$0x1] %v903
      %v905 = vld [vmem:[%s843 + $0x60] sm:$0xf]
      %v906 = vsel %vm846, %v665, %v905
      %907 = vst [vmem:[%s843 + $0x60] sm:$0xf] %v906
      %908 = vst.msk [vmem:[%s843 + $0x64] sm:$0xf] %vm464, %v674
      %v909 = vld [vmem:[%s843 + $0x68] sm:$0x1]
      %v910 = vsel %vm852, %v675, %v909
      %911 = vst [vmem:[%s843 + $0x68] sm:$0x1] %v910
      %v912 = vld [vmem:[%s843 + $0x6c] sm:$0xf]
      %v913 = vsel %vm846, %v682, %v912
      %914 = vst [vmem:[%s843 + $0x6c] sm:$0xf] %v913
      %915 = vst.msk [vmem:[%s843 + $0x70] sm:$0xf] %vm464, %v691
      %v916 = vld [vmem:[%s843 + $0x74] sm:$0x1]
      %v917 = vsel %vm852, %v692, %v916
      %918 = vst [vmem:[%s843 + $0x74] sm:$0x1] %v917
      %v919 = vld [vmem:[%s843 + $0x78] sm:$0xf]
      %v920 = vsel %vm846, %v699, %v919
      %921 = vst [vmem:[%s843 + $0x78] sm:$0xf] %v920
      %922 = vst.msk [vmem:[%s843 + $0x7c] sm:$0xf] %vm464, %v708
      %v923 = vld [vmem:[%s843 + $0x80] sm:$0x1]
      %v924 = vsel %vm852, %v709, %v923
      %925 = vst [vmem:[%s843 + $0x80] sm:$0x1] %v924
      %v926 = vld [vmem:[%s843 + $0x84] sm:$0xf]
      %v927 = vsel %vm846, %v716, %v926
      %928 = vst [vmem:[%s843 + $0x84] sm:$0xf] %v927
      %929 = vst.msk [vmem:[%s843 + $0x88] sm:$0xf] %vm464, %v725
      %v930 = vld [vmem:[%s843 + $0x8c] sm:$0x1]
      %v931 = vsel %vm852, %v726, %v930
      %932 = vst [vmem:[%s843 + $0x8c] sm:$0x1] %v931
      %v933 = vld [vmem:[%s843 + $0x90] sm:$0xf]
      %v934 = vsel %vm846, %v733, %v933
      %935 = vst [vmem:[%s843 + $0x90] sm:$0xf] %v934
      %936 = vst.msk [vmem:[%s843 + $0x94] sm:$0xf] %vm464, %v742
      %v937 = vld [vmem:[%s843 + $0x98] sm:$0x1]
      %v938 = vsel %vm852, %v743, %v937
      %939 = vst [vmem:[%s843 + $0x98] sm:$0x1] %v938
      %v940 = vld [vmem:[%s843 + $0x9c] sm:$0xf]
      %v941 = vsel %vm846, %v750, %v940
      %942 = vst [vmem:[%s843 + $0x9c] sm:$0xf] %v941
      %943 = vst.msk [vmem:[%s843 + $0xa0] sm:$0xf] %vm464, %v759
      %v944 = vld [vmem:[%s843 + $0xa4] sm:$0x1]
      %v945 = vsel %vm852, %v760, %v944
      %946 = vst [vmem:[%s843 + $0xa4] sm:$0x1] %v945
      %v947 = vld [vmem:[%s843 + $0xa8] sm:$0xf]
      %v948 = vsel %vm846, %v767, %v947
      %949 = vst [vmem:[%s843 + $0xa8] sm:$0xf] %v948
      %950 = vst.msk [vmem:[%s843 + $0xac] sm:$0xf] %vm464, %v776
      %v951 = vld [vmem:[%s843 + $0xb0] sm:$0x1]
      %v952 = vsel %vm852, %v777, %v951
      %953 = vst [vmem:[%s843 + $0xb0] sm:$0x1] %v952
      %v954 = vld [vmem:[%s843 + $0xb4] sm:$0xf]
      %v955 = vsel %vm846, %v784, %v954
      %956 = vst [vmem:[%s843 + $0xb4] sm:$0xf] %v955
      %957 = vst.msk [vmem:[%s843 + $0xb8] sm:$0xf] %vm464, %v793
      %v958 = vld [vmem:[%s843 + $0xbc] sm:$0x1]
      %v959 = vsel %vm852, %v794, %v958
      %960 = vst [vmem:[%s843 + $0xbc] sm:$0x1] %v959
      %v961 = vld [vmem:[#allocation2] sm:$0xf]
      %v962 = vld [vmem:[#allocation2 + $0x4] sm:$0xf]
      %v963 = vld [vmem:[#allocation2 + $0x8] sm:$0x1]
      %v964 = vld [vmem:[#allocation2 + $0xc] sm:$0xf]
      %v965 = vld [vmem:[#allocation2 + $0x10] sm:$0xf]
      %v966 = vld [vmem:[#allocation2 + $0x14] sm:$0x1]
      %v967 = vld [vmem:[#allocation2 + $0x18] sm:$0xf]
      %v968 = vld [vmem:[#allocation2 + $0x1c] sm:$0xf]
      %v969 = vld [vmem:[#allocation2 + $0x20] sm:$0x1]
      %v970 = vld [vmem:[#allocation2 + $0x24] sm:$0xf]
      %v971 = vld [vmem:[#allocation2 + $0x28] sm:$0xf]
      %v972 = vld [vmem:[#allocation2 + $0x2c] sm:$0x1]
      %v973 = vld [vmem:[#allocation2 + $0x30] sm:$0xf]
      %v974 = vld [vmem:[#allocation2 + $0x34] sm:$0xf]
      %v975 = vld [vmem:[#allocation2 + $0x38] sm:$0x1]
      %v976 = vld [vmem:[#allocation2 + $0x3c] sm:$0xf]
      %v977 = vld [vmem:[#allocation2 + $0x40] sm:$0xf]
      %v978 = vld [vmem:[#allocation2 + $0x44] sm:$0x1]
      %v979 = vld [vmem:[#allocation2 + $0x48] sm:$0xf]
      %v980 = vld [vmem:[#allocation2 + $0x4c] sm:$0xf]
      %v981 = vld [vmem:[#allocation2 + $0x50] sm:$0x1]
      %v982 = vld [vmem:[#allocation2 + $0x54] sm:$0xf]
      %v983 = vld [vmem:[#allocation2 + $0x58] sm:$0xf]
      %v984 = vld [vmem:[#allocation2 + $0x5c] sm:$0x1]
      %v985 = vld [vmem:[#allocation2 + $0x60] sm:$0xf]
      %v986 = vld [vmem:[#allocation2 + $0x64] sm:$0xf]
      %v987 = vld [vmem:[#allocation2 + $0x68] sm:$0x1]
      %v988 = vld [vmem:[#allocation2 + $0x6c] sm:$0xf]
      %v989 = vld [vmem:[#allocation2 + $0x70] sm:$0xf]
      %v990 = vld [vmem:[#allocation2 + $0x74] sm:$0x1]
      %v991 = vld [vmem:[#allocation2 + $0x78] sm:$0xf]
      %v992 = vld [vmem:[#allocation2 + $0x7c] sm:$0xf]
      %v993 = vld [vmem:[#allocation2 + $0x80] sm:$0x1]
      %v994 = vld [vmem:[#allocation2 + $0x84] sm:$0xf]
      %v995 = vld [vmem:[#allocation2 + $0x88] sm:$0xf]
      %v996 = vld [vmem:[#allocation2 + $0x8c] sm:$0x1]
      %v997 = vld [vmem:[#allocation2 + $0x90] sm:$0xf]
      %v998 = vld [vmem:[#allocation2 + $0x94] sm:$0xf]
      %v999 = vld [vmem:[#allocation2 + $0x98] sm:$0x1]
      %v1000 = vld [vmem:[#allocation2 + $0x9c] sm:$0xf]
      %v1001 = vld [vmem:[#allocation2 + $0xa0] sm:$0xf]
      %v1002 = vld [vmem:[#allocation2 + $0xa4] sm:$0x1]
      %v1003 = vld [vmem:[#allocation2 + $0xa8] sm:$0xf]
      %v1004 = vld [vmem:[#allocation2 + $0xac] sm:$0xf]
      %v1005 = vld [vmem:[#allocation2 + $0xb0] sm:$0x1]
      %v1006 = vld [vmem:[#allocation2 + $0xb4] sm:$0xf]
      %v1007 = vld [vmem:[#allocation2 + $0xb8] sm:$0xf]
      %v1008 = vld [vmem:[#allocation2 + $0xbc] sm:$0x1]
      %v1009 = vld [vmem:[#allocation2 + $0xc0] sm:$0xf]
      %v1010 = vld [vmem:[#allocation2 + $0xc4] sm:$0xf]
      %v1011 = vld [vmem:[#allocation2 + $0xc8] sm:$0x1]
      %v1012 = vld [vmem:[#allocation2 + $0xcc] sm:$0xf]
      %v1013 = vld [vmem:[#allocation2 + $0xd0] sm:$0xf]
      %v1014 = vld [vmem:[#allocation2 + $0xd4] sm:$0x1]
      %v1047 = vunpack.c.l.b16 %v961
      %v1048 = vunpack.c.l.b16 %v962
      %v1049 = vunpack.c.l.b16 %v964
      %v1050 = vunpack.c.l.b16 %v965
      %v1051 = vunpack.c.l.b16 %v967
      %v1052 = vunpack.c.l.b16 %v968
      %v1053 = vunpack.c.l.b16 %v970
      %v1054 = vunpack.c.l.b16 %v971
      %v1055 = vunpack.c.l.b16 %v973
      %v1056 = vunpack.c.l.b16 %v974
      %v1057 = vunpack.c.l.b16 %v976
      %v1058 = vunpack.c.l.b16 %v977
      %v1059 = vunpack.c.l.b16 %v979
      %v1060 = vunpack.c.l.b16 %v980
      %v1061 = vunpack.c.l.b16 %v982
      %v1062 = vunpack.c.l.b16 %v983
      %v1063 = vunpack.c.l.b16 %v985
      %v1064 = vunpack.c.l.b16 %v986
      %v1065 = vunpack.c.l.b16 %v988
      %v1066 = vunpack.c.l.b16 %v989
      %v1067 = vunpack.c.l.b16 %v991
      %v1068 = vunpack.c.l.b16 %v992
      %v1069 = vunpack.c.l.b16 %v994
      %v1070 = vunpack.c.l.b16 %v995
      %v1071 = vunpack.c.l.b16 %v997
      %v1072 = vunpack.c.l.b16 %v998
      %v1073 = vunpack.c.l.b16 %v1000
      %v1074 = vunpack.c.l.b16 %v1001
      %v1075 = vunpack.c.l.b16 %v1003
      %v1076 = vunpack.c.l.b16 %v1004
      %v1077 = vunpack.c.l.b16 %v1006
      %v1078 = vunpack.c.l.b16 %v1007
      %v1079 = vpack.c.b16 %v1048, %v1047
      %v1080 = vpack.c.b16 %v1050, %v1049
      %v1081 = vpack.c.b16 %v1052, %v1051
      %v1082 = vpack.c.b16 %v1054, %v1053
      %v1083 = vpack.c.b16 %v1056, %v1055
      %v1084 = vpack.c.b16 %v1058, %v1057
      %v1085 = vpack.c.b16 %v1060, %v1059
      %v1086 = vpack.c.b16 %v1062, %v1061
      %v1087 = vpack.c.b16 %v1064, %v1063
      %v1088 = vpack.c.b16 %v1066, %v1065
      %v1089 = vpack.c.b16 %v1068, %v1067
      %v1090 = vpack.c.b16 %v1070, %v1069
      %v1091 = vpack.c.b16 %v1072, %v1071
      %v1092 = vpack.c.b16 %v1074, %v1073
      %v1093 = vpack.c.b16 %v1076, %v1075
      %v1094 = vpack.c.b16 %v1078, %v1077
      %v1111 = vunpack.c.l.b16 %v963
      %v1112 = vunpack.c.l.b16 %v966
      %v1113 = vunpack.c.l.b16 %v969
      %v1114 = vunpack.c.l.b16 %v972
      %v1115 = vunpack.c.l.b16 %v975
      %v1116 = vunpack.c.l.b16 %v978
      %v1117 = vunpack.c.l.b16 %v981
      %v1118 = vunpack.c.l.b16 %v984
      %v1119 = vunpack.c.l.b16 %v987
      %v1120 = vunpack.c.l.b16 %v990
      %v1121 = vunpack.c.l.b16 %v993
      %v1122 = vunpack.c.l.b16 %v996
      %v1123 = vunpack.c.l.b16 %v999
      %v1124 = vunpack.c.l.b16 %v1002
      %v1125 = vunpack.c.l.b16 %v1005
      %v1126 = vunpack.c.l.b16 %v1008
      %v1127 = vpack.c.b16 %v1111, %v1111
      %v1128 = vpack.c.b16 %v1112, %v1112
      %v1129 = vpack.c.b16 %v1113, %v1113
      %v1130 = vpack.c.b16 %v1114, %v1114
      %v1131 = vpack.c.b16 %v1115, %v1115
      %v1132 = vpack.c.b16 %v1116, %v1116
      %v1133 = vpack.c.b16 %v1117, %v1117
      %v1134 = vpack.c.b16 %v1118, %v1118
      %v1135 = vpack.c.b16 %v1119, %v1119
      %v1136 = vpack.c.b16 %v1120, %v1120
      %v1137 = vpack.c.b16 %v1121, %v1121
      %v1138 = vpack.c.b16 %v1122, %v1122
      %v1139 = vpack.c.b16 %v1123, %v1123
      %v1140 = vpack.c.b16 %v1124, %v1124
      %v1141 = vpack.c.b16 %v1125, %v1125
      %v1142 = vpack.c.b16 %v1126, %v1126
      %vm1143 = vsmask.f32 7424
      %v1145 = vshrl.u32 %v1079, 16
      %v1147 = vshll.u32 %v1079, 16
      %v1149 = vrot.slane %v1147, 1
      %v1150 = vor.u32 %v1145, %v1149
      %v1152 = vshll.u32 %v1127, 16
      %v1154 = vrot.slane %v1152, 1
      %v1155 = vsel %vm1143, %v1150, %v1154
      %v1157 = vshrl.u32 %v1080, 16
      %v1159 = vshll.u32 %v1080, 16
      %v1161 = vrot.slane %v1159, 1
      %v1162 = vor.u32 %v1157, %v1161
      %v1164 = vshll.u32 %v1128, 16
      %v1166 = vrot.slane %v1164, 1
      %v1167 = vsel %vm1143, %v1162, %v1166
      %v1169 = vshrl.u32 %v1081, 16
      %v1171 = vshll.u32 %v1081, 16
      %v1173 = vrot.slane %v1171, 1
      %v1174 = vor.u32 %v1169, %v1173
      %v1176 = vshll.u32 %v1129, 16
      %v1178 = vrot.slane %v1176, 1
      %v1179 = vsel %vm1143, %v1174, %v1178
      %v1181 = vshrl.u32 %v1082, 16
      %v1183 = vshll.u32 %v1082, 16
      %v1185 = vrot.slane %v1183, 1
      %v1186 = vor.u32 %v1181, %v1185
      %v1188 = vshll.u32 %v1130, 16
      %v1190 = vrot.slane %v1188, 1
      %v1191 = vsel %vm1143, %v1186, %v1190
      %v1193 = vshrl.u32 %v1083, 16
      %v1195 = vshll.u32 %v1083, 16
      %v1197 = vrot.slane %v1195, 1
      %v1198 = vor.u32 %v1193, %v1197
      %v1200 = vshll.u32 %v1131, 16
      %v1202 = vrot.slane %v1200, 1
      %v1203 = vsel %vm1143, %v1198, %v1202
      %v1205 = vshrl.u32 %v1084, 16
      %v1207 = vshll.u32 %v1084, 16
      %v1209 = vrot.slane %v1207, 1
      %v1210 = vor.u32 %v1205, %v1209
      %v1212 = vshll.u32 %v1132, 16
      %v1214 = vrot.slane %v1212, 1
      %v1215 = vsel %vm1143, %v1210, %v1214
      %v1217 = vshrl.u32 %v1085, 16
      %v1219 = vshll.u32 %v1085, 16
      %v1221 = vrot.slane %v1219, 1
      %v1222 = vor.u32 %v1217, %v1221
      %v1224 = vshll.u32 %v1133, 16
      %v1226 = vrot.slane %v1224, 1
      %v1227 = vsel %vm1143, %v1222, %v1226
      %v1229 = vshrl.u32 %v1086, 16
      %v1231 = vshll.u32 %v1086, 16
      %v1233 = vrot.slane %v1231, 1
      %v1234 = vor.u32 %v1229, %v1233
      %v1236 = vshll.u32 %v1134, 16
      %v1238 = vrot.slane %v1236, 1
      %v1239 = vsel %vm1143, %v1234, %v1238
      %v1241 = vshrl.u32 %v1087, 16
      %v1243 = vshll.u32 %v1087, 16
      %v1245 = vrot.slane %v1243, 1
      %v1246 = vor.u32 %v1241, %v1245
      %v1248 = vshll.u32 %v1135, 16
      %v1250 = vrot.slane %v1248, 1
      %v1251 = vsel %vm1143, %v1246, %v1250
      %v1253 = vshrl.u32 %v1088, 16
      %v1255 = vshll.u32 %v1088, 16
      %v1257 = vrot.slane %v1255, 1
      %v1258 = vor.u32 %v1253, %v1257
      %v1260 = vshll.u32 %v1136, 16
      %v1262 = vrot.slane %v1260, 1
      %v1263 = vsel %vm1143, %v1258, %v1262
      %v1265 = vshrl.u32 %v1089, 16
      %v1267 = vshll.u32 %v1089, 16
      %v1269 = vrot.slane %v1267, 1
      %v1270 = vor.u32 %v1265, %v1269
      %v1272 = vshll.u32 %v1137, 16
      %v1274 = vrot.slane %v1272, 1
      %v1275 = vsel %vm1143, %v1270, %v1274
      %v1277 = vshrl.u32 %v1090, 16
      %v1279 = vshll.u32 %v1090, 16
      %v1281 = vrot.slane %v1279, 1
      %v1282 = vor.u32 %v1277, %v1281
      %v1284 = vshll.u32 %v1138, 16
      %v1286 = vrot.slane %v1284, 1
      %v1287 = vsel %vm1143, %v1282, %v1286
      %v1289 = vshrl.u32 %v1091, 16
      %v1291 = vshll.u32 %v1091, 16
      %v1293 = vrot.slane %v1291, 1
      %v1294 = vor.u32 %v1289, %v1293
      %v1296 = vshll.u32 %v1139, 16
      %v1298 = vrot.slane %v1296, 1
      %v1299 = vsel %vm1143, %v1294, %v1298
      %v1301 = vshrl.u32 %v1092, 16
      %v1303 = vshll.u32 %v1092, 16
      %v1305 = vrot.slane %v1303, 1
      %v1306 = vor.u32 %v1301, %v1305
      %v1308 = vshll.u32 %v1140, 16
      %v1310 = vrot.slane %v1308, 1
      %v1311 = vsel %vm1143, %v1306, %v1310
      %v1313 = vshrl.u32 %v1093, 16
      %v1315 = vshll.u32 %v1093, 16
      %v1317 = vrot.slane %v1315, 1
      %v1318 = vor.u32 %v1313, %v1317
      %v1320 = vshll.u32 %v1141, 16
      %v1322 = vrot.slane %v1320, 1
      %v1323 = vsel %vm1143, %v1318, %v1322
      %v1325 = vshrl.u32 %v1094, 16
      %v1327 = vshll.u32 %v1094, 16
      %v1329 = vrot.slane %v1327, 1
      %v1330 = vor.u32 %v1325, %v1329
      %v1332 = vshll.u32 %v1142, 16
      %v1334 = vrot.slane %v1332, 1
      %v1335 = vsel %vm1143, %v1330, %v1334
      %1336 = vrot.lane.b32.xlu0 %v1155, 4
      %v1337 = vpop.permute.xlu0 %1336
      %1338 = vrot.lane.b32.xlu0 %v1167, 4
      %v1339 = vpop.permute.xlu0 %1338
      %1340 = vrot.lane.b32.xlu0 %v1179, 4
      %v1341 = vpop.permute.xlu0 %1340
      %1342 = vrot.lane.b32.xlu0 %v1191, 4
      %v1343 = vpop.permute.xlu0 %1342
      %1344 = vrot.lane.b32.xlu0 %v1203, 4
      %v1345 = vpop.permute.xlu0 %1344
      %1346 = vrot.lane.b32.xlu0 %v1215, 4
      %v1347 = vpop.permute.xlu0 %1346
      %1348 = vrot.lane.b32.xlu0 %v1227, 4
      %v1349 = vpop.permute.xlu0 %1348
      %1350 = vrot.lane.b32.xlu0 %v1239, 4
      %v1351 = vpop.permute.xlu0 %1350
      %1352 = vrot.lane.b32.xlu0 %v1251, 4
      %v1353 = vpop.permute.xlu0 %1352
      %1354 = vrot.lane.b32.xlu0 %v1263, 4
      %v1355 = vpop.permute.xlu0 %1354
      %1356 = vrot.lane.b32.xlu0 %v1275, 4
      %v1357 = vpop.permute.xlu0 %1356
      %1358 = vrot.lane.b32.xlu0 %v1287, 4
      %v1359 = vpop.permute.xlu0 %1358
      %1360 = vrot.lane.b32.xlu0 %v1299, 4
      %v1361 = vpop.permute.xlu0 %1360
      %1362 = vrot.lane.b32.xlu0 %v1311, 4
      %v1363 = vpop.permute.xlu0 %1362
      %1364 = vrot.lane.b32.xlu0 %v1323, 4
      %v1365 = vpop.permute.xlu0 %1364
      %1366 = vrot.lane.b32.xlu0 %v1335, 4
      %v1367 = vpop.permute.xlu0 %1366
      %vm1368 = vcmask 1046528
      %v1369 = vrot.slane %v1079, 1
      %v1370 = vrot.slane %v1127, 1
      %v1371 = vsel %vm1368, %v1369, %v1370
      %v1372 = vrot.slane %v1080, 1
      %v1373 = vrot.slane %v1128, 1
      %v1374 = vsel %vm1368, %v1372, %v1373
      %v1375 = vrot.slane %v1081, 1
      %v1376 = vrot.slane %v1129, 1
      %v1377 = vsel %vm1368, %v1375, %v1376
      %v1378 = vrot.slane %v1082, 1
      %v1379 = vrot.slane %v1130, 1
      %v1380 = vsel %vm1368, %v1378, %v1379
      %v1381 = vrot.slane %v1083, 1
      %v1382 = vrot.slane %v1131, 1
      %v1383 = vsel %vm1368, %v1381, %v1382
      %v1384 = vrot.slane %v1084, 1
      %v1385 = vrot.slane %v1132, 1
      %v1386 = vsel %vm1368, %v1384, %v1385
      %v1387 = vrot.slane %v1085, 1
      %v1388 = vrot.slane %v1133, 1
      %v1389 = vsel %vm1368, %v1387, %v1388
      %v1390 = vrot.slane %v1086, 1
      %v1391 = vrot.slane %v1134, 1
      %v1392 = vsel %vm1368, %v1390, %v1391
      %v1393 = vrot.slane %v1087, 1
      %v1394 = vrot.slane %v1135, 1
      %v1395 = vsel %vm1368, %v1393, %v1394
      %v1396 = vrot.slane %v1088, 1
      %v1397 = vrot.slane %v1136, 1
      %v1398 = vsel %vm1368, %v1396, %v1397
      %v1399 = vrot.slane %v1089, 1
      %v1400 = vrot.slane %v1137, 1
      %v1401 = vsel %vm1368, %v1399, %v1400
      %v1402 = vrot.slane %v1090, 1
      %v1403 = vrot.slane %v1138, 1
      %v1404 = vsel %vm1368, %v1402, %v1403
      %v1405 = vrot.slane %v1091, 1
      %v1406 = vrot.slane %v1139, 1
      %v1407 = vsel %vm1368, %v1405, %v1406
      %v1408 = vrot.slane %v1092, 1
      %v1409 = vrot.slane %v1140, 1
      %v1410 = vsel %vm1368, %v1408, %v1409
      %v1411 = vrot.slane %v1093, 1
      %v1412 = vrot.slane %v1141, 1
      %v1413 = vsel %vm1368, %v1411, %v1412
      %v1414 = vrot.slane %v1094, 1
      %v1415 = vrot.slane %v1142, 1
      %v1416 = vsel %vm1368, %v1414, %v1415
      %1417 = vrot.lane.b32.xlu0 %v1371, 8
      %v1418 = vpop.permute.xlu0 %1417
      %1419 = vrot.lane.b32.xlu0 %v1374, 8
      %v1420 = vpop.permute.xlu0 %1419
      %1421 = vrot.lane.b32.xlu0 %v1377, 8
      %v1422 = vpop.permute.xlu0 %1421
      %1423 = vrot.lane.b32.xlu0 %v1380, 8
      %v1424 = vpop.permute.xlu0 %1423
      %1425 = vrot.lane.b32.xlu0 %v1383, 8
      %v1426 = vpop.permute.xlu0 %1425
      %1427 = vrot.lane.b32.xlu0 %v1386, 8
      %v1428 = vpop.permute.xlu0 %1427
      %1429 = vrot.lane.b32.xlu0 %v1389, 8
      %v1430 = vpop.permute.xlu0 %1429
      %1431 = vrot.lane.b32.xlu0 %v1392, 8
      %v1432 = vpop.permute.xlu0 %1431
      %1433 = vrot.lane.b32.xlu0 %v1395, 8
      %v1434 = vpop.permute.xlu0 %1433
      %1435 = vrot.lane.b32.xlu0 %v1398, 8
      %v1436 = vpop.permute.xlu0 %1435
      %1437 = vrot.lane.b32.xlu0 %v1401, 8
      %v1438 = vpop.permute.xlu0 %1437
      %1439 = vrot.lane.b32.xlu0 %v1404, 8
      %v1440 = vpop.permute.xlu0 %1439
      %1441 = vrot.lane.b32.xlu0 %v1407, 8
      %v1442 = vpop.permute.xlu0 %1441
      %1443 = vrot.lane.b32.xlu0 %v1410, 8
      %v1444 = vpop.permute.xlu0 %1443
      %1445 = vrot.lane.b32.xlu0 %v1413, 8
      %v1446 = vpop.permute.xlu0 %1445
      %1447 = vrot.lane.b32.xlu0 %v1416, 8
      %v1448 = vpop.permute.xlu0 %1447
      %v1451 = vunpack.c.l.b16 %v1009
      %v1452 = vunpack.c.l.b16 %v1010
      %v1453 = vpack.c.b16 %v1452, %v1451
      %1454 = vrot.lane.b32.xlu0 %v1080, 12
      %v1455 = vpop.permute.xlu0 %1454
      %1456 = vrot.lane.b32.xlu0 %v1081, 12
      %v1457 = vpop.permute.xlu0 %1456
      %1458 = vrot.lane.b32.xlu0 %v1082, 12
      %v1459 = vpop.permute.xlu0 %1458
      %1460 = vrot.lane.b32.xlu0 %v1083, 12
      %v1461 = vpop.permute.xlu0 %1460
      %1462 = vrot.lane.b32.xlu0 %v1084, 12
      %v1463 = vpop.permute.xlu0 %1462
      %1464 = vrot.lane.b32.xlu0 %v1085, 12
      %v1465 = vpop.permute.xlu0 %1464
      %1466 = vrot.lane.b32.xlu0 %v1086, 12
      %v1467 = vpop.permute.xlu0 %1466
      %1468 = vrot.lane.b32.xlu0 %v1087, 12
      %v1469 = vpop.permute.xlu0 %1468
      %1470 = vrot.lane.b32.xlu0 %v1088, 12
      %v1471 = vpop.permute.xlu0 %1470
      %1472 = vrot.lane.b32.xlu0 %v1089, 12
      %v1473 = vpop.permute.xlu0 %1472
      %1474 = vrot.lane.b32.xlu0 %v1090, 12
      %v1475 = vpop.permute.xlu0 %1474
      %1476 = vrot.lane.b32.xlu0 %v1091, 12
      %v1477 = vpop.permute.xlu0 %1476
      %1478 = vrot.lane.b32.xlu0 %v1092, 12
      %v1479 = vpop.permute.xlu0 %1478
      %1480 = vrot.lane.b32.xlu0 %v1093, 12
      %v1481 = vpop.permute.xlu0 %1480
      %1482 = vrot.lane.b32.xlu0 %v1094, 12
      %v1483 = vpop.permute.xlu0 %1482
      %1484 = vrot.lane.b32.xlu0 %v1453, 12
      %v1485 = vpop.permute.xlu0 %1484
      %v1487 = vunpack.c.l.b16 %v1011
      %v1488 = vpack.c.b16 %v1487, %v1487
      %v1490 = vshrl.u32 %v1453, 16
      %v1492 = vshll.u32 %v1453, 16
      %v1494 = vrot.slane %v1492, 1
      %v1495 = vor.u32 %v1490, %v1494
      %v1497 = vshll.u32 %v1488, 16
      %v1499 = vrot.slane %v1497, 1
      %v1500 = vsel %vm1143, %v1495, %v1499
      %1501 = vrot.lane.b32.xlu0 %v1167, 16
      %v1502 = vpop.permute.xlu0 %1501
      %1503 = vrot.lane.b32.xlu0 %v1179, 16
      %v1504 = vpop.permute.xlu0 %1503
      %1505 = vrot.lane.b32.xlu0 %v1191, 16
      %v1506 = vpop.permute.xlu0 %1505
      %1507 = vrot.lane.b32.xlu0 %v1203, 16
      %v1508 = vpop.permute.xlu0 %1507
      %1509 = vrot.lane.b32.xlu0 %v1215, 16
      %v1510 = vpop.permute.xlu0 %1509
      %1511 = vrot.lane.b32.xlu0 %v1227, 16
      %v1512 = vpop.permute.xlu0 %1511
      %1513 = vrot.lane.b32.xlu0 %v1239, 16
      %v1514 = vpop.permute.xlu0 %1513
      %1515 = vrot.lane.b32.xlu0 %v1251, 16
      %v1516 = vpop.permute.xlu0 %1515
      %1517 = vrot.lane.b32.xlu0 %v1263, 16
      %v1518 = vpop.permute.xlu0 %1517
      %1519 = vrot.lane.b32.xlu0 %v1275, 16
      %v1520 = vpop.permute.xlu0 %1519
      %1521 = vrot.lane.b32.xlu0 %v1287, 16
      %v1522 = vpop.permute.xlu0 %1521
      %1523 = vrot.lane.b32.xlu0 %v1299, 16
      %v1524 = vpop.permute.xlu0 %1523
      %1525 = vrot.lane.b32.xlu0 %v1311, 16
      %v1526 = vpop.permute.xlu0 %1525
      %1527 = vrot.lane.b32.xlu0 %v1323, 16
      %v1528 = vpop.permute.xlu0 %1527
      %1529 = vrot.lane.b32.xlu0 %v1335, 16
      %v1530 = vpop.permute.xlu0 %1529
      %1531 = vrot.lane.b32.xlu0 %v1500, 16
      %v1532 = vpop.permute.xlu0 %1531
      %v1533 = vrot.slane %v1453, 1
      %v1534 = vrot.slane %v1488, 1
      %v1535 = vsel %vm1368, %v1533, %v1534
      %1536 = vrot.lane.b32.xlu0 %v1374, 20
      %v1537 = vpop.permute.xlu0 %1536
      %1538 = vrot.lane.b32.xlu0 %v1377, 20
      %v1539 = vpop.permute.xlu0 %1538
      %1540 = vrot.lane.b32.xlu0 %v1380, 20
      %v1541 = vpop.permute.xlu0 %1540
      %1542 = vrot.lane.b32.xlu0 %v1383, 20
      %v1543 = vpop.permute.xlu0 %1542
      %1544 = vrot.lane.b32.xlu0 %v1386, 20
      %v1545 = vpop.permute.xlu0 %1544
      %1546 = vrot.lane.b32.xlu0 %v1389, 20
      %v1547 = vpop.permute.xlu0 %1546
      %1548 = vrot.lane.b32.xlu0 %v1392, 20
      %v1549 = vpop.permute.xlu0 %1548
      %1550 = vrot.lane.b32.xlu0 %v1395, 20
      %v1551 = vpop.permute.xlu0 %1550
      %1552 = vrot.lane.b32.xlu0 %v1398, 20
      %v1553 = vpop.permute.xlu0 %1552
      %1554 = vrot.lane.b32.xlu0 %v1401, 20
      %v1555 = vpop.permute.xlu0 %1554
      %1556 = vrot.lane.b32.xlu0 %v1404, 20
      %v1557 = vpop.permute.xlu0 %1556
      %1558 = vrot.lane.b32.xlu0 %v1407, 20
      %v1559 = vpop.permute.xlu0 %1558
      %1560 = vrot.lane.b32.xlu0 %v1410, 20
      %v1561 = vpop.permute.xlu0 %1560
      %1562 = vrot.lane.b32.xlu0 %v1413, 20
      %v1563 = vpop.permute.xlu0 %1562
      %1564 = vrot.lane.b32.xlu0 %v1416, 20
      %v1565 = vpop.permute.xlu0 %1564
      %1566 = vrot.lane.b32.xlu0 %v1535, 20
      %v1567 = vpop.permute.xlu0 %1566
      %v1570 = vunpack.c.l.b16 %v1012
      %v1571 = vunpack.c.l.b16 %v1013
      %v1572 = vpack.c.b16 %v1571, %v1570
      %1573 = vrot.lane.b32.xlu0 %v1081, 24
      %v1574 = vpop.permute.xlu0 %1573
      %1575 = vrot.lane.b32.xlu0 %v1082, 24
      %v1576 = vpop.permute.xlu0 %1575
      %1577 = vrot.lane.b32.xlu0 %v1083, 24
      %v1578 = vpop.permute.xlu0 %1577
      %1579 = vrot.lane.b32.xlu0 %v1084, 24
      %v1580 = vpop.permute.xlu0 %1579
      %1581 = vrot.lane.b32.xlu0 %v1085, 24
      %v1582 = vpop.permute.xlu0 %1581
      %1583 = vrot.lane.b32.xlu0 %v1086, 24
      %v1584 = vpop.permute.xlu0 %1583
      %1585 = vrot.lane.b32.xlu0 %v1087, 24
      %v1586 = vpop.permute.xlu0 %1585
      %1587 = vrot.lane.b32.xlu0 %v1088, 24
      %v1588 = vpop.permute.xlu0 %1587
      %1589 = vrot.lane.b32.xlu0 %v1089, 24
      %v1590 = vpop.permute.xlu0 %1589
      %1591 = vrot.lane.b32.xlu0 %v1090, 24
      %v1592 = vpop.permute.xlu0 %1591
      %1593 = vrot.lane.b32.xlu0 %v1091, 24
      %v1594 = vpop.permute.xlu0 %1593
      %1595 = vrot.lane.b32.xlu0 %v1092, 24
      %v1596 = vpop.permute.xlu0 %1595
      %1597 = vrot.lane.b32.xlu0 %v1093, 24
      %v1598 = vpop.permute.xlu0 %1597
      %1599 = vrot.lane.b32.xlu0 %v1094, 24
      %v1600 = vpop.permute.xlu0 %1599
      %1601 = vrot.lane.b32.xlu0 %v1453, 24
      %v1602 = vpop.permute.xlu0 %1601
      %1603 = vrot.lane.b32.xlu0 %v1572, 24
      %v1604 = vpop.permute.xlu0 %1603
      %v1606 = vunpack.c.l.b16 %v1014
      %v1607 = vpack.c.b16 %v1606, %v1606
      %v1609 = vshrl.u32 %v1572, 16
      %v1611 = vshll.u32 %v1572, 16
      %v1613 = vrot.slane %v1611, 1
      %v1614 = vor.u32 %v1609, %v1613
      %v1616 = vshll.u32 %v1607, 16
      %v1618 = vrot.slane %v1616, 1
      %v1619 = vsel %vm1143, %v1614, %v1618
      %1620 = vrot.lane.b32.xlu0 %v1179, 28
      %v1621 = vpop.permute.xlu0 %1620
      %1622 = vrot.lane.b32.xlu0 %v1191, 28
      %v1623 = vpop.permute.xlu0 %1622
      %1624 = vrot.lane.b32.xlu0 %v1203, 28
      %v1625 = vpop.permute.xlu0 %1624
      %1626 = vrot.lane.b32.xlu0 %v1215, 28
      %v1627 = vpop.permute.xlu0 %1626
      %1628 = vrot.lane.b32.xlu0 %v1227, 28
      %v1629 = vpop.permute.xlu0 %1628
      %1630 = vrot.lane.b32.xlu0 %v1239, 28
      %v1631 = vpop.permute.xlu0 %1630
      %1632 = vrot.lane.b32.xlu0 %v1251, 28
      %v1633 = vpop.permute.xlu0 %1632
      %1634 = vrot.lane.b32.xlu0 %v1263, 28
      %v1635 = vpop.permute.xlu0 %1634
      %1636 = vrot.lane.b32.xlu0 %v1275, 28
      %v1637 = vpop.permute.xlu0 %1636
      %1638 = vrot.lane.b32.xlu0 %v1287, 28
      %v1639 = vpop.permute.xlu0 %1638
      %1640 = vrot.lane.b32.xlu0 %v1299, 28
      %v1641 = vpop.permute.xlu0 %1640
      %1642 = vrot.lane.b32.xlu0 %v1311, 28
      %v1643 = vpop.permute.xlu0 %1642
      %1644 = vrot.lane.b32.xlu0 %v1323, 28
      %v1645 = vpop.permute.xlu0 %1644
      %1646 = vrot.lane.b32.xlu0 %v1335, 28
      %v1647 = vpop.permute.xlu0 %1646
      %1648 = vrot.lane.b32.xlu0 %v1500, 28
      %v1649 = vpop.permute.xlu0 %1648
      %1650 = vrot.lane.b32.xlu0 %v1619, 28
      %v1651 = vpop.permute.xlu0 %1650
      %v1652 = vrot.slane %v1572, 1
      %v1653 = vrot.slane %v1607, 1
      %v1654 = vsel %vm1368, %v1652, %v1653
      %1655 = vrot.lane.b32.xlu0 %v1377, 32
      %v1656 = vpop.permute.xlu0 %1655
      %1657 = vrot.lane.b32.xlu0 %v1380, 32
      %v1658 = vpop.permute.xlu0 %1657
      %1659 = vrot.lane.b32.xlu0 %v1383, 32
      %v1660 = vpop.permute.xlu0 %1659
      %1661 = vrot.lane.b32.xlu0 %v1386, 32
      %v1662 = vpop.permute.xlu0 %1661
      %1663 = vrot.lane.b32.xlu0 %v1389, 32
      %v1664 = vpop.permute.xlu0 %1663
      %1665 = vrot.lane.b32.xlu0 %v1392, 32
      %v1666 = vpop.permute.xlu0 %1665
      %1667 = vrot.lane.b32.xlu0 %v1395, 32
      %v1668 = vpop.permute.xlu0 %1667
      %1669 = vrot.lane.b32.xlu0 %v1398, 32
      %v1670 = vpop.permute.xlu0 %1669
      %1671 = vrot.lane.b32.xlu0 %v1401, 32
      %v1672 = vpop.permute.xlu0 %1671
      %1673 = vrot.lane.b32.xlu0 %v1404, 32
      %v1674 = vpop.permute.xlu0 %1673
      %1675 = vrot.lane.b32.xlu0 %v1407, 32
      %v1676 = vpop.permute.xlu0 %1675
      %1677 = vrot.lane.b32.xlu0 %v1410, 32
      %v1678 = vpop.permute.xlu0 %1677
      %1679 = vrot.lane.b32.xlu0 %v1413, 32
      %v1680 = vpop.permute.xlu0 %1679
      %1681 = vrot.lane.b32.xlu0 %v1416, 32
      %v1682 = vpop.permute.xlu0 %1681
      %1683 = vrot.lane.b32.xlu0 %v1535, 32
      %v1684 = vpop.permute.xlu0 %1683
      %1685 = vrot.lane.b32.xlu0 %v1654, 32
      %v1686 = vpop.permute.xlu0 %1685
      %vm1687 = vcmask 31744
      %v1689 = vsel %vm1687, %v1079, %v1337
      %v1691 = vsel %vm1687, %v1080, %v1339
      %v1693 = vsel %vm1687, %v1081, %v1341
      %v1695 = vsel %vm1687, %v1082, %v1343
      %v1697 = vsel %vm1687, %v1083, %v1345
      %v1699 = vsel %vm1687, %v1084, %v1347
      %v1701 = vsel %vm1687, %v1085, %v1349
      %v1703 = vsel %vm1687, %v1086, %v1351
      %v1705 = vsel %vm1687, %v1087, %v1353
      %v1707 = vsel %vm1687, %v1088, %v1355
      %v1709 = vsel %vm1687, %v1089, %v1357
      %v1711 = vsel %vm1687, %v1090, %v1359
      %v1713 = vsel %vm1687, %v1091, %v1361
      %v1715 = vsel %vm1687, %v1092, %v1363
      %v1717 = vsel %vm1687, %v1093, %v1365
      %v1719 = vsel %vm1687, %v1094, %v1367
      %vm1720 = vcmask 64512
      %v1722 = vsel %vm1720, %v1689, %v1418
      %v1724 = vsel %vm1720, %v1691, %v1420
      %v1726 = vsel %vm1720, %v1693, %v1422
      %v1728 = vsel %vm1720, %v1695, %v1424
      %v1730 = vsel %vm1720, %v1697, %v1426
      %v1732 = vsel %vm1720, %v1699, %v1428
      %v1734 = vsel %vm1720, %v1701, %v1430
      %v1736 = vsel %vm1720, %v1703, %v1432
      %v1738 = vsel %vm1720, %v1705, %v1434
      %v1740 = vsel %vm1720, %v1707, %v1436
      %v1742 = vsel %vm1720, %v1709, %v1438
      %v1744 = vsel %vm1720, %v1711, %v1440
      %v1746 = vsel %vm1720, %v1713, %v1442
      %v1748 = vsel %vm1720, %v1715, %v1444
      %v1750 = vsel %vm1720, %v1717, %v1446
      %v1752 = vsel %vm1720, %v1719, %v1448
      %vm1753 = vcmask 97280
      %v1755 = vsel %vm1753, %v1722, %v1455
      %v1757 = vsel %vm1753, %v1724, %v1457
      %v1759 = vsel %vm1753, %v1726, %v1459
      %v1761 = vsel %vm1753, %v1728, %v1461
      %v1763 = vsel %vm1753, %v1730, %v1463
      %v1765 = vsel %vm1753, %v1732, %v1465
      %v1767 = vsel %vm1753, %v1734, %v1467
      %v1769 = vsel %vm1753, %v1736, %v1469
      %v1771 = vsel %vm1753, %v1738, %v1471
      %v1773 = vsel %vm1753, %v1740, %v1473
      %v1775 = vsel %vm1753, %v1742, %v1475
      %v1777 = vsel %vm1753, %v1744, %v1477
      %v1779 = vsel %vm1753, %v1746, %v1479
      %v1781 = vsel %vm1753, %v1748, %v1481
      %v1783 = vsel %vm1753, %v1750, %v1483
      %v1785 = vsel %vm1753, %v1752, %v1485
      %vm1786 = vcmask 130048
      %v1788 = vsel %vm1786, %v1755, %v1502
      %v1790 = vsel %vm1786, %v1757, %v1504
      %v1792 = vsel %vm1786, %v1759, %v1506
      %v1794 = vsel %vm1786, %v1761, %v1508
      %v1796 = vsel %vm1786, %v1763, %v1510
      %v1798 = vsel %vm1786, %v1765, %v1512
      %v1800 = vsel %vm1786, %v1767, %v1514
      %v1802 = vsel %vm1786, %v1769, %v1516
      %v1804 = vsel %vm1786, %v1771, %v1518
      %v1806 = vsel %vm1786, %v1773, %v1520
      %v1808 = vsel %vm1786, %v1775, %v1522
      %v1810 = vsel %vm1786, %v1777, %v1524
      %v1812 = vsel %vm1786, %v1779, %v1526
      %v1814 = vsel %vm1786, %v1781, %v1528
      %v1816 = vsel %vm1786, %v1783, %v1530
      %v1818 = vsel %vm1786, %v1785, %v1532
      %vm1819 = vcmask 162816
      %v1821 = vsel %vm1819, %v1788, %v1537
      %v1823 = vsel %vm1819, %v1790, %v1539
      %v1825 = vsel %vm1819, %v1792, %v1541
      %v1827 = vsel %vm1819, %v1794, %v1543
      %v1829 = vsel %vm1819, %v1796, %v1545
      %v1831 = vsel %vm1819, %v1798, %v1547
      %v1833 = vsel %vm1819, %v1800, %v1549
      %v1835 = vsel %vm1819, %v1802, %v1551
      %v1837 = vsel %vm1819, %v1804, %v1553
      %v1839 = vsel %vm1819, %v1806, %v1555
      %v1841 = vsel %vm1819, %v1808, %v1557
      %v1843 = vsel %vm1819, %v1810, %v1559
      %v1845 = vsel %vm1819, %v1812, %v1561
      %v1847 = vsel %vm1819, %v1814, %v1563
      %v1849 = vsel %vm1819, %v1816, %v1565
      %v1851 = vsel %vm1819, %v1818, %v1567
      %vm1852 = vcmask 195584
      %v1854 = vsel %vm1852, %v1821, %v1574
      %v1856 = vsel %vm1852, %v1823, %v1576
      %v1858 = vsel %vm1852, %v1825, %v1578
      %v1860 = vsel %vm1852, %v1827, %v1580
      %v1862 = vsel %vm1852, %v1829, %v1582
      %v1864 = vsel %vm1852, %v1831, %v1584
      %v1866 = vsel %vm1852, %v1833, %v1586
      %v1868 = vsel %vm1852, %v1835, %v1588
      %v1870 = vsel %vm1852, %v1837, %v1590
      %v1872 = vsel %vm1852, %v1839, %v1592
      %v1874 = vsel %vm1852, %v1841, %v1594
      %v1876 = vsel %vm1852, %v1843, %v1596
      %v1878 = vsel %vm1852, %v1845, %v1598
      %v1880 = vsel %vm1852, %v1847, %v1600
      %v1882 = vsel %vm1852, %v1849, %v1602
      %v1884 = vsel %vm1852, %v1851, %v1604
      %vm1885 = vcmask 228352
      %v1887 = vsel %vm1885, %v1854, %v1621
      %v1889 = vsel %vm1885, %v1856, %v1623
      %v1891 = vsel %vm1885, %v1858, %v1625
      %v1893 = vsel %vm1885, %v1860, %v1627
      %v1895 = vsel %vm1885, %v1862, %v1629
      %v1897 = vsel %vm1885, %v1864, %v1631
      %v1899 = vsel %vm1885, %v1866, %v1633
      %v1901 = vsel %vm1885, %v1868, %v1635
      %v1903 = vsel %vm1885, %v1870, %v1637
      %v1905 = vsel %vm1885, %v1872, %v1639
      %v1907 = vsel %vm1885, %v1874, %v1641
      %v1909 = vsel %vm1885, %v1876, %v1643
      %v1911 = vsel %vm1885, %v1878, %v1645
      %v1913 = vsel %vm1885, %v1880, %v1647
      %v1915 = vsel %vm1885, %v1882, %v1649
      %v1917 = vsel %vm1885, %v1884, %v1651
      %vm1918 = vcmask 261120
      %v1920 = vsel %vm1918, %v1887, %v1656
      %v1922 = vsel %vm1918, %v1889, %v1658
      %v1924 = vsel %vm1918, %v1891, %v1660
      %v1926 = vsel %vm1918, %v1893, %v1662
      %v1928 = vsel %vm1918, %v1895, %v1664
      %v1930 = vsel %vm1918, %v1897, %v1666
      %v1932 = vsel %vm1918, %v1899, %v1668
      %v1934 = vsel %vm1918, %v1901, %v1670
      %v1936 = vsel %vm1918, %v1903, %v1672
      %v1938 = vsel %vm1918, %v1905, %v1674
      %v1940 = vsel %vm1918, %v1907, %v1676
      %v1942 = vsel %vm1918, %v1909, %v1678
      %v1944 = vsel %vm1918, %v1911, %v1680
      %v1946 = vsel %vm1918, %v1913, %v1682
      %v1948 = vsel %vm1918, %v1915, %v1684
      %v1950 = vsel %vm1918, %v1917, %v1686
      %v1951 = vld [vmem:[%s4] sm:$0xf]
      %v1952 = vld [vmem:[%s4 + $0x4] sm:$0xf]
      %v1953 = vld [vmem:[%s4 + $0x8] sm:$0xf]
      %v1954 = vld [vmem:[%s4 + $0xc] sm:$0xf]
      %v1955 = vld [vmem:[%s4 + $0x10] sm:$0x3]
      %v1961 = vunpack.c.l.b16 %v1951
      %v1962 = vunpack.c.l.b16 %v1952
      %v1963 = vunpack.c.l.b16 %v1953
      %v1964 = vunpack.c.l.b16 %v1954
      %v1965 = vunpack.c.l.b16 %v1955
      %v1966 = vpack.c.b16 %v1962, %v1961
      %v1967 = vpack.c.b16 %v1964, %v1963
      %v1968 = vpack.c.b16 %v1965, %v1965
      %vm1971 = vcmask 293888
      %v1972 = vsel %vm1971, %v1920, 0
      %v1974 = vsel %vm1971, %v1922, 0
      %v1976 = vsel %vm1971, %v1924, 0
      %v1978 = vsel %vm1971, %v1926, 0
      %v1980 = vsel %vm1971, %v1928, 0
      %v1982 = vsel %vm1971, %v1930, 0
      %v1984 = vsel %vm1971, %v1932, 0
      %v1986 = vsel %vm1971, %v1934, 0
      %v1988 = vsel %vm1971, %v1936, 0
      %v1990 = vsel %vm1971, %v1938, 0
      %v1992 = vsel %vm1971, %v1940, 0
      %v1994 = vsel %vm1971, %v1942, 0
      %v1996 = vsel %vm1971, %v1944, 0
      %v1998 = vsel %vm1971, %v1946, 0
      %v2000 = vsel %vm1971, %v1948, 0
      %v2002 = vsel %vm1971, %v1950, 0
      %vm2004 = vcmask 1041408
      %v2006 = vsel %vm2004, %v1968, 0
      %2008 = vmatpush.bf16.msra.mxu0 0
      %2009 = vmatpush.bf16.msra.mxu0 0
      %2010 = vmatpush.bf16.msra.mxu0 0
      %2011 = vmatpush.bf16.msra.mxu0 0
      %2012 = vmatpush.bf16.msra.mxu0 0
      %2013 = vmatpush.bf16.msra.mxu0 %v2006
      %2014 = vmatpush.bf16.msra.mxu0 %v1967
      %2015 = vmatpush.bf16.msra.mxu0 %v1966
      %2016 = vmatmul.bf16.gmra.mxu0 %v1972
      %v2017 = vpop.f32.mrf.mxu0
      %v2018 = vadd.f32 0.0, %v2017
      %v2019 = vpop.f32.mrf.mxu0
      %v2020 = vadd.f32 0.0, %v2019
      %2021 = vmatmul.bf16.gmra.mxu0 %v1974
      %v2022 = vpop.f32.mrf.mxu0
      %v2023 = vadd.f32 0.0, %v2022
      %v2024 = vpop.f32.mrf.mxu0
      %v2025 = vadd.f32 0.0, %v2024
      %2026 = vmatmul.bf16.gmra.mxu0 %v1976
      %v2027 = vpop.f32.mrf.mxu0
      %v2028 = vadd.f32 0.0, %v2027
      %v2029 = vpop.f32.mrf.mxu0
      %v2030 = vadd.f32 0.0, %v2029
      %2031 = vmatmul.bf16.gmra.mxu0 %v1978
      %v2032 = vpop.f32.mrf.mxu0
      %v2033 = vadd.f32 0.0, %v2032
      %v2034 = vpop.f32.mrf.mxu0
      %v2035 = vadd.f32 0.0, %v2034
      %2036 = vmatmul.bf16.gmra.mxu0 %v1980
      %v2037 = vpop.f32.mrf.mxu0
      %v2038 = vadd.f32 0.0, %v2037
      %v2039 = vpop.f32.mrf.mxu0
      %v2040 = vadd.f32 0.0, %v2039
      %2041 = vmatmul.bf16.gmra.mxu0 %v1982
      %v2042 = vpop.f32.mrf.mxu0
      %v2043 = vadd.f32 0.0, %v2042
      %v2044 = vpop.f32.mrf.mxu0
      %v2045 = vadd.f32 0.0, %v2044
      %2046 = vmatmul.bf16.gmra.mxu0 %v1984
      %v2047 = vpop.f32.mrf.mxu0
      %v2048 = vadd.f32 0.0, %v2047
      %v2049 = vpop.f32.mrf.mxu0
      %v2050 = vadd.f32 0.0, %v2049
      %2051 = vmatmul.bf16.gmra.mxu0 %v1986
      %v2052 = vpop.f32.mrf.mxu0
      %v2053 = vadd.f32 0.0, %v2052
      %v2054 = vpop.f32.mrf.mxu0
      %v2055 = vadd.f32 0.0, %v2054
      %2056 = vmatmul.bf16.gmra.mxu0 %v1988
      %v2057 = vpop.f32.mrf.mxu0
      %v2058 = vadd.f32 0.0, %v2057
      %v2059 = vpop.f32.mrf.mxu0
      %v2060 = vadd.f32 0.0, %v2059
      %2061 = vmatmul.bf16.gmra.mxu0 %v1990
      %v2062 = vpop.f32.mrf.mxu0
      %v2063 = vadd.f32 0.0, %v2062
      %v2064 = vpop.f32.mrf.mxu0
      %v2065 = vadd.f32 0.0, %v2064
      %2066 = vmatmul.bf16.gmra.mxu0 %v1992
      %v2067 = vpop.f32.mrf.mxu0
      %v2068 = vadd.f32 0.0, %v2067
      %v2069 = vpop.f32.mrf.mxu0
      %v2070 = vadd.f32 0.0, %v2069
      %2071 = vmatmul.bf16.gmra.mxu0 %v1994
      %v2072 = vpop.f32.mrf.mxu0
      %v2073 = vadd.f32 0.0, %v2072
      %v2074 = vpop.f32.mrf.mxu0
      %v2075 = vadd.f32 0.0, %v2074
      %2076 = vmatmul.bf16.gmra.mxu0 %v1996
      %v2077 = vpop.f32.mrf.mxu0
      %v2078 = vadd.f32 0.0, %v2077
      %v2079 = vpop.f32.mrf.mxu0
      %v2080 = vadd.f32 0.0, %v2079
      %2081 = vmatmul.bf16.gmra.mxu0 %v1998
      %v2082 = vpop.f32.mrf.mxu0
      %v2083 = vadd.f32 0.0, %v2082
      %v2084 = vpop.f32.mrf.mxu0
      %v2085 = vadd.f32 0.0, %v2084
      %2086 = vmatmul.bf16.gmra.mxu0 %v2000
      %v2087 = vpop.f32.mrf.mxu0
      %v2088 = vadd.f32 0.0, %v2087
      %v2089 = vpop.f32.mrf.mxu0
      %v2090 = vadd.f32 0.0, %v2089
      %2091 = vmatmul.bf16.gmra.mxu0 %v2002
      %v2092 = vpop.f32.mrf.mxu0
      %v2093 = vadd.f32 0.0, %v2092
      %v2094 = vpop.f32.mrf.mxu0
      %v2095 = vadd.f32 0.0, %v2094
      %2096 = vdwg.mxu0
      %2097 = vst.msk [vmem:[%s258] sm:$0xff] %vm1687, %v2018
      %2098 = vst.msk [vmem:[%s258 + $0x8] sm:$0xff] %vm1687, %v2020
      %2099 = vst.msk [vmem:[%s258 + $0x10] sm:$0xff] %vm1687, %v2023
      %2100 = vst.msk [vmem:[%s258 + $0x18] sm:$0xff] %vm1687, %v2025
      %2101 = vst.msk [vmem:[%s258 + $0x20] sm:$0xff] %vm1687, %v2028
      %2102 = vst.msk [vmem:[%s258 + $0x28] sm:$0xff] %vm1687, %v2030
      %2103 = vst.msk [vmem:[%s258 + $0x30] sm:$0xff] %vm1687, %v2033
      %2104 = vst.msk [vmem:[%s258 + $0x38] sm:$0xff] %vm1687, %v2035
      %2105 = vst.msk [vmem:[%s258 + $0x40] sm:$0xff] %vm1687, %v2038
      %2106 = vst.msk [vmem:[%s258 + $0x48] sm:$0xff] %vm1687, %v2040
      %2107 = vst.msk [vmem:[%s258 + $0x50] sm:$0xff] %vm1687, %v2043
      %2108 = vst.msk [vmem:[%s258 + $0x58] sm:$0xff] %vm1687, %v2045
      %2109 = vst.msk [vmem:[%s258 + $0x60] sm:$0xff] %vm1687, %v2048
      %2110 = vst.msk [vmem:[%s258 + $0x68] sm:$0xff] %vm1687, %v2050
      %2111 = vst.msk [vmem:[%s258 + $0x70] sm:$0xff] %vm1687, %v2053
      %2112 = vst.msk [vmem:[%s258 + $0x78] sm:$0xff] %vm1687, %v2055
      %2113 = vst.msk [vmem:[%s258 + $0x80] sm:$0xff] %vm1687, %v2058
      %2114 = vst.msk [vmem:[%s258 + $0x88] sm:$0xff] %vm1687, %v2060
      %2115 = vst.msk [vmem:[%s258 + $0x90] sm:$0xff] %vm1687, %v2063
      %2116 = vst.msk [vmem:[%s258 + $0x98] sm:$0xff] %vm1687, %v2065
      %2117 = vst.msk [vmem:[%s258 + $0xa0] sm:$0xff] %vm1687, %v2068
      %2118 = vst.msk [vmem:[%s258 + $0xa8] sm:$0xff] %vm1687, %v2070
      %2119 = vst.msk [vmem:[%s258 + $0xb0] sm:$0xff] %vm1687, %v2073
      %2120 = vst.msk [vmem:[%s258 + $0xb8] sm:$0xff] %vm1687, %v2075
      %2121 = vst.msk [vmem:[%s258 + $0xc0] sm:$0xff] %vm1687, %v2078
      %2122 = vst.msk [vmem:[%s258 + $0xc8] sm:$0xff] %vm1687, %v2080
      %2123 = vst.msk [vmem:[%s258 + $0xd0] sm:$0xff] %vm1687, %v2083
      %2124 = vst.msk [vmem:[%s258 + $0xd8] sm:$0xff] %vm1687, %v2085
      %2125 = vst.msk [vmem:[%s258 + $0xe0] sm:$0xff] %vm1687, %v2088
      %2126 = vst.msk [vmem:[%s258 + $0xe8] sm:$0xff] %vm1687, %v2090
      %2127 = vst.msk [vmem:[%s258 + $0xf0] sm:$0xff] %vm1687, %v2093
      %2128 = vst.msk [vmem:[%s258 + $0xf8] sm:$0xff] %vm1687, %v2095
      %v2129 = vsel %vm1687, %v2018, 0.0
      %v2130 = vsel %vm1687, %v2020, 0.0
      %v2131 = vadd.f32 %v2129, %v2130
      %v2132 = vsel %vm1687, %v2023, 0.0
      %v2133 = vadd.f32 %v2131, %v2132
      %v2134 = vsel %vm1687, %v2025, 0.0
      %v2135 = vadd.f32 %v2133, %v2134
      %v2136 = vsel %vm1687, %v2028, 0.0
      %v2137 = vadd.f32 %v2135, %v2136
      %v2138 = vsel %vm1687, %v2030, 0.0
      %v2139 = vadd.f32 %v2137, %v2138
      %v2140 = vsel %vm1687, %v2033, 0.0
      %v2141 = vadd.f32 %v2139, %v2140
      %v2142 = vsel %vm1687, %v2035, 0.0
      %v2143 = vadd.f32 %v2141, %v2142
      %v2144 = vsel %vm1687, %v2038, 0.0
      %v2145 = vadd.f32 %v2143, %v2144
      %v2146 = vsel %vm1687, %v2040, 0.0
      %v2147 = vadd.f32 %v2145, %v2146
      %v2148 = vsel %vm1687, %v2043, 0.0
      %v2149 = vadd.f32 %v2147, %v2148
      %v2150 = vsel %vm1687, %v2045, 0.0
      %v2151 = vadd.f32 %v2149, %v2150
      %v2152 = vsel %vm1687, %v2048, 0.0
      %v2153 = vadd.f32 %v2151, %v2152
      %v2154 = vsel %vm1687, %v2050, 0.0
      %v2155 = vadd.f32 %v2153, %v2154
      %v2156 = vsel %vm1687, %v2053, 0.0
      %v2157 = vadd.f32 %v2155, %v2156
      %v2158 = vsel %vm1687, %v2055, 0.0
      %v2159 = vadd.f32 %v2157, %v2158
      %v2160 = vsel %vm1687, %v2058, 0.0
      %v2161 = vadd.f32 %v2159, %v2160
      %v2162 = vsel %vm1687, %v2060, 0.0
      %v2163 = vadd.f32 %v2161, %v2162
      %v2164 = vsel %vm1687, %v2063, 0.0
      %v2165 = vadd.f32 %v2163, %v2164
      %v2166 = vsel %vm1687, %v2065, 0.0
      %v2167 = vadd.f32 %v2165, %v2166
      %v2168 = vsel %vm1687, %v2068, 0.0
      %v2169 = vadd.f32 %v2167, %v2168
      %v2170 = vsel %vm1687, %v2070, 0.0
      %v2171 = vadd.f32 %v2169, %v2170
      %v2172 = vsel %vm1687, %v2073, 0.0
      %v2173 = vadd.f32 %v2171, %v2172
      %v2174 = vsel %vm1687, %v2075, 0.0
      %v2175 = vadd.f32 %v2173, %v2174
      %v2176 = vsel %vm1687, %v2078, 0.0
      %v2177 = vadd.f32 %v2175, %v2176
      %v2178 = vsel %vm1687, %v2080, 0.0
      %v2179 = vadd.f32 %v2177, %v2178
      %v2180 = vsel %vm1687, %v2083, 0.0
      %v2181 = vadd.f32 %v2179, %v2180
      %v2182 = vsel %vm1687, %v2085, 0.0
      %v2183 = vadd.f32 %v2181, %v2182
      %v2184 = vsel %vm1687, %v2088, 0.0
      %v2185 = vadd.f32 %v2183, %v2184
      %v2186 = vsel %vm1687, %v2090, 0.0
      %v2187 = vadd.f32 %v2185, %v2186
      %v2188 = vsel %vm1687, %v2093, 0.0
      %v2189 = vadd.f32 %v2187, %v2188
      %v2190 = vsel %vm1687, %v2095, 0.0
      %v2191 = vadd.f32 %v2189, %v2190
      %v2192 = vrot.slane %v2191, 4
      %v2193 = vadd.f32 %v2191, %v2192
      %v2194 = vrot.slane %v2193, 2
      %v2195 = vadd.f32 %v2193, %v2194
      %v2196 = vrot.slane %v2195, 1
      %v2197 = vadd.f32 %v2195, %v2196
      %v2198 = vmul.f32 %v2018, %v2018
      %v2199 = vmul.f32 %v2020, %v2020
      %v2200 = vmul.f32 %v2023, %v2023
      %v2201 = vmul.f32 %v2025, %v2025
      %v2202 = vmul.f32 %v2028, %v2028
      %v2203 = vmul.f32 %v2030, %v2030
      %v2204 = vmul.f32 %v2033, %v2033
      %v2205 = vmul.f32 %v2035, %v2035
      %v2206 = vmul.f32 %v2038, %v2038
      %v2207 = vmul.f32 %v2040, %v2040
      %v2208 = vmul.f32 %v2043, %v2043
      %v2209 = vmul.f32 %v2045, %v2045
      %v2210 = vmul.f32 %v2048, %v2048
      %v2211 = vmul.f32 %v2050, %v2050
      %v2212 = vmul.f32 %v2053, %v2053
      %v2213 = vmul.f32 %v2055, %v2055
      %v2214 = vmul.f32 %v2058, %v2058
      %v2215 = vmul.f32 %v2060, %v2060
      %v2216 = vmul.f32 %v2063, %v2063
      %v2217 = vmul.f32 %v2065, %v2065
      %v2218 = vmul.f32 %v2068, %v2068
      %v2219 = vmul.f32 %v2070, %v2070
      %v2220 = vmul.f32 %v2073, %v2073
      %v2221 = vmul.f32 %v2075, %v2075
      %v2222 = vmul.f32 %v2078, %v2078
      %v2223 = vmul.f32 %v2080, %v2080
      %v2224 = vmul.f32 %v2083, %v2083
      %v2225 = vmul.f32 %v2085, %v2085
      %v2226 = vmul.f32 %v2088, %v2088
      %v2227 = vmul.f32 %v2090, %v2090
      %v2228 = vmul.f32 %v2093, %v2093
      %v2229 = vmul.f32 %v2095, %v2095
      %v2230 = vsel %vm1687, %v2198, 0.0
      %v2231 = vsel %vm1687, %v2199, 0.0
      %v2232 = vadd.f32 %v2230, %v2231
      %v2233 = vsel %vm1687, %v2200, 0.0
      %v2234 = vadd.f32 %v2232, %v2233
      %v2235 = vsel %vm1687, %v2201, 0.0
      %v2236 = vadd.f32 %v2234, %v2235
      %v2237 = vsel %vm1687, %v2202, 0.0
      %v2238 = vadd.f32 %v2236, %v2237
      %v2239 = vsel %vm1687, %v2203, 0.0
      %v2240 = vadd.f32 %v2238, %v2239
      %v2241 = vsel %vm1687, %v2204, 0.0
      %v2242 = vadd.f32 %v2240, %v2241
      %v2243 = vsel %vm1687, %v2205, 0.0
      %v2244 = vadd.f32 %v2242, %v2243
      %v2245 = vsel %vm1687, %v2206, 0.0
      %v2246 = vadd.f32 %v2244, %v2245
      %v2247 = vsel %vm1687, %v2207, 0.0
      %v2248 = vadd.f32 %v2246, %v2247
      %v2249 = vsel %vm1687, %v2208, 0.0
      %v2250 = vadd.f32 %v2248, %v2249
      %v2251 = vsel %vm1687, %v2209, 0.0
      %v2252 = vadd.f32 %v2250, %v2251
      %v2253 = vsel %vm1687, %v2210, 0.0
      %v2254 = vadd.f32 %v2252, %v2253
      %v2255 = vsel %vm1687, %v2211, 0.0
      %v2256 = vadd.f32 %v2254, %v2255
      %v2257 = vsel %vm1687, %v2212, 0.0
      %v2258 = vadd.f32 %v2256, %v2257
      %v2259 = vsel %vm1687, %v2213, 0.0
      %v2260 = vadd.f32 %v2258, %v2259
      %v2261 = vsel %vm1687, %v2214, 0.0
      %v2262 = vadd.f32 %v2260, %v2261
      %v2263 = vsel %vm1687, %v2215, 0.0
      %v2264 = vadd.f32 %v2262, %v2263
      %v2265 = vsel %vm1687, %v2216, 0.0
      %v2266 = vadd.f32 %v2264, %v2265
      %v2267 = vsel %vm1687, %v2217, 0.0
      %v2268 = vadd.f32 %v2266, %v2267
      %v2269 = vsel %vm1687, %v2218, 0.0
      %v2270 = vadd.f32 %v2268, %v2269
      %v2271 = vsel %vm1687, %v2219, 0.0
      %v2272 = vadd.f32 %v2270, %v2271
      %v2273 = vsel %vm1687, %v2220, 0.0
      %v2274 = vadd.f32 %v2272, %v2273
      %v2275 = vsel %vm1687, %v2221, 0.0
      %v2276 = vadd.f32 %v2274, %v2275
      %v2277 = vsel %vm1687, %v2222, 0.0
      %v2278 = vadd.f32 %v2276, %v2277
      %v2279 = vsel %vm1687, %v2223, 0.0
      %v2280 = vadd.f32 %v2278, %v2279
      %v2281 = vsel %vm1687, %v2224, 0.0
      %v2282 = vadd.f32 %v2280, %v2281
      %v2283 = vsel %vm1687, %v2225, 0.0
      %v2284 = vadd.f32 %v2282, %v2283
      %v2285 = vsel %vm1687, %v2226, 0.0
      %v2286 = vadd.f32 %v2284, %v2285
      %v2287 = vsel %vm1687, %v2227, 0.0
      %v2288 = vadd.f32 %v2286, %v2287
      %v2289 = vsel %vm1687, %v2228, 0.0
      %v2290 = vadd.f32 %v2288, %v2289
      %v2291 = vsel %vm1687, %v2229, 0.0
      %v2292 = vadd.f32 %v2290, %v2291
      %v2293 = vrot.slane %v2292, 4
      %v2294 = vadd.f32 %v2292, %v2293
      %v2295 = vrot.slane %v2294, 2
      %v2296 = vadd.f32 %v2294, %v2295
      %v2297 = vrot.slane %v2296, 1
      %v2298 = vadd.f32 %v2296, %v2297
      %vm2299 = vcmask 1040384
      %v2300 = vsel %vm2299, %v2197, %v2298
      %2301 = vst.msk [vmem:[%s262] sm:$0x3] %vm268, %v2300
      %p2302 = scmp.lt.s32.totalorder %s18, 1
      %s2303 = scalar_select %p2302, %s18, 1
      %s2304 = smul.addr %s2303, 32
      %s2305 = smul.addr %s2304, 8
      %s2306 = scalar_lea.vmem %s5, %s2305
      %p2307 = scmp.lt.s32.totalorder %s18, 1
      %s2308 = scalar_select %p2307, %s18, 1
      %s2309 = smul.addr %s2308, 2
      %s2310 = scalar_lea.vmem %s6, %s2309
      // Predicated region
      $region41: #{resnet_basic_block.4} parent=39 // pred_check
        %p2311 = pneg %p146
      $region42: #{resnet_basic_block.4} parent=39 // pred_check_branch
        %2313 = sbr.rel (%p2311) target = $region44
      $region43: #{resnet_basic_block.4} parent=39 // pred_region
        _
      $region44: #{resnet_basic_block.4} parent=39 // pred_fallthru
        _
      // Predicated region
      $region45: #{resnet_basic_block.4} parent=39 // pred_check
        %p2314 = pneg %p172
      $region46: #{resnet_basic_block.4} parent=39 // pred_check_branch
        %2316 = sbr.rel (%p2314) target = $region48
      $region47: #{resnet_basic_block.4} parent=39 // pred_region
        _
      $region48: #{resnet_basic_block.4} parent=39 // pred_fallthru
        _
    $region40: #{resnet_basic_block.4} parent=5 // pred_fallthru
      _
    %p2317 = scmp.le.s32.totalorder 2, %s13
    // Predicated region
    $region49: #{resnet_basic_block.4} parent=5 // pred_check
      %p2318 = pneg %p2317
    $region50: #{resnet_basic_block.4} parent=5 // pred_check_branch
      %2320 = sbr.rel (%p2318) target = $region52
    $region51: #{resnet_basic_block.4} parent=5 // pred_region
      %s2321 = ssub.s32 %s13, 2
      // Predicated region
      $region53: #{resnet_basic_block.4} parent=51 // pred_check
        %p2322 = pneg %p152
      $region54: #{resnet_basic_block.4} parent=51 // pred_check_branch
        %2324 = sbr.rel (%p2322) target = $region56
      $region55: #{resnet_basic_block.4} parent=51 // pred_region
        %p2325 = scmp.lt.s32.totalorder %s19, 1
        %s2326 = scalar_select %p2325, %s19, 1
        %s2327 = smul.addr %s2326, 32
        %s2328 = smul.addr %s2327, 8
        %s2329 = scalar_lea.vmem %s5, %s2328
      $region56: #{resnet_basic_block.4} parent=51 // pred_fallthru
        _
      // Predicated region
      $region57: #{resnet_basic_block.4} parent=51 // pred_check
        %p2330 = pneg %p178
      $region58: #{resnet_basic_block.4} parent=51 // pred_check_branch
        %2332 = sbr.rel (%p2330) target = $region60
      $region59: #{resnet_basic_block.4} parent=51 // pred_region
        %p2333 = scmp.lt.s32.totalorder %s19, 1
        %s2334 = scalar_select %p2333, %s19, 1
        %s2335 = smul.addr %s2334, 2
        %s2336 = scalar_lea.vmem %s6, %s2335
      $region60: #{resnet_basic_block.4} parent=51 // pred_fallthru
        _
    $region52: #{resnet_basic_block.4} parent=5 // pred_fallthru
      _
  $region6: #{resnet_basic_block.4} parent=0 // loop_footer
    %s17 = sadd.s32 1, %s13
  $region7: #{resnet_basic_block.4} parent=0 // loop_footer_branch
    %12 = sbr.rel target = $region3
  $region8: #{resnet_basic_block.4} parent=0 // loop_exit
    _

</llo_original>
